<compile_context>
chip_gen: v6e
topology: v6e:2x2x1
jax: 0.10.0
libtpu: 0.0.40
codegen_flags: <defaults>
</compile_context>

<pallas_src>
import functools

import jax
import jax.numpy as jnp
from jax import lax
from jax.experimental import pallas as pl
from jax.experimental.pallas import tpu as pltpu


# ----------------------------------------------------------------------------
# Kernel
# ----------------------------------------------------------------------------
def gru_model_kernel(
        # --- auto-DMA'd VMEM inputs (small, needed immediately) ---
        x_ref,        # (T*Bp, Ip)  f32, time-major, flattened
        wih1_ref,     # (Ip, 3*Hp)  bf16
        bih1_ref,     # (1, 3*Hp)   f32  (r/z slabs include folded bhh1_r/z)
        bih2_ref,     # (1, 3*Hp)   f32  (r/z slabs include folded bhh2_r/z)
        bhh1n_ref,    # (1, Hp)     f32  n-gate slab of bhh1
        bhh2n_ref,    # (1, Hp)     f32  n-gate slab of bhh2
        bfc_ref,      # (1, Op)     f32
        # --- HBM inputs, manually DMA'd (overlapped with compute) ---
        whh1_hbm,     # (Hp, 3*Hp)  bf16
        whh2_hbm,     # (Hp, 3*Hp)  bf16
        wih2_hbm,     # (Hp, 3*Hp)  bf16
        wfc_hbm,      # (Hp, Op)    bf16
        # --- output ---
        out_ref,      # (Bp, Op)    f32
        # --- scratch ---
        whh1_v, whh2_v, wih2_v, wfc_v, dma_sem,
        *, Hp, seq_len, Bp):
    H3 = 3 * Hp

    # Kick off the weight DMAs immediately so they overlap the hoisted
    # layer-1 projection instead of serializing ahead of the time loop.
    cp_whh1 = pltpu.make_async_copy(whh1_hbm, whh1_v, dma_sem.at[0])
    cp_whh2 = pltpu.make_async_copy(whh2_hbm, whh2_v, dma_sem.at[1])
    cp_wih2 = pltpu.make_async_copy(wih2_hbm, wih2_v, dma_sem.at[2])
    cp_wfc = pltpu.make_async_copy(wfc_hbm, wfc_v, dma_sem.at[3])
    cp_whh1.start()
    cp_whh2.start()
    cp_wih2.start()
    cp_wfc.start()

    # Hoisted layer-1 input projection: one MXU call covers all timesteps;
    # bih1 (with bhh1's r/z components folded in) rides along.
    wih1 = wih1_ref[...].astype(jnp.float32)
    gi1_all = (jnp.dot(x_ref[...], wih1, preferred_element_type=jnp.float32)
               + bih1_ref[...])                                   # (T*Bp, 3Hp)

    # Hoisted bias broadcasts (JAX does not CSE broadcast_in_dim; after the
    # static unroll these would otherwise be re-emitted every step).
    bih2 = jnp.broadcast_to(bih2_ref[...], (Bp, H3))
    bhh1n = jnp.broadcast_to(bhh1n_ref[...], (Bp, Hp))
    bhh2n = jnp.broadcast_to(bhh2n_ref[...], (Bp, Hp))

    # Recurrent / layer-2 weights must be resident before the first step.
    cp_whh1.wait()
    cp_whh2.wait()
    cp_wih2.wait()
    whh1 = whh1_v[...].astype(jnp.float32)
    whh2 = whh2_v[...].astype(jnp.float32)
    wih2 = wih2_v[...].astype(jnp.float32)

    h1 = jnp.zeros((Bp, Hp), jnp.float32)
    h2 = jnp.zeros((Bp, Hp), jnp.float32)

    # Static unroll (T small & fixed): all slice starts are static and
    # sublane-tile aligned. If a bundle dump ever shows vreg spills, drop to
    # unroll-by-2/4; bias folding above already minimizes live broadcasts.
    for t in range(seq_len):
        gi1 = gi1_all[t * Bp:(t + 1) * Bp, :]

        # ---- layer 1 (gate order [r, z, n]) ----
        gh1 = jnp.dot(h1, whh1, preferred_element_type=jnp.float32)
        r1 = jax.nn.sigmoid(gi1[:, :Hp] + gh1[:, :Hp])
        z1 = jax.nn.sigmoid(gi1[:, Hp:2 * Hp] + gh1[:, Hp:2 * Hp])
        n1 = jnp.tanh(gi1[:, 2 * Hp:] + r1 * (gh1[:, 2 * Hp:] + bhh1n))
        h1 = (1.0 - z1) * n1 + z1 * h1

        # ---- layer 2 (gi2 / gh2 kept separate: gh2_n must stay inside r2*()) ----
        gi2 = jnp.dot(h1, wih2, preferred_element_type=jnp.float32) + bih2
        gh2 = jnp.dot(h2, whh2, preferred_element_type=jnp.float32)
        r2 = jax.nn.sigmoid(gi2[:, :Hp] + gh2[:, :Hp])
        z2 = jax.nn.sigmoid(gi2[:, Hp:2 * Hp] + gh2[:, Hp:2 * Hp])
        n2 = jnp.tanh(gi2[:, 2 * Hp:] + r2 * (gh2[:, 2 * Hp:] + bhh2n))
        h2 = (1.0 - z2) * n2 + z2 * h2

    # fc on the last timestep of layer 2 (lane-dense 128-wide store).
    cp_wfc.wait()
    wfc = wfc_v[...].astype(jnp.float32)
    out_ref[...] = (jnp.dot(h2, wfc, preferred_element_type=jnp.float32)
                    + bfc_ref[...]).astype(out_ref.dtype)


# ----------------------------------------------------------------------------
# Wrapper: pad / repack to lane- and sublane-aligned slabs, call the kernel.
# ----------------------------------------------------------------------------
def gru_model_forward(x, params, *, Hp=128, Bp=8, Ip=8, Op=128):
    """x: (batch, seq, input_size) float32 -> (batch, output_size) float32."""
    B, T, I = x.shape
    H = params["whh1"].shape[0]
    O = params["wfc"].shape[1]
    assert B <= Bp and I <= Ip and H <= Hp and O <= Op

    wdt = jnp.bfloat16  # weights stored/DMA'd in bf16; in-kernel math is f32

    def pad_gates(w, rows_to):
        # (in, 3H) -> (rows_to, 3*Hp) with each gate in its own 128-lane slab.
        in_dim = w.shape[0]
        w3 = w.reshape(in_dim, 3, H)
        w3 = jnp.pad(w3, ((0, rows_to - in_dim), (0, 0), (0, Hp - H)))
        return w3.reshape(rows_to, 3 * Hp).astype(wdt)

    def pad_bias3(b):
        b3 = b.reshape(1, 3, H)
        b3 = jnp.pad(b3, ((0, 0), (0, 0), (0, Hp - H)))
        return b3.reshape(1, 3 * Hp).astype(jnp.float32)

    def pad_bias1(b):
        return jnp.pad(b, ((0, 0), (0, Hp - H))).astype(jnp.float32)

    # Fold the r/z-gate components of the recurrent biases into the input
    # biases (they add outside any gating); only the n-gate slabs stay
    # separate because they sit inside r * (W_hn h + b_hn).
    zeros_n = jnp.zeros((1, H), jnp.float32)
    bih1_eff = params["bih1"] + jnp.concatenate(
        [params["bhh1"][:, :2 * H], zeros_n], axis=1)
    bih2_eff = params["bih2"] + jnp.concatenate(
        [params["bhh2"][:, :2 * H], zeros_n], axis=1)

    wih1 = pad_gates(params["wih1"], Ip)
    whh1 = pad_gates(params["whh1"], Hp)
    wih2 = pad_gates(params["wih2"], Hp)
    whh2 = pad_gates(params["whh2"], Hp)
    bih1 = pad_bias3(bih1_eff)
    bih2 = pad_bias3(bih2_eff)
    bhh1n = pad_bias1(params["bhh1"][:, 2 * H:])
    bhh2n = pad_bias1(params["bhh2"][:, 2 * H:])

    wfc = jnp.pad(params["wfc"], ((0, Hp - H), (0, Op - O))).astype(wdt)
    bfc = jnp.pad(params["bfc"], ((0, 0), (0, Op - O))).astype(jnp.float32)

    # Input: time-major, batch padded to one f32 sublane tile, features to Ip.
    x_tm = jnp.transpose(x, (1, 0, 2))                           # (T, B, I)
    x_tm = jnp.pad(x_tm, ((0, 0), (0, Bp - B), (0, Ip - I)))     # (T, Bp, Ip)
    x2d = x_tm.reshape(T * Bp, Ip).astype(jnp.float32)

    kernel = functools.partial(gru_model_kernel, Hp=Hp, seq_len=T, Bp=Bp)
    vmem = pl.BlockSpec(memory_space=pltpu.MemorySpace.VMEM)
    hbm = pl.BlockSpec(memory_space=pl.ANY)

    vmem_args = (x2d, wih1, bih1, bih2, bhh1n, bhh2n, bfc)
    hbm_args = (whh1, whh2, wih2, wfc)

    out = pl.pallas_call(
        kernel,
        out_shape=jax.ShapeDtypeStruct((Bp, Op), jnp.float32),
        in_specs=[vmem] * len(vmem_args) + [hbm] * len(hbm_args),
        out_specs=vmem,
        scratch_shapes=[
            pltpu.VMEM((Hp, 3 * Hp), wdt),   # whh1
            pltpu.VMEM((Hp, 3 * Hp), wdt),   # whh2
            pltpu.VMEM((Hp, 3 * Hp), wdt),   # wih2
            pltpu.VMEM((Hp, Op), wdt),       # wfc
            pltpu.SemaphoreType.DMA((4,)),
        ],
    )(*vmem_args, *hbm_args)
    # TODO(synk): if batch grows past one sublane tile, add grid=(cdiv(B,Bp),)
    # with dimension_semantics=("parallel",) so v7x's second TensorCore is used.
    return out[:B, :O]


# ----------------------------------------------------------------------------
# Deterministic parameter init (PyTorch-style U(-1/sqrt(H), 1/sqrt(H)))
# ----------------------------------------------------------------------------
def init_params(key, input_size, hidden_size, output_size):
    H = hidden_size
    bound = 1.0 / float(H) ** 0.5
    ks = jax.random.split(key, 10)
    u = lambda k, shape: jax.random.uniform(k, shape, jnp.float32, -bound, bound)
    return dict(
        wih1=u(ks[0], (input_size, 3 * H)),
        whh1=u(ks[1], (H, 3 * H)),
        bih1=u(ks[2], (1, 3 * H)),
        bhh1=u(ks[3], (1, 3 * H)),
        wih2=u(ks[4], (H, 3 * H)),
        whh2=u(ks[5], (H, 3 * H)),
        bih2=u(ks[6], (1, 3 * H)),
        bhh2=u(ks[7], (1, 3 * H)),
        wfc=u(ks[8], (H, output_size)),
        bfc=u(ks[9], (1, output_size)),
    )


def quantize_weights(params):
    """bf16-round the matmul weights (what the kernel effectively uses)."""
    qp = dict(params)
    for k in ("wih1", "whh1", "wih2", "whh2", "wfc"):
        qp[k] = params[k].astype(jnp.bfloat16).astype(jnp.float32)
    return qp


# ----------------------------------------------------------------------------
# Pure-JAX reference (same math, no Pallas) for a correctness check.
# ----------------------------------------------------------------------------
def _gru_cell_ref(x_t, h, w_ih, w_hh, b_ih, b_hh, H):
    hi = lax.Precision.HIGHEST
    gi = jnp.dot(x_t, w_ih, precision=hi) + b_ih
    gh = jnp.dot(h, w_hh, precision=hi) + b_hh
    r = jax.nn.sigmoid(gi[:, 0 * H:1 * H] + gh[:, 0 * H:1 * H])
    z = jax.nn.sigmoid(gi[:, 1 * H:2 * H] + gh[:, 1 * H:2 * H])
    n = jnp.tanh(gi[:, 2 * H:3 * H] + r * gh[:, 2 * H:3 * H])
    return (1.0 - z) * n + z * h


def gru_model_reference(x, params):
    B, T, _ = x.shape
    H = params["whh1"].shape[0]

    def layer(seq, wih, whh, bih, bhh):
        def step(h, x_t):
            h = _gru_cell_ref(x_t, h, wih, whh, bih, bhh, H)
            return h, h
        h0 = jnp.zeros((B, H), jnp.float32)
        _, ys = lax.scan(step, h0, jnp.transpose(seq, (1, 0, 2)))
        return jnp.transpose(ys, (1, 0, 2))

    y1 = layer(x, params["wih1"], params["whh1"], params["bih1"], params["bhh1"])
    y2 = layer(y1, params["wih2"], params["whh2"], params["bih2"], params["bhh2"])
    last = y2[:, -1, :]
    return jnp.dot(last, params["wfc"], precision=lax.Precision.HIGHEST) + params["bfc"]


if __name__ == "__main__":
    # Shapes implied by the module: input_size=2 features, hidden=50, horizon=24.
    batch, seq_len = 2, 8
    input_size, hidden_size, output_size = 2, 50, 24

    key = jax.random.PRNGKey(0)
    k_x, k_p = jax.random.split(key)
    x = jax.random.normal(k_x, (batch, seq_len, input_size), jnp.float32)
    params = init_params(k_p, input_size, hidden_size, output_size)

    out = jax.block_until_ready(gru_model_forward(x, params))

    # The kernel stores weights in bf16 (perf review item); compare against a
    # reference that uses the same bf16-rounded weights so the check stays tight.
    ref = jax.block_until_ready(gru_model_reference(x, quantize_weights(params)))
    assert out.shape == (batch, output_size)
    max_err = float(jnp.max(jnp.abs(out - ref)))
    assert jnp.allclose(out, ref, rtol=1e-3, atol=1e-3), f"max err {max_err}"

    print("KERNEL_OK")
</pallas_src>

<mosaic_0001>
module attributes {stable_mosaic.version = 11 : i64} {
  func.func @gru_model_kernel(%arg0: memref<64x8xf32, #tpu.memory_space<vmem>>, %arg1: memref<8x384xbf16, #tpu.memory_space<vmem>>, %arg2: memref<1x384xf32, #tpu.memory_space<vmem>>, %arg3: memref<1x384xf32, #tpu.memory_space<vmem>>, %arg4: memref<1x128xf32, #tpu.memory_space<vmem>>, %arg5: memref<1x128xf32, #tpu.memory_space<vmem>>, %arg6: memref<1x128xf32, #tpu.memory_space<vmem>>, %arg7: memref<128x384xbf16, #tpu.memory_space<any>>, %arg8: memref<128x384xbf16, #tpu.memory_space<any>>, %arg9: memref<128x384xbf16, #tpu.memory_space<any>>, %arg10: memref<128x128xbf16, #tpu.memory_space<any>>, %arg11: memref<8x128xf32, #tpu.memory_space<vmem>>, %arg12: memref<128x384xbf16, #tpu.memory_space<vmem>>, %arg13: memref<128x384xbf16, #tpu.memory_space<vmem>>, %arg14: memref<128x384xbf16, #tpu.memory_space<vmem>>, %arg15: memref<128x128xbf16, #tpu.memory_space<vmem>>, %arg16: memref<4x!tpu.dma_semaphore, #tpu.memory_space<semaphore_mem>>) attributes {dimension_semantics = [], scalar_prefetch = 0 : i64, scratch_operands = 5 : i64, tpu.core_type = #tpu.core_type<tc>} {
    %c0_i32 = arith.constant 0 : i32
    %0 = tpu.memref_slice %arg16[%c0_i32] : memref<4x!tpu.dma_semaphore, #tpu.memory_space<semaphore_mem>> -> memref<1x!tpu.dma_semaphore, #tpu.memory_space<semaphore_mem>>
    %1 = tpu.memref_squeeze %0 : memref<1x!tpu.dma_semaphore, #tpu.memory_space<semaphore_mem>> -> memref<!tpu.dma_semaphore, #tpu.memory_space<semaphore_mem>>
    tpu.enqueue_dma source(%arg7 : memref<128x384xbf16, #tpu.memory_space<any>>) target(%arg12 : memref<128x384xbf16, #tpu.memory_space<vmem>>) target_semaphore(%1 : memref<!tpu.dma_semaphore, #tpu.memory_space<semaphore_mem>>)
    %c1_i32 = arith.constant 1 : i32
    %2 = tpu.memref_slice %arg16[%c1_i32] : memref<4x!tpu.dma_semaphore, #tpu.memory_space<semaphore_mem>> -> memref<1x!tpu.dma_semaphore, #tpu.memory_space<semaphore_mem>>
    %3 = tpu.memref_squeeze %2 : memref<1x!tpu.dma_semaphore, #tpu.memory_space<semaphore_mem>> -> memref<!tpu.dma_semaphore, #tpu.memory_space<semaphore_mem>>
    tpu.enqueue_dma source(%arg8 : memref<128x384xbf16, #tpu.memory_space<any>>) target(%arg13 : memref<128x384xbf16, #tpu.memory_space<vmem>>) target_semaphore(%3 : memref<!tpu.dma_semaphore, #tpu.memory_space<semaphore_mem>>)
    %c2_i32 = arith.constant 2 : i32
    %4 = tpu.memref_slice %arg16[%c2_i32] : memref<4x!tpu.dma_semaphore, #tpu.memory_space<semaphore_mem>> -> memref<1x!tpu.dma_semaphore, #tpu.memory_space<semaphore_mem>>
    %5 = tpu.memref_squeeze %4 : memref<1x!tpu.dma_semaphore, #tpu.memory_space<semaphore_mem>> -> memref<!tpu.dma_semaphore, #tpu.memory_space<semaphore_mem>>
    tpu.enqueue_dma source(%arg9 : memref<128x384xbf16, #tpu.memory_space<any>>) target(%arg14 : memref<128x384xbf16, #tpu.memory_space<vmem>>) target_semaphore(%5 : memref<!tpu.dma_semaphore, #tpu.memory_space<semaphore_mem>>)
    %c3_i32 = arith.constant 3 : i32
    %6 = tpu.memref_slice %arg16[%c3_i32] : memref<4x!tpu.dma_semaphore, #tpu.memory_space<semaphore_mem>> -> memref<1x!tpu.dma_semaphore, #tpu.memory_space<semaphore_mem>>
    %7 = tpu.memref_squeeze %6 : memref<1x!tpu.dma_semaphore, #tpu.memory_space<semaphore_mem>> -> memref<!tpu.dma_semaphore, #tpu.memory_space<semaphore_mem>>
    tpu.enqueue_dma source(%arg10 : memref<128x128xbf16, #tpu.memory_space<any>>) target(%arg15 : memref<128x128xbf16, #tpu.memory_space<vmem>>) target_semaphore(%7 : memref<!tpu.dma_semaphore, #tpu.memory_space<semaphore_mem>>)
    %c0 = arith.constant 0 : index
    %c0_0 = arith.constant 0 : index
    %8 = vector.load %arg1[%c0, %c0_0] : memref<8x384xbf16, #tpu.memory_space<vmem>>, vector<8x384xbf16>
    %9 = arith.extf %8 : vector<8x384xbf16> to vector<8x384xf32>
    %c0_1 = arith.constant 0 : index
    %c0_2 = arith.constant 0 : index
    %10 = vector.load %arg0[%c0_1, %c0_2] : memref<64x8xf32, #tpu.memory_space<vmem>>, vector<64x8xf32>
    %cst = arith.constant dense<0.000000e+00> : vector<64x384xf32>
    %11 = tpu.matmul %10, %9, %cst {dimension_numbers = #tpu.dot_dimension_numbers<[1], [0], [0], [1], [0, 0, 1, 1], [], []>} : vector<64x8xf32>, vector<8x384xf32>, vector<64x384xf32> -> vector<64x384xf32>
    %c0_3 = arith.constant 0 : index
    %c0_4 = arith.constant 0 : index
    %12 = vector.load %arg2[%c0_3, %c0_4] : memref<1x384xf32, #tpu.memory_space<vmem>>, vector<1x384xf32>
    %13 = vector.broadcast %12 : vector<1x384xf32> to vector<64x384xf32>
    %14 = arith.addf %11, %13 : vector<64x384xf32>
    %c0_5 = arith.constant 0 : index
    %c0_6 = arith.constant 0 : index
    %15 = vector.load %arg3[%c0_5, %c0_6] : memref<1x384xf32, #tpu.memory_space<vmem>>, vector<1x384xf32>
    %16 = vector.shape_cast %15 : vector<1x384xf32> to vector<1x384xf32>
    %17 = vector.broadcast %16 : vector<1x384xf32> to vector<8x384xf32>
    %c0_7 = arith.constant 0 : index
    %c0_8 = arith.constant 0 : index
    %18 = vector.load %arg4[%c0_7, %c0_8] : memref<1x128xf32, #tpu.memory_space<vmem>>, vector<1x128xf32>
    %19 = vector.shape_cast %18 : vector<1x128xf32> to vector<1x128xf32>
    %20 = vector.broadcast %19 : vector<1x128xf32> to vector<8x128xf32>
    %c0_9 = arith.constant 0 : index
    %c0_10 = arith.constant 0 : index
    %21 = vector.load %arg5[%c0_9, %c0_10] : memref<1x128xf32, #tpu.memory_space<vmem>>, vector<1x128xf32>
    %22 = vector.shape_cast %21 : vector<1x128xf32> to vector<1x128xf32>
    %23 = vector.broadcast %22 : vector<1x128xf32> to vector<8x128xf32>
    %c0_i32_11 = arith.constant 0 : i32
    %24 = tpu.memref_slice %arg16[%c0_i32_11] : memref<4x!tpu.dma_semaphore, #tpu.memory_space<semaphore_mem>> -> memref<1x!tpu.dma_semaphore, #tpu.memory_space<semaphore_mem>>
    %25 = tpu.memref_squeeze %24 : memref<1x!tpu.dma_semaphore, #tpu.memory_space<semaphore_mem>> -> memref<!tpu.dma_semaphore, #tpu.memory_space<semaphore_mem>>
    tpu.wait_dma2 semaphore(%25 : memref<!tpu.dma_semaphore, #tpu.memory_space<semaphore_mem>>) src(%arg7 : memref<128x384xbf16, #tpu.memory_space<any>>) dst(%arg12 : memref<128x384xbf16, #tpu.memory_space<vmem>>)
    %c1_i32_12 = arith.constant 1 : i32
    %26 = tpu.memref_slice %arg16[%c1_i32_12] : memref<4x!tpu.dma_semaphore, #tpu.memory_space<semaphore_mem>> -> memref<1x!tpu.dma_semaphore, #tpu.memory_space<semaphore_mem>>
    %27 = tpu.memref_squeeze %26 : memref<1x!tpu.dma_semaphore, #tpu.memory_space<semaphore_mem>> -> memref<!tpu.dma_semaphore, #tpu.memory_space<semaphore_mem>>
    tpu.wait_dma2 semaphore(%27 : memref<!tpu.dma_semaphore, #tpu.memory_space<semaphore_mem>>) src(%arg8 : memref<128x384xbf16, #tpu.memory_space<any>>) dst(%arg13 : memref<128x384xbf16, #tpu.memory_space<vmem>>)
    %c2_i32_13 = arith.constant 2 : i32
    %28 = tpu.memref_slice %arg16[%c2_i32_13] : memref<4x!tpu.dma_semaphore, #tpu.memory_space<semaphore_mem>> -> memref<1x!tpu.dma_semaphore, #tpu.memory_space<semaphore_mem>>
    %29 = tpu.memref_squeeze %28 : memref<1x!tpu.dma_semaphore, #tpu.memory_space<semaphore_mem>> -> memref<!tpu.dma_semaphore, #tpu.memory_space<semaphore_mem>>
    tpu.wait_dma2 semaphore(%29 : memref<!tpu.dma_semaphore, #tpu.memory_space<semaphore_mem>>) src(%arg9 : memref<128x384xbf16, #tpu.memory_space<any>>) dst(%arg14 : memref<128x384xbf16, #tpu.memory_space<vmem>>)
    %c0_14 = arith.constant 0 : index
    %c0_15 = arith.constant 0 : index
    %30 = vector.load %arg12[%c0_14, %c0_15] : memref<128x384xbf16, #tpu.memory_space<vmem>>, vector<128x384xbf16>
    %31 = arith.extf %30 : vector<128x384xbf16> to vector<128x384xf32>
    %c0_16 = arith.constant 0 : index
    %c0_17 = arith.constant 0 : index
    %32 = vector.load %arg13[%c0_16, %c0_17] : memref<128x384xbf16, #tpu.memory_space<vmem>>, vector<128x384xbf16>
    %33 = arith.extf %32 : vector<128x384xbf16> to vector<128x384xf32>
    %c0_18 = arith.constant 0 : index
    %c0_19 = arith.constant 0 : index
    %34 = vector.load %arg14[%c0_18, %c0_19] : memref<128x384xbf16, #tpu.memory_space<vmem>>, vector<128x384xbf16>
    %35 = arith.extf %34 : vector<128x384xbf16> to vector<128x384xf32>
    %cst_20 = arith.constant 0.000000e+00 : f32
    %36 = vector.broadcast %cst_20 : f32 to vector<8x128xf32>
    %cst_21 = arith.constant 0.000000e+00 : f32
    %37 = vector.broadcast %cst_21 : f32 to vector<8x128xf32>
    %38 = vector.extract_strided_slice %14 {offsets = [0, 0], sizes = [8, 384], strides = [1, 1]} : vector<64x384xf32> to vector<8x384xf32>
    %cst_22 = arith.constant dense<0.000000e+00> : vector<8x384xf32>
    %39 = tpu.matmul %36, %31, %cst_22 {dimension_numbers = #tpu.dot_dimension_numbers<[1], [0], [0], [1], [0, 0, 1, 1], [], []>} : vector<8x128xf32>, vector<128x384xf32>, vector<8x384xf32> -> vector<8x384xf32>
    %40 = vector.extract_strided_slice %38 {offsets = [0, 0], sizes = [8, 128], strides = [1, 1]} : vector<8x384xf32> to vector<8x128xf32>
    %41 = vector.extract_strided_slice %39 {offsets = [0, 0], sizes = [8, 128], strides = [1, 1]} : vector<8x384xf32> to vector<8x128xf32>
    %42 = arith.addf %40, %41 : vector<8x128xf32>
    %43 = arith.negf %42 : vector<8x128xf32>
    %44 = math.exp %43 : vector<8x128xf32>
    %cst_23 = arith.constant 1.000000e+00 : f32
    %45 = vector.broadcast %cst_23 : f32 to vector<8x128xf32>
    %46 = arith.addf %45, %44 : vector<8x128xf32>
    %47 = arith.divf %45, %46 : vector<8x128xf32>
    %48 = vector.extract_strided_slice %38 {offsets = [0, 128], sizes = [8, 128], strides = [1, 1]} : vector<8x384xf32> to vector<8x128xf32>
    %49 = vector.extract_strided_slice %39 {offsets = [0, 128], sizes = [8, 128], strides = [1, 1]} : vector<8x384xf32> to vector<8x128xf32>
    %50 = arith.addf %48, %49 : vector<8x128xf32>
    %51 = arith.negf %50 : vector<8x128xf32>
    %52 = math.exp %51 : vector<8x128xf32>
    %cst_24 = arith.constant 1.000000e+00 : f32
    %53 = vector.broadcast %cst_24 : f32 to vector<8x128xf32>
    %54 = arith.addf %53, %52 : vector<8x128xf32>
    %55 = arith.divf %53, %54 : vector<8x128xf32>
    %56 = vector.extract_strided_slice %38 {offsets = [0, 256], sizes = [8, 128], strides = [1, 1]} : vector<8x384xf32> to vector<8x128xf32>
    %57 = vector.extract_strided_slice %39 {offsets = [0, 256], sizes = [8, 128], strides = [1, 1]} : vector<8x384xf32> to vector<8x128xf32>
    %58 = arith.addf %57, %20 : vector<8x128xf32>
    %59 = arith.mulf %47, %58 : vector<8x128xf32>
    %60 = arith.addf %56, %59 : vector<8x128xf32>
    %61 = math.tanh %60 : vector<8x128xf32>
    %cst_25 = arith.constant 1.000000e+00 : f32
    %62 = vector.broadcast %cst_25 : f32 to vector<8x128xf32>
    %63 = arith.subf %62, %55 : vector<8x128xf32>
    %64 = arith.mulf %63, %61 : vector<8x128xf32>
    %65 = arith.mulf %55, %36 : vector<8x128xf32>
    %66 = arith.addf %64, %65 : vector<8x128xf32>
    %cst_26 = arith.constant dense<0.000000e+00> : vector<8x384xf32>
    %67 = tpu.matmul %66, %35, %cst_26 {dimension_numbers = #tpu.dot_dimension_numbers<[1], [0], [0], [1], [0, 0, 1, 1], [], []>} : vector<8x128xf32>, vector<128x384xf32>, vector<8x384xf32> -> vector<8x384xf32>
    %68 = arith.addf %67, %17 : vector<8x384xf32>
    %cst_27 = arith.constant dense<0.000000e+00> : vector<8x384xf32>
    %69 = tpu.matmul %37, %33, %cst_27 {dimension_numbers = #tpu.dot_dimension_numbers<[1], [0], [0], [1], [0, 0, 1, 1], [], []>} : vector<8x128xf32>, vector<128x384xf32>, vector<8x384xf32> -> vector<8x384xf32>
    %70 = vector.extract_strided_slice %68 {offsets = [0, 0], sizes = [8, 128], strides = [1, 1]} : vector<8x384xf32> to vector<8x128xf32>
    %71 = vector.extract_strided_slice %69 {offsets = [0, 0], sizes = [8, 128], strides = [1, 1]} : vector<8x384xf32> to vector<8x128xf32>
    %72 = arith.addf %70, %71 : vector<8x128xf32>
    %73 = arith.negf %72 : vector<8x128xf32>
    %74 = math.exp %73 : vector<8x128xf32>
    %cst_28 = arith.constant 1.000000e+00 : f32
    %75 = vector.broadcast %cst_28 : f32 to vector<8x128xf32>
    %76 = arith.addf %75, %74 : vector<8x128xf32>
    %77 = arith.divf %75, %76 : vector<8x128xf32>
    %78 = vector.extract_strided_slice %68 {offsets = [0, 128], sizes = [8, 128], strides = [1, 1]} : vector<8x384xf32> to vector<8x128xf32>
    %79 = vector.extract_strided_slice %69 {offsets = [0, 128], sizes = [8, 128], strides = [1, 1]} : vector<8x384xf32> to vector<8x128xf32>
    %80 = arith.addf %78, %79 : vector<8x128xf32>
    %81 = arith.negf %80 : vector<8x128xf32>
    %82 = math.exp %81 : vector<8x128xf32>
    %cst_29 = arith.constant 1.000000e+00 : f32
    %83 = vector.broadcast %cst_29 : f32 to vector<8x128xf32>
    %84 = arith.addf %83, %82 : vector<8x128xf32>
    %85 = arith.divf %83, %84 : vector<8x128xf32>
    %86 = vector.extract_strided_slice %68 {offsets = [0, 256], sizes = [8, 128], strides = [1, 1]} : vector<8x384xf32> to vector<8x128xf32>
    %87 = vector.extract_strided_slice %69 {offsets = [0, 256], sizes = [8, 128], strides = [1, 1]} : vector<8x384xf32> to vector<8x128xf32>
    %88 = arith.addf %87, %23 : vector<8x128xf32>
    %89 = arith.mulf %77, %88 : vector<8x128xf32>
    %90 = arith.addf %86, %89 : vector<8x128xf32>
    %91 = math.tanh %90 : vector<8x128xf32>
    %cst_30 = arith.constant 1.000000e+00 : f32
    %92 = vector.broadcast %cst_30 : f32 to vector<8x128xf32>
    %93 = arith.subf %92, %85 : vector<8x128xf32>
    %94 = arith.mulf %93, %91 : vector<8x128xf32>
    %95 = arith.mulf %85, %37 : vector<8x128xf32>
    %96 = arith.addf %94, %95 : vector<8x128xf32>
    %97 = vector.extract_strided_slice %14 {offsets = [8, 0], sizes = [8, 384], strides = [1, 1]} : vector<64x384xf32> to vector<8x384xf32>
    %cst_31 = arith.constant dense<0.000000e+00> : vector<8x384xf32>
    %98 = tpu.matmul %66, %31, %cst_31 {dimension_numbers = #tpu.dot_dimension_numbers<[1], [0], [0], [1], [0, 0, 1, 1], [], []>} : vector<8x128xf32>, vector<128x384xf32>, vector<8x384xf32> -> vector<8x384xf32>
    %99 = vector.extract_strided_slice %97 {offsets = [0, 0], sizes = [8, 128], strides = [1, 1]} : vector<8x384xf32> to vector<8x128xf32>
    %100 = vector.extract_strided_slice %98 {offsets = [0, 0], sizes = [8, 128], strides = [1, 1]} : vector<8x384xf32> to vector<8x128xf32>
    %101 = arith.addf %99, %100 : vector<8x128xf32>
    %102 = arith.negf %101 : vector<8x128xf32>
    %103 = math.exp %102 : vector<8x128xf32>
    %cst_32 = arith.constant 1.000000e+00 : f32
    %104 = vector.broadcast %cst_32 : f32 to vector<8x128xf32>
    %105 = arith.addf %104, %103 : vector<8x128xf32>
    %106 = arith.divf %104, %105 : vector<8x128xf32>
    %107 = vector.extract_strided_slice %97 {offsets = [0, 128], sizes = [8, 128], strides = [1, 1]} : vector<8x384xf32> to vector<8x128xf32>
    %108 = vector.extract_strided_slice %98 {offsets = [0, 128], sizes = [8, 128], strides = [1, 1]} : vector<8x384xf32> to vector<8x128xf32>
    %109 = arith.addf %107, %108 : vector<8x128xf32>
    %110 = arith.negf %109 : vector<8x128xf32>
    %111 = math.exp %110 : vector<8x128xf32>
    %cst_33 = arith.constant 1.000000e+00 : f32
    %112 = vector.broadcast %cst_33 : f32 to vector<8x128xf32>
    %113 = arith.addf %112, %111 : vector<8x128xf32>
    %114 = arith.divf %112, %113 : vector<8x128xf32>
    %115 = vector.extract_strided_slice %97 {offsets = [0, 256], sizes = [8, 128], strides = [1, 1]} : vector<8x384xf32> to vector<8x128xf32>
    %116 = vector.extract_strided_slice %98 {offsets = [0, 256], sizes = [8, 128], strides = [1, 1]} : vector<8x384xf32> to vector<8x128xf32>
    %117 = arith.addf %116, %20 : vector<8x128xf32>
    %118 = arith.mulf %106, %117 : vector<8x128xf32>
    %119 = arith.addf %115, %118 : vector<8x128xf32>
    %120 = math.tanh %119 : vector<8x128xf32>
    %cst_34 = arith.constant 1.000000e+00 : f32
    %121 = vector.broadcast %cst_34 : f32 to vector<8x128xf32>
    %122 = arith.subf %121, %114 : vector<8x128xf32>
    %123 = arith.mulf %122, %120 : vector<8x128xf32>
    %124 = arith.mulf %114, %66 : vector<8x128xf32>
    %125 = arith.addf %123, %124 : vector<8x128xf32>
    %cst_35 = arith.constant dense<0.000000e+00> : vector<8x384xf32>
    %126 = tpu.matmul %125, %35, %cst_35 {dimension_numbers = #tpu.dot_dimension_numbers<[1], [0], [0], [1], [0, 0, 1, 1], [], []>} : vector<8x128xf32>, vector<128x384xf32>, vector<8x384xf32> -> vector<8x384xf32>
    %127 = arith.addf %126, %17 : vector<8x384xf32>
    %cst_36 = arith.constant dense<0.000000e+00> : vector<8x384xf32>
    %128 = tpu.matmul %96, %33, %cst_36 {dimension_numbers = #tpu.dot_dimension_numbers<[1], [0], [0], [1], [0, 0, 1, 1], [], []>} : vector<8x128xf32>, vector<128x384xf32>, vector<8x384xf32> -> vector<8x384xf32>
    %129 = vector.extract_strided_slice %127 {offsets = [0, 0], sizes = [8, 128], strides = [1, 1]} : vector<8x384xf32> to vector<8x128xf32>
    %130 = vector.extract_strided_slice %128 {offsets = [0, 0], sizes = [8, 128], strides = [1, 1]} : vector<8x384xf32> to vector<8x128xf32>
    %131 = arith.addf %129, %130 : vector<8x128xf32>
    %132 = arith.negf %131 : vector<8x128xf32>
    %133 = math.exp %132 : vector<8x128xf32>
    %cst_37 = arith.constant 1.000000e+00 : f32
    %134 = vector.broadcast %cst_37 : f32 to vector<8x128xf32>
    %135 = arith.addf %134, %133 : vector<8x128xf32>
    %136 = arith.divf %134, %135 : vector<8x128xf32>
    %137 = vector.extract_strided_slice %127 {offsets = [0, 128], sizes = [8, 128], strides = [1, 1]} : vector<8x384xf32> to vector<8x128xf32>
    %138 = vector.extract_strided_slice %128 {offsets = [0, 128], sizes = [8, 128], strides = [1, 1]} : vector<8x384xf32> to vector<8x128xf32>
    %139 = arith.addf %137, %138 : vector<8x128xf32>
    %140 = arith.negf %139 : vector<8x128xf32>
    %141 = math.exp %140 : vector<8x128xf32>
    %cst_38 = arith.constant 1.000000e+00 : f32
    %142 = vector.broadcast %cst_38 : f32 to vector<8x128xf32>
    %143 = arith.addf %142, %141 : vector<8x128xf32>
    %144 = arith.divf %142, %143 : vector<8x128xf32>
    %145 = vector.extract_strided_slice %127 {offsets = [0, 256], sizes = [8, 128], strides = [1, 1]} : vector<8x384xf32> to vector<8x128xf32>
    %146 = vector.extract_strided_slice %128 {offsets = [0, 256], sizes = [8, 128], strides = [1, 1]} : vector<8x384xf32> to vector<8x128xf32>
    %147 = arith.addf %146, %23 : vector<8x128xf32>
    %148 = arith.mulf %136, %147 : vector<8x128xf32>
    %149 = arith.addf %145, %148 : vector<8x128xf32>
    %150 = math.tanh %149 : vector<8x128xf32>
    %cst_39 = arith.constant 1.000000e+00 : f32
    %151 = vector.broadcast %cst_39 : f32 to vector<8x128xf32>
    %152 = arith.subf %151, %144 : vector<8x128xf32>
    %153 = arith.mulf %152, %150 : vector<8x128xf32>
    %154 = arith.mulf %144, %96 : vector<8x128xf32>
    %155 = arith.addf %153, %154 : vector<8x128xf32>
    %156 = vector.extract_strided_slice %14 {offsets = [16, 0], sizes = [8, 384], strides = [1, 1]} : vector<64x384xf32> to vector<8x384xf32>
    %cst_40 = arith.constant dense<0.000000e+00> : vector<8x384xf32>
    %157 = tpu.matmul %125, %31, %cst_40 {dimension_numbers = #tpu.dot_dimension_numbers<[1], [0], [0], [1], [0, 0, 1, 1], [], []>} : vector<8x128xf32>, vector<128x384xf32>, vector<8x384xf32> -> vector<8x384xf32>
    %158 = vector.extract_strided_slice %156 {offsets = [0, 0], sizes = [8, 128], strides = [1, 1]} : vector<8x384xf32> to vector<8x128xf32>
    %159 = vector.extract_strided_slice %157 {offsets = [0, 0], sizes = [8, 128], strides = [1, 1]} : vector<8x384xf32> to vector<8x128xf32>
    %160 = arith.addf %158, %159 : vector<8x128xf32>
    %161 = arith.negf %160 : vector<8x128xf32>
    %162 = math.exp %161 : vector<8x128xf32>
    %cst_41 = arith.constant 1.000000e+00 : f32
    %163 = vector.broadcast %cst_41 : f32 to vector<8x128xf32>
    %164 = arith.addf %163, %162 : vector<8x128xf32>
    %165 = arith.divf %163, %164 : vector<8x128xf32>
    %166 = vector.extract_strided_slice %156 {offsets = [0, 128], sizes = [8, 128], strides = [1, 1]} : vector<8x384xf32> to vector<8x128xf32>
    %167 = vector.extract_strided_slice %157 {offsets = [0, 128], sizes = [8, 128], strides = [1, 1]} : vector<8x384xf32> to vector<8x128xf32>
    %168 = arith.addf %166, %167 : vector<8x128xf32>
    %169 = arith.negf %168 : vector<8x128xf32>
    %170 = math.exp %169 : vector<8x128xf32>
    %cst_42 = arith.constant 1.000000e+00 : f32
    %171 = vector.broadcast %cst_42 : f32 to vector<8x128xf32>
    %172 = arith.addf %171, %170 : vector<8x128xf32>
    %173 = arith.divf %171, %172 : vector<8x128xf32>
    %174 = vector.extract_strided_slice %156 {offsets = [0, 256], sizes = [8, 128], strides = [1, 1]} : vector<8x384xf32> to vector<8x128xf32>
    %175 = vector.extract_strided_slice %157 {offsets = [0, 256], sizes = [8, 128], strides = [1, 1]} : vector<8x384xf32> to vector<8x128xf32>
    %176 = arith.addf %175, %20 : vector<8x128xf32>
    %177 = arith.mulf %165, %176 : vector<8x128xf32>
    %178 = arith.addf %174, %177 : vector<8x128xf32>
    %179 = math.tanh %178 : vector<8x128xf32>
    %cst_43 = arith.constant 1.000000e+00 : f32
    %180 = vector.broadcast %cst_43 : f32 to vector<8x128xf32>
    %181 = arith.subf %180, %173 : vector<8x128xf32>
    %182 = arith.mulf %181, %179 : vector<8x128xf32>
    %183 = arith.mulf %173, %125 : vector<8x128xf32>
    %184 = arith.addf %182, %183 : vector<8x128xf32>
    %cst_44 = arith.constant dense<0.000000e+00> : vector<8x384xf32>
    %185 = tpu.matmul %184, %35, %cst_44 {dimension_numbers = #tpu.dot_dimension_numbers<[1], [0], [0], [1], [0, 0, 1, 1], [], []>} : vector<8x128xf32>, vector<128x384xf32>, vector<8x384xf32> -> vector<8x384xf32>
    %186 = arith.addf %185, %17 : vector<8x384xf32>
    %cst_45 = arith.constant dense<0.000000e+00> : vector<8x384xf32>
    %187 = tpu.matmul %155, %33, %cst_45 {dimension_numbers = #tpu.dot_dimension_numbers<[1], [0], [0], [1], [0, 0, 1, 1], [], []>} : vector<8x128xf32>, vector<128x384xf32>, vector<8x384xf32> -> vector<8x384xf32>
    %188 = vector.extract_strided_slice %186 {offsets = [0, 0], sizes = [8, 128], strides = [1, 1]} : vector<8x384xf32> to vector<8x128xf32>
    %189 = vector.extract_strided_slice %187 {offsets = [0, 0], sizes = [8, 128], strides = [1, 1]} : vector<8x384xf32> to vector<8x128xf32>
    %190 = arith.addf %188, %189 : vector<8x128xf32>
    %191 = arith.negf %190 : vector<8x128xf32>
    %192 = math.exp %191 : vector<8x128xf32>
    %cst_46 = arith.constant 1.000000e+00 : f32
    %193 = vector.broadcast %cst_46 : f32 to vector<8x128xf32>
    %194 = arith.addf %193, %192 : vector<8x128xf32>
    %195 = arith.divf %193, %194 : vector<8x128xf32>
    %196 = vector.extract_strided_slice %186 {offsets = [0, 128], sizes = [8, 128], strides = [1, 1]} : vector<8x384xf32> to vector<8x128xf32>
    %197 = vector.extract_strided_slice %187 {offsets = [0, 128], sizes = [8, 128], strides = [1, 1]} : vector<8x384xf32> to vector<8x128xf32>
    %198 = arith.addf %196, %197 : vector<8x128xf32>
    %199 = arith.negf %198 : vector<8x128xf32>
    %200 = math.exp %199 : vector<8x128xf32>
    %cst_47 = arith.constant 1.000000e+00 : f32
    %201 = vector.broadcast %cst_47 : f32 to vector<8x128xf32>
    %202 = arith.addf %201, %200 : vector<8x128xf32>
    %203 = arith.divf %201, %202 : vector<8x128xf32>
    %204 = vector.extract_strided_slice %186 {offsets = [0, 256], sizes = [8, 128], strides = [1, 1]} : vector<8x384xf32> to vector<8x128xf32>
    %205 = vector.extract_strided_slice %187 {offsets = [0, 256], sizes = [8, 128], strides = [1, 1]} : vector<8x384xf32> to vector<8x128xf32>
    %206 = arith.addf %205, %23 : vector<8x128xf32>
    %207 = arith.mulf %195, %206 : vector<8x128xf32>
    %208 = arith.addf %204, %207 : vector<8x128xf32>
    %209 = math.tanh %208 : vector<8x128xf32>
    %cst_48 = arith.constant 1.000000e+00 : f32
    %210 = vector.broadcast %cst_48 : f32 to vector<8x128xf32>
    %211 = arith.subf %210, %203 : vector<8x128xf32>
    %212 = arith.mulf %211, %209 : vector<8x128xf32>
    %213 = arith.mulf %203, %155 : vector<8x128xf32>
    %214 = arith.addf %212, %213 : vector<8x128xf32>
    %215 = vector.extract_strided_slice %14 {offsets = [24, 0], sizes = [8, 384], strides = [1, 1]} : vector<64x384xf32> to vector<8x384xf32>
    %cst_49 = arith.constant dense<0.000000e+00> : vector<8x384xf32>
    %216 = tpu.matmul %184, %31, %cst_49 {dimension_numbers = #tpu.dot_dimension_numbers<[1], [0], [0], [1], [0, 0, 1, 1], [], []>} : vector<8x128xf32>, vector<128x384xf32>, vector<8x384xf32> -> vector<8x384xf32>
    %217 = vector.extract_strided_slice %215 {offsets = [0, 0], sizes = [8, 128], strides = [1, 1]} : vector<8x384xf32> to vector<8x128xf32>
    %218 = vector.extract_strided_slice %216 {offsets = [0, 0], sizes = [8, 128], strides = [1, 1]} : vector<8x384xf32> to vector<8x128xf32>
    %219 = arith.addf %217, %218 : vector<8x128xf32>
    %220 = arith.negf %219 : vector<8x128xf32>
    %221 = math.exp %220 : vector<8x128xf32>
    %cst_50 = arith.constant 1.000000e+00 : f32
    %222 = vector.broadcast %cst_50 : f32 to vector<8x128xf32>
    %223 = arith.addf %222, %221 : vector<8x128xf32>
    %224 = arith.divf %222, %223 : vector<8x128xf32>
    %225 = vector.extract_strided_slice %215 {offsets = [0, 128], sizes = [8, 128], strides = [1, 1]} : vector<8x384xf32> to vector<8x128xf32>
    %226 = vector.extract_strided_slice %216 {offsets = [0, 128], sizes = [8, 128], strides = [1, 1]} : vector<8x384xf32> to vector<8x128xf32>
    %227 = arith.addf %225, %226 : vector<8x128xf32>
    %228 = arith.negf %227 : vector<8x128xf32>
    %229 = math.exp %228 : vector<8x128xf32>
    %cst_51 = arith.constant 1.000000e+00 : f32
    %230 = vector.broadcast %cst_51 : f32 to vector<8x128xf32>
    %231 = arith.addf %230, %229 : vector<8x128xf32>
    %232 = arith.divf %230, %231 : vector<8x128xf32>
    %233 = vector.extract_strided_slice %215 {offsets = [0, 256], sizes = [8, 128], strides = [1, 1]} : vector<8x384xf32> to vector<8x128xf32>
    %234 = vector.extract_strided_slice %216 {offsets = [0, 256], sizes = [8, 128], strides = [1, 1]} : vector<8x384xf32> to vector<8x128xf32>
    %235 = arith.addf %234, %20 : vector<8x128xf32>
    %236 = arith.mulf %224, %235 : vector<8x128xf32>
    %237 = arith.addf %233, %236 : vector<8x128xf32>
    %238 = math.tanh %237 : vector<8x128xf32>
    %cst_52 = arith.constant 1.000000e+00 : f32
    %239 = vector.broadcast %cst_52 : f32 to vector<8x128xf32>
    %240 = arith.subf %239, %232 : vector<8x128xf32>
    %241 = arith.mulf %240, %238 : vector<8x128xf32>
    %242 = arith.mulf %232, %184 : vector<8x128xf32>
    %243 = arith.addf %241, %242 : vector<8x128xf32>
    %cst_53 = arith.constant dense<0.000000e+00> : vector<8x384xf32>
    %244 = tpu.matmul %243, %35, %cst_53 {dimension_numbers = #tpu.dot_dimension_numbers<[1], [0], [0], [1], [0, 0, 1, 1], [], []>} : vector<8x128xf32>, vector<128x384xf32>, vector<8x384xf32> -> vector<8x384xf32>
    %245 = arith.addf %244, %17 : vector<8x384xf32>
    %cst_54 = arith.constant dense<0.000000e+00> : vector<8x384xf32>
    %246 = tpu.matmul %214, %33, %cst_54 {dimension_numbers = #tpu.dot_dimension_numbers<[1], [0], [0], [1], [0, 0, 1, 1], [], []>} : vector<8x128xf32>, vector<128x384xf32>, vector<8x384xf32> -> vector<8x384xf32>
    %247 = vector.extract_strided_slice %245 {offsets = [0, 0], sizes = [8, 128], strides = [1, 1]} : vector<8x384xf32> to vector<8x128xf32>
    %248 = vector.extract_strided_slice %246 {offsets = [0, 0], sizes = [8, 128], strides = [1, 1]} : vector<8x384xf32> to vector<8x128xf32>
    %249 = arith.addf %247, %248 : vector<8x128xf32>
    %250 = arith.negf %249 : vector<8x128xf32>
    %251 = math.exp %250 : vector<8x128xf32>
    %cst_55 = arith.constant 1.000000e+00 : f32
    %252 = vector.broadcast %cst_55 : f32 to vector<8x128xf32>
    %253 = arith.addf %252, %251 : vector<8x128xf32>
    %254 = arith.divf %252, %253 : vector<8x128xf32>
    %255 = vector.extract_strided_slice %245 {offsets = [0, 128], sizes = [8, 128], strides = [1, 1]} : vector<8x384xf32> to vector<8x128xf32>
    %256 = vector.extract_strided_slice %246 {offsets = [0, 128], sizes = [8, 128], strides = [1, 1]} : vector<8x384xf32> to vector<8x128xf32>
    %257 = arith.addf %255, %256 : vector<8x128xf32>
    %258 = arith.negf %257 : vector<8x128xf32>
    %259 = math.exp %258 : vector<8x128xf32>
    %cst_56 = arith.constant 1.000000e+00 : f32
    %260 = vector.broadcast %cst_56 : f32 to vector<8x128xf32>
    %261 = arith.addf %260, %259 : vector<8x128xf32>
    %262 = arith.divf %260, %261 : vector<8x128xf32>
    %263 = vector.extract_strided_slice %245 {offsets = [0, 256], sizes = [8, 128], strides = [1, 1]} : vector<8x384xf32> to vector<8x128xf32>
    %264 = vector.extract_strided_slice %246 {offsets = [0, 256], sizes = [8, 128], strides = [1, 1]} : vector<8x384xf32> to vector<8x128xf32>
    %265 = arith.addf %264, %23 : vector<8x128xf32>
    %266 = arith.mulf %254, %265 : vector<8x128xf32>
    %267 = arith.addf %263, %266 : vector<8x128xf32>
    %268 = math.tanh %267 : vector<8x128xf32>
    %cst_57 = arith.constant 1.000000e+00 : f32
    %269 = vector.broadcast %cst_57 : f32 to vector<8x128xf32>
    %270 = arith.subf %269, %262 : vector<8x128xf32>
    %271 = arith.mulf %270, %268 : vector<8x128xf32>
    %272 = arith.mulf %262, %214 : vector<8x128xf32>
    %273 = arith.addf %271, %272 : vector<8x128xf32>
    %274 = vector.extract_strided_slice %14 {offsets = [32, 0], sizes = [8, 384], strides = [1, 1]} : vector<64x384xf32> to vector<8x384xf32>
    %cst_58 = arith.constant dense<0.000000e+00> : vector<8x384xf32>
    %275 = tpu.matmul %243, %31, %cst_58 {dimension_numbers = #tpu.dot_dimension_numbers<[1], [0], [0], [1], [0, 0, 1, 1], [], []>} : vector<8x128xf32>, vector<128x384xf32>, vector<8x384xf32> -> vector<8x384xf32>
    %276 = vector.extract_strided_slice %274 {offsets = [0, 0], sizes = [8, 128], strides = [1, 1]} : vector<8x384xf32> to vector<8x128xf32>
    %277 = vector.extract_strided_slice %275 {offsets = [0, 0], sizes = [8, 128], strides = [1, 1]} : vector<8x384xf32> to vector<8x128xf32>
    %278 = arith.addf %276, %277 : vector<8x128xf32>
    %279 = arith.negf %278 : vector<8x128xf32>
    %280 = math.exp %279 : vector<8x128xf32>
    %cst_59 = arith.constant 1.000000e+00 : f32
    %281 = vector.broadcast %cst_59 : f32 to vector<8x128xf32>
    %282 = arith.addf %281, %280 : vector<8x128xf32>
    %283 = arith.divf %281, %282 : vector<8x128xf32>
    %284 = vector.extract_strided_slice %274 {offsets = [0, 128], sizes = [8, 128], strides = [1, 1]} : vector<8x384xf32> to vector<8x128xf32>
    %285 = vector.extract_strided_slice %275 {offsets = [0, 128], sizes = [8, 128], strides = [1, 1]} : vector<8x384xf32> to vector<8x128xf32>
    %286 = arith.addf %284, %285 : vector<8x128xf32>
    %287 = arith.negf %286 : vector<8x128xf32>
    %288 = math.exp %287 : vector<8x128xf32>
    %cst_60 = arith.constant 1.000000e+00 : f32
    %289 = vector.broadcast %cst_60 : f32 to vector<8x128xf32>
    %290 = arith.addf %289, %288 : vector<8x128xf32>
    %291 = arith.divf %289, %290 : vector<8x128xf32>
    %292 = vector.extract_strided_slice %274 {offsets = [0, 256], sizes = [8, 128], strides = [1, 1]} : vector<8x384xf32> to vector<8x128xf32>
    %293 = vector.extract_strided_slice %275 {offsets = [0, 256], sizes = [8, 128], strides = [1, 1]} : vector<8x384xf32> to vector<8x128xf32>
    %294 = arith.addf %293, %20 : vector<8x128xf32>
    %295 = arith.mulf %283, %294 : vector<8x128xf32>
    %296 = arith.addf %292, %295 : vector<8x128xf32>
    %297 = math.tanh %296 : vector<8x128xf32>
    %cst_61 = arith.constant 1.000000e+00 : f32
    %298 = vector.broadcast %cst_61 : f32 to vector<8x128xf32>
    %299 = arith.subf %298, %291 : vector<8x128xf32>
    %300 = arith.mulf %299, %297 : vector<8x128xf32>
    %301 = arith.mulf %291, %243 : vector<8x128xf32>
    %302 = arith.addf %300, %301 : vector<8x128xf32>
    %cst_62 = arith.constant dense<0.000000e+00> : vector<8x384xf32>
    %303 = tpu.matmul %302, %35, %cst_62 {dimension_numbers = #tpu.dot_dimension_numbers<[1], [0], [0], [1], [0, 0, 1, 1], [], []>} : vector<8x128xf32>, vector<128x384xf32>, vector<8x384xf32> -> vector<8x384xf32>
    %304 = arith.addf %303, %17 : vector<8x384xf32>
    %cst_63 = arith.constant dense<0.000000e+00> : vector<8x384xf32>
    %305 = tpu.matmul %273, %33, %cst_63 {dimension_numbers = #tpu.dot_dimension_numbers<[1], [0], [0], [1], [0, 0, 1, 1], [], []>} : vector<8x128xf32>, vector<128x384xf32>, vector<8x384xf32> -> vector<8x384xf32>
    %306 = vector.extract_strided_slice %304 {offsets = [0, 0], sizes = [8, 128], strides = [1, 1]} : vector<8x384xf32> to vector<8x128xf32>
    %307 = vector.extract_strided_slice %305 {offsets = [0, 0], sizes = [8, 128], strides = [1, 1]} : vector<8x384xf32> to vector<8x128xf32>
    %308 = arith.addf %306, %307 : vector<8x128xf32>
    %309 = arith.negf %308 : vector<8x128xf32>
    %310 = math.exp %309 : vector<8x128xf32>
    %cst_64 = arith.constant 1.000000e+00 : f32
    %311 = vector.broadcast %cst_64 : f32 to vector<8x128xf32>
    %312 = arith.addf %311, %310 : vector<8x128xf32>
    %313 = arith.divf %311, %312 : vector<8x128xf32>
    %314 = vector.extract_strided_slice %304 {offsets = [0, 128], sizes = [8, 128], strides = [1, 1]} : vector<8x384xf32> to vector<8x128xf32>
    %315 = vector.extract_strided_slice %305 {offsets = [0, 128], sizes = [8, 128], strides = [1, 1]} : vector<8x384xf32> to vector<8x128xf32>
    %316 = arith.addf %314, %315 : vector<8x128xf32>
    %317 = arith.negf %316 : vector<8x128xf32>
    %318 = math.exp %317 : vector<8x128xf32>
    %cst_65 = arith.constant 1.000000e+00 : f32
    %319 = vector.broadcast %cst_65 : f32 to vector<8x128xf32>
    %320 = arith.addf %319, %318 : vector<8x128xf32>
    %321 = arith.divf %319, %320 : vector<8x128xf32>
    %322 = vector.extract_strided_slice %304 {offsets = [0, 256], sizes = [8, 128], strides = [1, 1]} : vector<8x384xf32> to vector<8x128xf32>
    %323 = vector.extract_strided_slice %305 {offsets = [0, 256], sizes = [8, 128], strides = [1, 1]} : vector<8x384xf32> to vector<8x128xf32>
    %324 = arith.addf %323, %23 : vector<8x128xf32>
    %325 = arith.mulf %313, %324 : vector<8x128xf32>
    %326 = arith.addf %322, %325 : vector<8x128xf32>
    %327 = math.tanh %326 : vector<8x128xf32>
    %cst_66 = arith.constant 1.000000e+00 : f32
    %328 = vector.broadcast %cst_66 : f32 to vector<8x128xf32>
    %329 = arith.subf %328, %321 : vector<8x128xf32>
    %330 = arith.mulf %329, %327 : vector<8x128xf32>
    %331 = arith.mulf %321, %273 : vector<8x128xf32>
    %332 = arith.addf %330, %331 : vector<8x128xf32>
    %333 = vector.extract_strided_slice %14 {offsets = [40, 0], sizes = [8, 384], strides = [1, 1]} : vector<64x384xf32> to vector<8x384xf32>
    %cst_67 = arith.constant dense<0.000000e+00> : vector<8x384xf32>
    %334 = tpu.matmul %302, %31, %cst_67 {dimension_numbers = #tpu.dot_dimension_numbers<[1], [0], [0], [1], [0, 0, 1, 1], [], []>} : vector<8x128xf32>, vector<128x384xf32>, vector<8x384xf32> -> vector<8x384xf32>
    %335 = vector.extract_strided_slice %333 {offsets = [0, 0], sizes = [8, 128], strides = [1, 1]} : vector<8x384xf32> to vector<8x128xf32>
    %336 = vector.extract_strided_slice %334 {offsets = [0, 0], sizes = [8, 128], strides = [1, 1]} : vector<8x384xf32> to vector<8x128xf32>
    %337 = arith.addf %335, %336 : vector<8x128xf32>
    %338 = arith.negf %337 : vector<8x128xf32>
    %339 = math.exp %338 : vector<8x128xf32>
    %cst_68 = arith.constant 1.000000e+00 : f32
    %340 = vector.broadcast %cst_68 : f32 to vector<8x128xf32>
    %341 = arith.addf %340, %339 : vector<8x128xf32>
    %342 = arith.divf %340, %341 : vector<8x128xf32>
    %343 = vector.extract_strided_slice %333 {offsets = [0, 128], sizes = [8, 128], strides = [1, 1]} : vector<8x384xf32> to vector<8x128xf32>
    %344 = vector.extract_strided_slice %334 {offsets = [0, 128], sizes = [8, 128], strides = [1, 1]} : vector<8x384xf32> to vector<8x128xf32>
    %345 = arith.addf %343, %344 : vector<8x128xf32>
    %346 = arith.negf %345 : vector<8x128xf32>
    %347 = math.exp %346 : vector<8x128xf32>
    %cst_69 = arith.constant 1.000000e+00 : f32
    %348 = vector.broadcast %cst_69 : f32 to vector<8x128xf32>
    %349 = arith.addf %348, %347 : vector<8x128xf32>
    %350 = arith.divf %348, %349 : vector<8x128xf32>
    %351 = vector.extract_strided_slice %333 {offsets = [0, 256], sizes = [8, 128], strides = [1, 1]} : vector<8x384xf32> to vector<8x128xf32>
    %352 = vector.extract_strided_slice %334 {offsets = [0, 256], sizes = [8, 128], strides = [1, 1]} : vector<8x384xf32> to vector<8x128xf32>
    %353 = arith.addf %352, %20 : vector<8x128xf32>
    %354 = arith.mulf %342, %353 : vector<8x128xf32>
    %355 = arith.addf %351, %354 : vector<8x128xf32>
    %356 = math.tanh %355 : vector<8x128xf32>
    %cst_70 = arith.constant 1.000000e+00 : f32
    %357 = vector.broadcast %cst_70 : f32 to vector<8x128xf32>
    %358 = arith.subf %357, %350 : vector<8x128xf32>
    %359 = arith.mulf %358, %356 : vector<8x128xf32>
    %360 = arith.mulf %350, %302 : vector<8x128xf32>
    %361 = arith.addf %359, %360 : vector<8x128xf32>
    %cst_71 = arith.constant dense<0.000000e+00> : vector<8x384xf32>
    %362 = tpu.matmul %361, %35, %cst_71 {dimension_numbers = #tpu.dot_dimension_numbers<[1], [0], [0], [1], [0, 0, 1, 1], [], []>} : vector<8x128xf32>, vector<128x384xf32>, vector<8x384xf32> -> vector<8x384xf32>
    %363 = arith.addf %362, %17 : vector<8x384xf32>
    %cst_72 = arith.constant dense<0.000000e+00> : vector<8x384xf32>
    %364 = tpu.matmul %332, %33, %cst_72 {dimension_numbers = #tpu.dot_dimension_numbers<[1], [0], [0], [1], [0, 0, 1, 1], [], []>} : vector<8x128xf32>, vector<128x384xf32>, vector<8x384xf32> -> vector<8x384xf32>
    %365 = vector.extract_strided_slice %363 {offsets = [0, 0], sizes = [8, 128], strides = [1, 1]} : vector<8x384xf32> to vector<8x128xf32>
    %366 = vector.extract_strided_slice %364 {offsets = [0, 0], sizes = [8, 128], strides = [1, 1]} : vector<8x384xf32> to vector<8x128xf32>
    %367 = arith.addf %365, %366 : vector<8x128xf32>
    %368 = arith.negf %367 : vector<8x128xf32>
    %369 = math.exp %368 : vector<8x128xf32>
    %cst_73 = arith.constant 1.000000e+00 : f32
    %370 = vector.broadcast %cst_73 : f32 to vector<8x128xf32>
    %371 = arith.addf %370, %369 : vector<8x128xf32>
    %372 = arith.divf %370, %371 : vector<8x128xf32>
    %373 = vector.extract_strided_slice %363 {offsets = [0, 128], sizes = [8, 128], strides = [1, 1]} : vector<8x384xf32> to vector<8x128xf32>
    %374 = vector.extract_strided_slice %364 {offsets = [0, 128], sizes = [8, 128], strides = [1, 1]} : vector<8x384xf32> to vector<8x128xf32>
    %375 = arith.addf %373, %374 : vector<8x128xf32>
    %376 = arith.negf %375 : vector<8x128xf32>
    %377 = math.exp %376 : vector<8x128xf32>
    %cst_74 = arith.constant 1.000000e+00 : f32
    %378 = vector.broadcast %cst_74 : f32 to vector<8x128xf32>
    %379 = arith.addf %378, %377 : vector<8x128xf32>
    %380 = arith.divf %378, %379 : vector<8x128xf32>
    %381 = vector.extract_strided_slice %363 {offsets = [0, 256], sizes = [8, 128], strides = [1, 1]} : vector<8x384xf32> to vector<8x128xf32>
    %382 = vector.extract_strided_slice %364 {offsets = [0, 256], sizes = [8, 128], strides = [1, 1]} : vector<8x384xf32> to vector<8x128xf32>
    %383 = arith.addf %382, %23 : vector<8x128xf32>
    %384 = arith.mulf %372, %383 : vector<8x128xf32>
    %385 = arith.addf %381, %384 : vector<8x128xf32>
    %386 = math.tanh %385 : vector<8x128xf32>
    %cst_75 = arith.constant 1.000000e+00 : f32
    %387 = vector.broadcast %cst_75 : f32 to vector<8x128xf32>
    %388 = arith.subf %387, %380 : vector<8x128xf32>
    %389 = arith.mulf %388, %386 : vector<8x128xf32>
    %390 = arith.mulf %380, %332 : vector<8x128xf32>
    %391 = arith.addf %389, %390 : vector<8x128xf32>
    %392 = vector.extract_strided_slice %14 {offsets = [48, 0], sizes = [8, 384], strides = [1, 1]} : vector<64x384xf32> to vector<8x384xf32>
    %cst_76 = arith.constant dense<0.000000e+00> : vector<8x384xf32>
    %393 = tpu.matmul %361, %31, %cst_76 {dimension_numbers = #tpu.dot_dimension_numbers<[1], [0], [0], [1], [0, 0, 1, 1], [], []>} : vector<8x128xf32>, vector<128x384xf32>, vector<8x384xf32> -> vector<8x384xf32>
    %394 = vector.extract_strided_slice %392 {offsets = [0, 0], sizes = [8, 128], strides = [1, 1]} : vector<8x384xf32> to vector<8x128xf32>
    %395 = vector.extract_strided_slice %393 {offsets = [0, 0], sizes = [8, 128], strides = [1, 1]} : vector<8x384xf32> to vector<8x128xf32>
    %396 = arith.addf %394, %395 : vector<8x128xf32>
    %397 = arith.negf %396 : vector<8x128xf32>
    %398 = math.exp %397 : vector<8x128xf32>
    %cst_77 = arith.constant 1.000000e+00 : f32
    %399 = vector.broadcast %cst_77 : f32 to vector<8x128xf32>
    %400 = arith.addf %399, %398 : vector<8x128xf32>
    %401 = arith.divf %399, %400 : vector<8x128xf32>
    %402 = vector.extract_strided_slice %392 {offsets = [0, 128], sizes = [8, 128], strides = [1, 1]} : vector<8x384xf32> to vector<8x128xf32>
    %403 = vector.extract_strided_slice %393 {offsets = [0, 128], sizes = [8, 128], strides = [1, 1]} : vector<8x384xf32> to vector<8x128xf32>
    %404 = arith.addf %402, %403 : vector<8x128xf32>
    %405 = arith.negf %404 : vector<8x128xf32>
    %406 = math.exp %405 : vector<8x128xf32>
    %cst_78 = arith.constant 1.000000e+00 : f32
    %407 = vector.broadcast %cst_78 : f32 to vector<8x128xf32>
    %408 = arith.addf %407, %406 : vector<8x128xf32>
    %409 = arith.divf %407, %408 : vector<8x128xf32>
    %410 = vector.extract_strided_slice %392 {offsets = [0, 256], sizes = [8, 128], strides = [1, 1]} : vector<8x384xf32> to vector<8x128xf32>
    %411 = vector.extract_strided_slice %393 {offsets = [0, 256], sizes = [8, 128], strides = [1, 1]} : vector<8x384xf32> to vector<8x128xf32>
    %412 = arith.addf %411, %20 : vector<8x128xf32>
    %413 = arith.mulf %401, %412 : vector<8x128xf32>
    %414 = arith.addf %410, %413 : vector<8x128xf32>
    %415 = math.tanh %414 : vector<8x128xf32>
    %cst_79 = arith.constant 1.000000e+00 : f32
    %416 = vector.broadcast %cst_79 : f32 to vector<8x128xf32>
    %417 = arith.subf %416, %409 : vector<8x128xf32>
    %418 = arith.mulf %417, %415 : vector<8x128xf32>
    %419 = arith.mulf %409, %361 : vector<8x128xf32>
    %420 = arith.addf %418, %419 : vector<8x128xf32>
    %cst_80 = arith.constant dense<0.000000e+00> : vector<8x384xf32>
    %421 = tpu.matmul %420, %35, %cst_80 {dimension_numbers = #tpu.dot_dimension_numbers<[1], [0], [0], [1], [0, 0, 1, 1], [], []>} : vector<8x128xf32>, vector<128x384xf32>, vector<8x384xf32> -> vector<8x384xf32>
    %422 = arith.addf %421, %17 : vector<8x384xf32>
    %cst_81 = arith.constant dense<0.000000e+00> : vector<8x384xf32>
    %423 = tpu.matmul %391, %33, %cst_81 {dimension_numbers = #tpu.dot_dimension_numbers<[1], [0], [0], [1], [0, 0, 1, 1], [], []>} : vector<8x128xf32>, vector<128x384xf32>, vector<8x384xf32> -> vector<8x384xf32>
    %424 = vector.extract_strided_slice %422 {offsets = [0, 0], sizes = [8, 128], strides = [1, 1]} : vector<8x384xf32> to vector<8x128xf32>
    %425 = vector.extract_strided_slice %423 {offsets = [0, 0], sizes = [8, 128], strides = [1, 1]} : vector<8x384xf32> to vector<8x128xf32>
    %426 = arith.addf %424, %425 : vector<8x128xf32>
    %427 = arith.negf %426 : vector<8x128xf32>
    %428 = math.exp %427 : vector<8x128xf32>
    %cst_82 = arith.constant 1.000000e+00 : f32
    %429 = vector.broadcast %cst_82 : f32 to vector<8x128xf32>
    %430 = arith.addf %429, %428 : vector<8x128xf32>
    %431 = arith.divf %429, %430 : vector<8x128xf32>
    %432 = vector.extract_strided_slice %422 {offsets = [0, 128], sizes = [8, 128], strides = [1, 1]} : vector<8x384xf32> to vector<8x128xf32>
    %433 = vector.extract_strided_slice %423 {offsets = [0, 128], sizes = [8, 128], strides = [1, 1]} : vector<8x384xf32> to vector<8x128xf32>
    %434 = arith.addf %432, %433 : vector<8x128xf32>
    %435 = arith.negf %434 : vector<8x128xf32>
    %436 = math.exp %435 : vector<8x128xf32>
    %cst_83 = arith.constant 1.000000e+00 : f32
    %437 = vector.broadcast %cst_83 : f32 to vector<8x128xf32>
    %438 = arith.addf %437, %436 : vector<8x128xf32>
    %439 = arith.divf %437, %438 : vector<8x128xf32>
    %440 = vector.extract_strided_slice %422 {offsets = [0, 256], sizes = [8, 128], strides = [1, 1]} : vector<8x384xf32> to vector<8x128xf32>
    %441 = vector.extract_strided_slice %423 {offsets = [0, 256], sizes = [8, 128], strides = [1, 1]} : vector<8x384xf32> to vector<8x128xf32>
    %442 = arith.addf %441, %23 : vector<8x128xf32>
    %443 = arith.mulf %431, %442 : vector<8x128xf32>
    %444 = arith.addf %440, %443 : vector<8x128xf32>
    %445 = math.tanh %444 : vector<8x128xf32>
    %cst_84 = arith.constant 1.000000e+00 : f32
    %446 = vector.broadcast %cst_84 : f32 to vector<8x128xf32>
    %447 = arith.subf %446, %439 : vector<8x128xf32>
    %448 = arith.mulf %447, %445 : vector<8x128xf32>
    %449 = arith.mulf %439, %391 : vector<8x128xf32>
    %450 = arith.addf %448, %449 : vector<8x128xf32>
    %451 = vector.extract_strided_slice %14 {offsets = [56, 0], sizes = [8, 384], strides = [1, 1]} : vector<64x384xf32> to vector<8x384xf32>
    %cst_85 = arith.constant dense<0.000000e+00> : vector<8x384xf32>
    %452 = tpu.matmul %420, %31, %cst_85 {dimension_numbers = #tpu.dot_dimension_numbers<[1], [0], [0], [1], [0, 0, 1, 1], [], []>} : vector<8x128xf32>, vector<128x384xf32>, vector<8x384xf32> -> vector<8x384xf32>
    %453 = vector.extract_strided_slice %451 {offsets = [0, 0], sizes = [8, 128], strides = [1, 1]} : vector<8x384xf32> to vector<8x128xf32>
    %454 = vector.extract_strided_slice %452 {offsets = [0, 0], sizes = [8, 128], strides = [1, 1]} : vector<8x384xf32> to vector<8x128xf32>
    %455 = arith.addf %453, %454 : vector<8x128xf32>
    %456 = arith.negf %455 : vector<8x128xf32>
    %457 = math.exp %456 : vector<8x128xf32>
    %cst_86 = arith.constant 1.000000e+00 : f32
    %458 = vector.broadcast %cst_86 : f32 to vector<8x128xf32>
    %459 = arith.addf %458, %457 : vector<8x128xf32>
    %460 = arith.divf %458, %459 : vector<8x128xf32>
    %461 = vector.extract_strided_slice %451 {offsets = [0, 128], sizes = [8, 128], strides = [1, 1]} : vector<8x384xf32> to vector<8x128xf32>
    %462 = vector.extract_strided_slice %452 {offsets = [0, 128], sizes = [8, 128], strides = [1, 1]} : vector<8x384xf32> to vector<8x128xf32>
    %463 = arith.addf %461, %462 : vector<8x128xf32>
    %464 = arith.negf %463 : vector<8x128xf32>
    %465 = math.exp %464 : vector<8x128xf32>
    %cst_87 = arith.constant 1.000000e+00 : f32
    %466 = vector.broadcast %cst_87 : f32 to vector<8x128xf32>
    %467 = arith.addf %466, %465 : vector<8x128xf32>
    %468 = arith.divf %466, %467 : vector<8x128xf32>
    %469 = vector.extract_strided_slice %451 {offsets = [0, 256], sizes = [8, 128], strides = [1, 1]} : vector<8x384xf32> to vector<8x128xf32>
    %470 = vector.extract_strided_slice %452 {offsets = [0, 256], sizes = [8, 128], strides = [1, 1]} : vector<8x384xf32> to vector<8x128xf32>
    %471 = arith.addf %470, %20 : vector<8x128xf32>
    %472 = arith.mulf %460, %471 : vector<8x128xf32>
    %473 = arith.addf %469, %472 : vector<8x128xf32>
    %474 = math.tanh %473 : vector<8x128xf32>
    %cst_88 = arith.constant 1.000000e+00 : f32
    %475 = vector.broadcast %cst_88 : f32 to vector<8x128xf32>
    %476 = arith.subf %475, %468 : vector<8x128xf32>
    %477 = arith.mulf %476, %474 : vector<8x128xf32>
    %478 = arith.mulf %468, %420 : vector<8x128xf32>
    %479 = arith.addf %477, %478 : vector<8x128xf32>
    %cst_89 = arith.constant dense<0.000000e+00> : vector<8x384xf32>
    %480 = tpu.matmul %479, %35, %cst_89 {dimension_numbers = #tpu.dot_dimension_numbers<[1], [0], [0], [1], [0, 0, 1, 1], [], []>} : vector<8x128xf32>, vector<128x384xf32>, vector<8x384xf32> -> vector<8x384xf32>
    %481 = arith.addf %480, %17 : vector<8x384xf32>
    %cst_90 = arith.constant dense<0.000000e+00> : vector<8x384xf32>
    %482 = tpu.matmul %450, %33, %cst_90 {dimension_numbers = #tpu.dot_dimension_numbers<[1], [0], [0], [1], [0, 0, 1, 1], [], []>} : vector<8x128xf32>, vector<128x384xf32>, vector<8x384xf32> -> vector<8x384xf32>
    %483 = vector.extract_strided_slice %481 {offsets = [0, 0], sizes = [8, 128], strides = [1, 1]} : vector<8x384xf32> to vector<8x128xf32>
    %484 = vector.extract_strided_slice %482 {offsets = [0, 0], sizes = [8, 128], strides = [1, 1]} : vector<8x384xf32> to vector<8x128xf32>
    %485 = arith.addf %483, %484 : vector<8x128xf32>
    %486 = arith.negf %485 : vector<8x128xf32>
    %487 = math.exp %486 : vector<8x128xf32>
    %cst_91 = arith.constant 1.000000e+00 : f32
    %488 = vector.broadcast %cst_91 : f32 to vector<8x128xf32>
    %489 = arith.addf %488, %487 : vector<8x128xf32>
    %490 = arith.divf %488, %489 : vector<8x128xf32>
    %491 = vector.extract_strided_slice %481 {offsets = [0, 128], sizes = [8, 128], strides = [1, 1]} : vector<8x384xf32> to vector<8x128xf32>
    %492 = vector.extract_strided_slice %482 {offsets = [0, 128], sizes = [8, 128], strides = [1, 1]} : vector<8x384xf32> to vector<8x128xf32>
    %493 = arith.addf %491, %492 : vector<8x128xf32>
    %494 = arith.negf %493 : vector<8x128xf32>
    %495 = math.exp %494 : vector<8x128xf32>
    %cst_92 = arith.constant 1.000000e+00 : f32
    %496 = vector.broadcast %cst_92 : f32 to vector<8x128xf32>
    %497 = arith.addf %496, %495 : vector<8x128xf32>
    %498 = arith.divf %496, %497 : vector<8x128xf32>
    %499 = vector.extract_strided_slice %481 {offsets = [0, 256], sizes = [8, 128], strides = [1, 1]} : vector<8x384xf32> to vector<8x128xf32>
    %500 = vector.extract_strided_slice %482 {offsets = [0, 256], sizes = [8, 128], strides = [1, 1]} : vector<8x384xf32> to vector<8x128xf32>
    %501 = arith.addf %500, %23 : vector<8x128xf32>
    %502 = arith.mulf %490, %501 : vector<8x128xf32>
    %503 = arith.addf %499, %502 : vector<8x128xf32>
    %504 = math.tanh %503 : vector<8x128xf32>
    %cst_93 = arith.constant 1.000000e+00 : f32
    %505 = vector.broadcast %cst_93 : f32 to vector<8x128xf32>
    %506 = arith.subf %505, %498 : vector<8x128xf32>
    %507 = arith.mulf %506, %504 : vector<8x128xf32>
    %508 = arith.mulf %498, %450 : vector<8x128xf32>
    %509 = arith.addf %507, %508 : vector<8x128xf32>
    %c3_i32_94 = arith.constant 3 : i32
    %510 = tpu.memref_slice %arg16[%c3_i32_94] : memref<4x!tpu.dma_semaphore, #tpu.memory_space<semaphore_mem>> -> memref<1x!tpu.dma_semaphore, #tpu.memory_space<semaphore_mem>>
    %511 = tpu.memref_squeeze %510 : memref<1x!tpu.dma_semaphore, #tpu.memory_space<semaphore_mem>> -> memref<!tpu.dma_semaphore, #tpu.memory_space<semaphore_mem>>
    tpu.wait_dma2 semaphore(%511 : memref<!tpu.dma_semaphore, #tpu.memory_space<semaphore_mem>>) src(%arg10 : memref<128x128xbf16, #tpu.memory_space<any>>) dst(%arg15 : memref<128x128xbf16, #tpu.memory_space<vmem>>)
    %c0_95 = arith.constant 0 : index
    %c0_96 = arith.constant 0 : index
    %512 = vector.load %arg15[%c0_95, %c0_96] : memref<128x128xbf16, #tpu.memory_space<vmem>>, vector<128x128xbf16>
    %513 = arith.extf %512 : vector<128x128xbf16> to vector<128x128xf32>
    %cst_97 = arith.constant dense<0.000000e+00> : vector<8x128xf32>
    %514 = tpu.matmul %509, %513, %cst_97 {dimension_numbers = #tpu.dot_dimension_numbers<[1], [0], [0], [1], [0, 0, 1, 1], [], []>} : vector<8x128xf32>, vector<128x128xf32>, vector<8x128xf32> -> vector<8x128xf32>
    %c0_98 = arith.constant 0 : index
    %c0_99 = arith.constant 0 : index
    %515 = vector.load %arg6[%c0_98, %c0_99] : memref<1x128xf32, #tpu.memory_space<vmem>>, vector<1x128xf32>
    %516 = vector.broadcast %515 : vector<1x128xf32> to vector<8x128xf32>
    %517 = arith.addf %514, %516 : vector<8x128xf32>
    %c0_100 = arith.constant 0 : index
    %c0_101 = arith.constant 0 : index
    %518 = vector.load %arg11[%c0_100, %c0_101] : memref<8x128xf32, #tpu.memory_space<vmem>>, vector<8x128xf32>
    tpu.vector_store %arg11[%c0_100, %c0_101], %517 {strides = array<i32>} : memref<8x128xf32, #tpu.memory_space<vmem>>, vector<8x128xf32>,
    return
  }
}

</mosaic_0001>

<llo_original>
// kernel: tpu_custom_call.1
$region0: #{tpu_custom_call.1}
  #allocation0 [shape = 'u32[]', space=smem, size = 0x4, offset = 0x4, fixed_abs, tag = 'smem constant byte address 0x4 - core index']
  #allocation1 [shape = 'u32[144,128]{1,0:T(1,128)}', space=vmem, size = 0x12000, scoped, tag = 'internal scratch']
  #allocation2 [shape = 'bf16[128,384]{1,0:T(8,128)(2,1)}', space=vmem, size = 0x18000, scoped, tag = 'scratch operand']
  #allocation3 [shape = 'bf16[128,384]{1,0:T(8,128)(2,1)}', space=vmem, size = 0x18000, scoped, tag = 'scratch operand']
  #allocation4 [shape = 'bf16[128,384]{1,0:T(8,128)(2,1)}', space=vmem, size = 0x18000, scoped, tag = 'scratch operand']
  #allocation5 [shape = 'bf16[128,128]{1,0:T(8,128)(2,1)}', space=vmem, size = 0x8000, scoped, tag = 'scratch operand']
  #allocation6 [shape = 's32[4]{0}', space=sflag, size = 0x10, scoped, tag = 'scratch operand']
  #allocation9 [shape = 's32[]', space=sflag, size = 0x4, offset = 0, fixed_abs, tag = 'sflag constant byte address 0x0 - dummy sync flag']
  #allocation10 [shape = 's32[]', space=sflag, size = 0x4, offset = 0, fixed_abs, tag = 'sflag constant byte address 0x0 - dummy sync flag']
  #allocation11 [shape = 'u32[]', space=smem, size = 0x4, offset = 0x44, fixed_abs, tag = 'smem constant byte address 0x44 - assertion arg 0']
  #allocation12 [shape = 'u32[]', space=smem, size = 0x4, offset = 0x48, fixed_abs, tag = 'smem constant byte address 0x48 - assertion arg 1']
  #allocation13 [shape = 's32[]', space=sflag, size = 0x4, offset = 0, fixed_abs, tag = 'sflag constant byte address 0x0 - dummy sync flag']
  #allocation14 [shape = 's32[]', space=sflag, size = 0x4, offset = 0, fixed_abs, tag = 'sflag constant byte address 0x0 - dummy sync flag']
  #allocation15 [shape = 's32[]', space=sflag, size = 0x4, offset = 0, fixed_abs, tag = 'sflag constant byte address 0x0 - dummy sync flag']
  #allocation16 [shape = 's32[]', space=sflag, size = 0x4, offset = 0, fixed_abs, tag = 'sflag constant byte address 0x0 - dummy sync flag']
  #allocation17 [shape = 's32[]', space=sflag, size = 0x4, offset = 0, fixed_abs, tag = 'sflag constant byte address 0x0 - dummy sync flag']
  %s0 = inlined_call_operand.vmem [shape: f32[64,8], index: 0, kind: input, shape index: {}]
  %s1 = inlined_call_operand.vmem [shape: bf16[8,384], index: 1, kind: input, shape index: {}]
  %s2 = inlined_call_operand.vmem [shape: f32[1,384], index: 2, kind: input, shape index: {}]
  %s3 = inlined_call_operand.vmem [shape: f32[1,384], index: 3, kind: input, shape index: {}]
  %s4 = inlined_call_operand.vmem [shape: f32[1,128], index: 4, kind: input, shape index: {}]
  %s5 = inlined_call_operand.vmem [shape: f32[1,128], index: 5, kind: input, shape index: {}]
  %s6 = inlined_call_operand.vmem [shape: f32[1,128], index: 6, kind: input, shape index: {}]
  %s7 = inlined_call_operand.hbm [shape: bf16[128,384], index: 7, kind: input, shape index: {}]
  %s8 = inlined_call_operand.hbm [shape: bf16[128,384], index: 8, kind: input, shape index: {}]
  %s9 = inlined_call_operand.hbm [shape: bf16[128,384], index: 9, kind: input, shape index: {}]
  %s10 = inlined_call_operand.vmem [shape: bf16[128,128], index: 10, kind: input, shape index: {}]
  %s11 = inlined_call_operand.hbm [shape: f32[8,128], index: 11, kind: output, shape index: {}]
  %s12 = sld [smem:[#allocation0]]
  $region84: #{tpu_custom_call.1} parent=0
    _
  %s14 = ssub.s32 1, %s12
  %s15 = scalar_select 0, %s14, %s12
  $region1: #{tpu_custom_call.1} parent=0
    #allocation7 [shape = 'u8[4096]{0}', space=vmem, size = 0x1000, scoped, tag = 'output window, operand 0, single buffered']
    #allocation8 [shape = 's32[1]{0}', space=sflag, size = 0x4, scoped, tag = 'scoped memory for tpu_custom_call.1']
    %16 = vsyncpa [#allocation8], 0
    // Predicated region
    $region2: #{tpu_custom_call.1} parent=1 // pred_check
      _
    $region3: #{tpu_custom_call.1} parent=1 // pred_check_branch
      %18 = sbr.rel (0) target = $region5
    $region4: #{tpu_custom_call.1} parent=1 // pred_region
      _
    $region5: #{tpu_custom_call.1} parent=1 // pred_fallthru
      _
    // Predicated region
    $region6: #{tpu_custom_call.1} parent=1 // pred_check
      _
    $region7: #{tpu_custom_call.1} parent=1 // pred_check_branch
      %20 = sbr.rel (0) target = $region9
    $region8: #{tpu_custom_call.1} parent=1 // pred_region
      _
    $region9: #{tpu_custom_call.1} parent=1 // pred_fallthru
      _
    // Predicated region
    $region10: #{tpu_custom_call.1} parent=1 // pred_check
      _
    $region11: #{tpu_custom_call.1} parent=1 // pred_check_branch
      %22 = sbr.rel (0) target = $region13
    $region12: #{tpu_custom_call.1} parent=1 // pred_region
      _
    $region13: #{tpu_custom_call.1} parent=1 // pred_fallthru
      _
    // Predicated region
    $region14: #{tpu_custom_call.1} parent=1 // pred_check
      _
    $region15: #{tpu_custom_call.1} parent=1 // pred_check_branch
      %24 = sbr.rel (0) target = $region17
    $region16: #{tpu_custom_call.1} parent=1 // pred_region
      _
    $region17: #{tpu_custom_call.1} parent=1 // pred_fallthru
      _
    // Predicated region
    $region18: #{tpu_custom_call.1} parent=1 // pred_check
      _
    $region19: #{tpu_custom_call.1} parent=1 // pred_check_branch
      %26 = sbr.rel (0) target = $region21
    $region20: #{tpu_custom_call.1} parent=1 // pred_region
      _
    $region21: #{tpu_custom_call.1} parent=1 // pred_fallthru
      _
    // Predicated region
    $region22: #{tpu_custom_call.1} parent=1 // pred_check
      _
    $region23: #{tpu_custom_call.1} parent=1 // pred_check_branch
      %28 = sbr.rel (0) target = $region25
    $region24: #{tpu_custom_call.1} parent=1 // pred_region
      _
    $region25: #{tpu_custom_call.1} parent=1 // pred_fallthru
      _
    // Predicated region
    $region26: #{tpu_custom_call.1} parent=1 // pred_check
      _
    $region27: #{tpu_custom_call.1} parent=1 // pred_check_branch
      %30 = sbr.rel (0) target = $region29
    $region28: #{tpu_custom_call.1} parent=1 // pred_region
      _
    $region29: #{tpu_custom_call.1} parent=1 // pred_fallthru
      _
    // Predicated region
    $region30: #{tpu_custom_call.1} parent=1 // pred_check
      _
    $region31: #{tpu_custom_call.1} parent=1 // pred_check_branch
      %32 = sbr.rel target = $region33
    $region32: #{tpu_custom_call.1} parent=1 // pred_region
      %33 = sst [smem:[#allocation11]] [#allocation10]
      %34 = sst [smem:[#allocation12]] [#allocation9]
    $region33: #{tpu_custom_call.1} parent=1 // pred_fallthru
      _
    %36 = shalt.err (0)
    %s38 = sshll.u32 [#allocation2], 4
    %s39 = int_to_ptr.vmem [resolvable:$true] %s38
    %41 = dma.hbm_to_vmem [thread:$0]  %s7, 3072, %s39, [#allocation6]
    %s42 = scalar_lea.sflag [#allocation6], 1
    // Predicated region
    $region34: #{tpu_custom_call.1} parent=1 // pred_check
      _
    $region35: #{tpu_custom_call.1} parent=1 // pred_check_branch
      %44 = sbr.rel target = $region37
    $region36: #{tpu_custom_call.1} parent=1 // pred_region
      %45 = sst [smem:[#allocation11]] [#allocation14]
      %46 = sst [smem:[#allocation12]] [#allocation13]
    $region37: #{tpu_custom_call.1} parent=1 // pred_fallthru
      _
    %48 = shalt.err (0)
    %s50 = sshll.u32 [#allocation3], 4
    %s51 = int_to_ptr.vmem [resolvable:$true] %s50
    %53 = dma.hbm_to_vmem [thread:$0]  %s8, 3072, %s51, %s42
    %s54 = scalar_lea.sflag [#allocation6], 2
    // Predicated region
    $region38: #{tpu_custom_call.1} parent=1 // pred_check
      _
    $region39: #{tpu_custom_call.1} parent=1 // pred_check_branch
      %56 = sbr.rel target = $region41
    $region40: #{tpu_custom_call.1} parent=1 // pred_region
      %57 = sst [smem:[#allocation11]] [#allocation16]
      %58 = sst [smem:[#allocation12]] [#allocation15]
    $region41: #{tpu_custom_call.1} parent=1 // pred_fallthru
      _
    %60 = shalt.err (0)
    %s62 = sshll.u32 [#allocation4], 4
    %s63 = int_to_ptr.vmem [resolvable:$true] %s62
    %65 = dma.hbm_to_vmem [thread:$0]  %s9, 3072, %s63, %s54
    %s66 = scalar_lea.sflag [#allocation6], 3
    %p68 = scmp.lt.u32.totalorder 64, 8
    %p69 = pneg %p68
    // Predicated region
    $region42: #{tpu_custom_call.1} parent=1 // pred_check
      _
    $region43: #{tpu_custom_call.1} parent=1 // pred_check_branch
      %71 = sbr.rel (%p68) target = $region45
    $region44: #{tpu_custom_call.1} parent=1 // pred_region
      %s87 = sand.u32 64, 7
      %p88 = scmp.eq.s32.totalorder %s87, 0
      // Predicated region
      $region57: #{tpu_custom_call.1} parent=44 // pred_check
        %p89 = pneg %p88
      $region58: #{tpu_custom_call.1} parent=44 // pred_check_branch
        %91 = sbr.rel (%p89) target = $region60
      $region59: #{tpu_custom_call.1} parent=44 // pred_region
        loop: start=0, step=1, limit=1
        $region61: #{tpu_custom_call.1} parent=59 // loop_pre_header
          _
        $region62: #{tpu_custom_call.1} parent=59 // loop_header
          %s93 = sphi 0, %s97
          %p94 = scmp.ge.s32.totalorder %s93, 1
          %s98 = sphi %s10, %s10
          %s99 = sphi [#allocation5], [#allocation5]
        $region63: #{tpu_custom_call.1} parent=59 // loop_header_branch
          %96 = sbr.rel (%p94) target = $region67
        $region64: #{tpu_custom_call.1} parent=59 // loop_body
          %v100 = vld [vmem:[%s98] sm:$0xff]
          %101 = vst [vmem:[%s99] sm:$0xff] %v100
          %v102 = vld [vmem:[%s98 + $0x8] sm:$0xff]
          %103 = vst [vmem:[%s99 + $0x8] sm:$0xff] %v102
          %v104 = vld [vmem:[%s98 + $0x10] sm:$0xff]
          %105 = vst [vmem:[%s99 + $0x10] sm:$0xff] %v104
          %v106 = vld [vmem:[%s98 + $0x18] sm:$0xff]
          %107 = vst [vmem:[%s99 + $0x18] sm:$0xff] %v106
          %v108 = vld [vmem:[%s98 + $0x20] sm:$0xff]
          %109 = vst [vmem:[%s99 + $0x20] sm:$0xff] %v108
          %v110 = vld [vmem:[%s98 + $0x28] sm:$0xff]
          %111 = vst [vmem:[%s99 + $0x28] sm:$0xff] %v110
          %v112 = vld [vmem:[%s98 + $0x30] sm:$0xff]
          %113 = vst [vmem:[%s99 + $0x30] sm:$0xff] %v112
          %v114 = vld [vmem:[%s98 + $0x38] sm:$0xff]
          %115 = vst [vmem:[%s99 + $0x38] sm:$0xff] %v114
        $region65: #{tpu_custom_call.1} parent=59 // loop_footer
          %s97 = sadd.s32 1, %s93
        $region66: #{tpu_custom_call.1} parent=59 // loop_footer_branch
          %92 = sbr.rel target = $region62
        $region67: #{tpu_custom_call.1} parent=59 // loop_exit
          _
      $region60: #{tpu_custom_call.1} parent=44 // pred_fallthru
        _
      %p116 = pneg %p88
      // Predicated region
      $region68: #{tpu_custom_call.1} parent=44 // pred_check
        _
      $region69: #{tpu_custom_call.1} parent=44 // pred_check_branch
        %118 = sbr.rel (%p88) target = $region71
      $region70: #{tpu_custom_call.1} parent=44 // pred_region
        %s119 = sand.u32 64, 7
      $region71: #{tpu_custom_call.1} parent=44 // pred_fallthru
        _
    $region45: #{tpu_custom_call.1} parent=1 // pred_fallthru
      _
    // Predicated region
    $region46: #{tpu_custom_call.1} parent=1 // pred_check
      %p72 = pneg %p68
    $region47: #{tpu_custom_call.1} parent=1 // pred_check_branch
      %74 = sbr.rel (%p72) target = $region49
    $region48: #{tpu_custom_call.1} parent=1 // pred_region
      %s75 = sshll.u32 1, 64
      %s76 = ssub.s32 %s75, 1
      loop: start=0, step=1, limit=1
      $region50: #{tpu_custom_call.1} parent=48 // loop_pre_header
        _
      $region51: #{tpu_custom_call.1} parent=48 // loop_header
        %s78 = sphi 0, %s82
        %p79 = scmp.ge.s32.totalorder %s78, 1
        %s83 = sphi %s10, %s10
        %s84 = sphi [#allocation5], [#allocation5]
      $region52: #{tpu_custom_call.1} parent=48 // loop_header_branch
        %81 = sbr.rel (%p79) target = $region56
      $region53: #{tpu_custom_call.1} parent=48 // loop_body
        %v85 = vld [vmem:[%s83] sm:%s76]
        %86 = vst [vmem:[%s84] sm:%s76] %v85
      $region54: #{tpu_custom_call.1} parent=48 // loop_footer
        %s82 = sadd.s32 1, %s78
      $region55: #{tpu_custom_call.1} parent=48 // loop_footer_branch
        %77 = sbr.rel target = $region51
      $region56: #{tpu_custom_call.1} parent=48 // loop_exit
        _
    $region49: #{tpu_custom_call.1} parent=1 // pred_fallthru
      _
    // Predicated region
    $region72: #{tpu_custom_call.1} parent=1 // pred_check
      _
    $region73: #{tpu_custom_call.1} parent=1 // pred_check_branch
      %122 = sbr.rel (0) target = $region75
    $region74: #{tpu_custom_call.1} parent=1 // pred_region
      %123 = vsyncadd %s66, 1024
    $region75: #{tpu_custom_call.1} parent=1 // pred_fallthru
      _
    %v124 = vld [vmem:[%s1] sm:$0xff]
    %v125 = vld [vmem:[%s1 + $0x8] sm:$0xf]
    %v126 = vunpack.c.l.bf16 %v124
    %v127 = vunpack.c.h.bf16 %v124
    %v128 = vunpack.c.l.bf16 %v125
    %v129 = vld [vmem:[%s0] sm:$0xff]
    %v130 = vld [vmem:[%s0 + $0x8] sm:$0xff]
    %v131 = vld [vmem:[%s0 + $0x10] sm:$0xff]
    %v132 = vld [vmem:[%s0 + $0x18] sm:$0xff]
    %v133 = vld [vmem:[%s0 + $0x20] sm:$0xff]
    %v134 = vld [vmem:[%s0 + $0x28] sm:$0xff]
    %v135 = vld [vmem:[%s0 + $0x30] sm:$0xff]
    %v136 = vld [vmem:[%s0 + $0x38] sm:$0xff]
    %v137 = vld [vmem:[%s2] sm:$0x7]
    %v139 = vlaneseq
    %v140 = vshrl.u32 %v139, 7
    %v141 = vsub.s32 0, %v140
    %v142 = vrot.slane %v137, %v141
    %v143 = vlaneseq
    %v144 = vshrl.u32 %v143, 7
    %v145 = vsub.s32 1, %v144
    %v146 = vrot.slane %v137, %v145
    %v147 = vlaneseq
    %v148 = vshrl.u32 %v147, 7
    %v149 = vsub.s32 2, %v148
    %v150 = vrot.slane %v137, %v149
    %vm154 = vcmask 64512
    %v156 = vsel %vm154, %v129, 0
    %v159 = vsel %vm154, %v130, 0
    %v162 = vsel %vm154, %v131, 0
    %v165 = vsel %vm154, %v132, 0
    %v168 = vsel %vm154, %v133, 0
    %v171 = vsel %vm154, %v134, 0
    %v174 = vsel %vm154, %v135, 0
    %v177 = vsel %vm154, %v136, 0
    %179 = vmatprep.subr.mxu0 0.0
    %180 = vmatpush1.msra.mxu0 0.0
    %181 = vmatprep.subr.mxu0 0.0
    %182 = vmatpush1.msra.mxu0 0.0
    %183 = vmatprep.subr.mxu0 0.0
    %184 = vmatpush1.msra.mxu0 0.0
    %185 = vmatprep.subr.mxu0 0.0
    %186 = vmatpush1.msra.mxu0 0.0
    %187 = vmatprep.subr.mxu0 0.0
    %188 = vmatpush1.msra.mxu0 0.0
    %189 = vmatprep.subr.mxu0 0.0
    %190 = vmatpush1.msra.mxu0 0.0
    %191 = vmatprep.subr.mxu0 0.0
    %192 = vmatpush1.msra.mxu0 0.0
    %193 = vmatprep.subr.mxu0 0.0
    %194 = vmatpush1.msra.mxu0 0.0
    %195 = vmatprep.subr.mxu0 0.0
    %196 = vmatpush1.msra.mxu0 0.0
    %197 = vmatprep.subr.mxu0 0.0
    %198 = vmatpush1.msra.mxu0 0.0
    %199 = vmatprep.subr.mxu0 0.0
    %200 = vmatpush1.msra.mxu0 0.0
    %201 = vmatprep.subr.mxu0 0.0
    %202 = vmatpush1.msra.mxu0 0.0
    %203 = vmatprep.subr.mxu0 0.0
    %204 = vmatpush1.msra.mxu0 0.0
    %205 = vmatprep.subr.mxu0 0.0
    %206 = vmatpush1.msra.mxu0 0.0
    %207 = vmatprep.subr.mxu0 0.0
    %208 = vmatpush1.msra.mxu0 0.0
    %209 = vmatprep.subr.mxu0 %v127
    %210 = vmatpush1.msra.mxu0 %v126
    %211 = vmatprep.subr.mxu0 0.0
    %212 = vmatpush2.msra.mxu0 0.0
    %213 = vmatprep.subr.mxu0 0.0
    %214 = vmatpush2.msra.mxu0 0.0
    %215 = vmatprep.subr.mxu0 0.0
    %216 = vmatpush2.msra.mxu0 0.0
    %217 = vmatprep.subr.mxu0 0.0
    %218 = vmatpush2.msra.mxu0 0.0
    %219 = vmatprep.subr.mxu0 0.0
    %220 = vmatpush2.msra.mxu0 0.0
    %221 = vmatprep.subr.mxu0 0.0
    %222 = vmatpush2.msra.mxu0 0.0
    %223 = vmatprep.subr.mxu0 0.0
    %224 = vmatpush2.msra.mxu0 0.0
    %225 = vmatprep.subr.mxu0 0.0
    %226 = vmatpush2.msra.mxu0 0.0
    %227 = vmatprep.subr.mxu0 0.0
    %228 = vmatpush2.msra.mxu0 0.0
    %229 = vmatprep.subr.mxu0 0.0
    %230 = vmatpush2.msra.mxu0 0.0
    %231 = vmatprep.subr.mxu0 0.0
    %232 = vmatpush2.msra.mxu0 0.0
    %233 = vmatprep.subr.mxu0 0.0
    %234 = vmatpush2.msra.mxu0 0.0
    %235 = vmatprep.subr.mxu0 0.0
    %236 = vmatpush2.msra.mxu0 0.0
    %237 = vmatprep.subr.mxu0 0.0
    %238 = vmatpush2.msra.mxu0 0.0
    %239 = vmatprep.subr.mxu0 0.0
    %240 = vmatpush2.msra.mxu0 0.0
    %241 = vmatprep.subr.mxu0 0.0
    %242 = vmatpush2.msra.mxu0 0.0
    %243 = vmatprep.mubr.f32.mxu0 0.0
    %244 = vmatmul.mubr.f32.gmra.mxu0 %v156
    %v245 = vpop.f32.mrf.mxu0
    %v246 = vadd.f32 %v142, %v245
    %v247 = vpop.f32.mrf.mxu0
    %v248 = vadd.f32 %v146, %v247
    %249 = vmatprep.mubr.f32.mxu0 0.0
    %250 = vmatmul.mubr.f32.gmra.mxu0 %v159
    %v251 = vpop.f32.mrf.mxu0
    %v252 = vadd.f32 %v142, %v251
    %v253 = vpop.f32.mrf.mxu0
    %v254 = vadd.f32 %v146, %v253
    %255 = vmatprep.mubr.f32.mxu0 0.0
    %256 = vmatmul.mubr.f32.gmra.mxu0 %v162
    %v257 = vpop.f32.mrf.mxu0
    %v258 = vadd.f32 %v142, %v257
    %v259 = vpop.f32.mrf.mxu0
    %v260 = vadd.f32 %v146, %v259
    %261 = vmatprep.mubr.f32.mxu0 0.0
    %262 = vmatmul.mubr.f32.gmra.mxu0 %v165
    %v263 = vpop.f32.mrf.mxu0
    %v264 = vadd.f32 %v142, %v263
    %v265 = vpop.f32.mrf.mxu0
    %v266 = vadd.f32 %v146, %v265
    %267 = vmatprep.mubr.f32.mxu0 0.0
    %268 = vmatmul.mubr.f32.gmra.mxu0 %v168
    %v269 = vpop.f32.mrf.mxu0
    %v270 = vadd.f32 %v142, %v269
    %v271 = vpop.f32.mrf.mxu0
    %v272 = vadd.f32 %v146, %v271
    %273 = vmatprep.mubr.f32.mxu0 0.0
    %274 = vmatmul.mubr.f32.gmra.mxu0 %v171
    %v275 = vpop.f32.mrf.mxu0
    %v276 = vadd.f32 %v142, %v275
    %v277 = vpop.f32.mrf.mxu0
    %v278 = vadd.f32 %v146, %v277
    %279 = vmatprep.mubr.f32.mxu0 0.0
    %280 = vmatmul.mubr.f32.gmra.mxu0 %v174
    %v281 = vpop.f32.mrf.mxu0
    %v282 = vadd.f32 %v142, %v281
    %v283 = vpop.f32.mrf.mxu0
    %v284 = vadd.f32 %v146, %v283
    %285 = vmatprep.mubr.f32.mxu0 0.0
    %286 = vmatmul.mubr.f32.gmra.mxu0 %v177
    %v287 = vpop.f32.mrf.mxu0
    %v288 = vadd.f32 %v142, %v287
    %v289 = vpop.f32.mrf.mxu0
    %v290 = vadd.f32 %v146, %v289
    %291 = vdwg.mxu0
    %292 = vmatprep.subr.mxu0 0.0
    %293 = vmatpush1.msra.mxu0 0.0
    %294 = vmatprep.subr.mxu0 0.0
    %295 = vmatpush1.msra.mxu0 0.0
    %296 = vmatprep.subr.mxu0 0.0
    %297 = vmatpush1.msra.mxu0 0.0
    %298 = vmatprep.subr.mxu0 0.0
    %299 = vmatpush1.msra.mxu0 0.0
    %300 = vmatprep.subr.mxu0 0.0
    %301 = vmatpush1.msra.mxu0 0.0
    %302 = vmatprep.subr.mxu0 0.0
    %303 = vmatpush1.msra.mxu0 0.0
    %304 = vmatprep.subr.mxu0 0.0
    %305 = vmatpush1.msra.mxu0 0.0
    %306 = vmatprep.subr.mxu0 0.0
    %307 = vmatpush1.msra.mxu0 0.0
    %308 = vmatprep.subr.mxu0 0.0
    %309 = vmatpush1.msra.mxu0 0.0
    %310 = vmatprep.subr.mxu0 0.0
    %311 = vmatpush1.msra.mxu0 0.0
    %312 = vmatprep.subr.mxu0 0.0
    %313 = vmatpush1.msra.mxu0 0.0
    %314 = vmatprep.subr.mxu0 0.0
    %315 = vmatpush1.msra.mxu0 0.0
    %316 = vmatprep.subr.mxu0 0.0
    %317 = vmatpush1.msra.mxu0 0.0
    %318 = vmatprep.subr.mxu0 0.0
    %319 = vmatpush1.msra.mxu0 0.0
    %320 = vmatprep.subr.mxu0 0.0
    %321 = vmatpush1.msra.mxu0 0.0
    %322 = vmatprep.subr.mxu0 0.0
    %323 = vmatpush1.msra.mxu0 %v128
    %324 = vmatprep.subr.mxu0 0.0
    %325 = vmatpush2.msra.mxu0 0.0
    %326 = vmatprep.subr.mxu0 0.0
    %327 = vmatpush2.msra.mxu0 0.0
    %328 = vmatprep.subr.mxu0 0.0
    %329 = vmatpush2.msra.mxu0 0.0
    %330 = vmatprep.subr.mxu0 0.0
    %331 = vmatpush2.msra.mxu0 0.0
    %332 = vmatprep.subr.mxu0 0.0
    %333 = vmatpush2.msra.mxu0 0.0
    %334 = vmatprep.subr.mxu0 0.0
    %335 = vmatpush2.msra.mxu0 0.0
    %336 = vmatprep.subr.mxu0 0.0
    %337 = vmatpush2.msra.mxu0 0.0
    %338 = vmatprep.subr.mxu0 0.0
    %339 = vmatpush2.msra.mxu0 0.0
    %340 = vmatprep.subr.mxu0 0.0
    %341 = vmatpush2.msra.mxu0 0.0
    %342 = vmatprep.subr.mxu0 0.0
    %343 = vmatpush2.msra.mxu0 0.0
    %344 = vmatprep.subr.mxu0 0.0
    %345 = vmatpush2.msra.mxu0 0.0
    %346 = vmatprep.subr.mxu0 0.0
    %347 = vmatpush2.msra.mxu0 0.0
    %348 = vmatprep.subr.mxu0 0.0
    %349 = vmatpush2.msra.mxu0 0.0
    %350 = vmatprep.subr.mxu0 0.0
    %351 = vmatpush2.msra.mxu0 0.0
    %352 = vmatprep.subr.mxu0 0.0
    %353 = vmatpush2.msra.mxu0 0.0
    %354 = vmatprep.subr.mxu0 0.0
    %355 = vmatpush2.msra.mxu0 0.0
    %356 = vmatprep.mubr.f32.mxu0 0.0
    %357 = vmatmul.mubr.f32.gmra.mxu0 %v156
    %v358 = vpop.f32.mrf.mxu0
    %v359 = vadd.f32 %v150, %v358
    %v360 = vpop.f32.mrf.mxu0
    %361 = vmatprep.mubr.f32.mxu0 0.0
    %362 = vmatmul.mubr.f32.gmra.mxu0 %v159
    %v363 = vpop.f32.mrf.mxu0
    %v364 = vadd.f32 %v150, %v363
    %v365 = vpop.f32.mrf.mxu0
    %366 = vmatprep.mubr.f32.mxu0 0.0
    %367 = vmatmul.mubr.f32.gmra.mxu0 %v162
    %v368 = vpop.f32.mrf.mxu0
    %v369 = vadd.f32 %v150, %v368
    %v370 = vpop.f32.mrf.mxu0
    %371 = vmatprep.mubr.f32.mxu0 0.0
    %372 = vmatmul.mubr.f32.gmra.mxu0 %v165
    %v373 = vpop.f32.mrf.mxu0
    %v374 = vadd.f32 %v150, %v373
    %v375 = vpop.f32.mrf.mxu0
    %376 = vmatprep.mubr.f32.mxu0 0.0
    %377 = vmatmul.mubr.f32.gmra.mxu0 %v168
    %v378 = vpop.f32.mrf.mxu0
    %v379 = vadd.f32 %v150, %v378
    %v380 = vpop.f32.mrf.mxu0
    %381 = vmatprep.mubr.f32.mxu0 0.0
    %382 = vmatmul.mubr.f32.gmra.mxu0 %v171
    %v383 = vpop.f32.mrf.mxu0
    %v384 = vadd.f32 %v150, %v383
    %v385 = vpop.f32.mrf.mxu0
    %386 = vmatprep.mubr.f32.mxu0 0.0
    %387 = vmatmul.mubr.f32.gmra.mxu0 %v174
    %v388 = vpop.f32.mrf.mxu0
    %v389 = vadd.f32 %v150, %v388
    %v390 = vpop.f32.mrf.mxu0
    %391 = vmatprep.mubr.f32.mxu0 0.0
    %392 = vmatmul.mubr.f32.gmra.mxu0 %v177
    %v393 = vpop.f32.mrf.mxu0
    %v394 = vadd.f32 %v150, %v393
    %v395 = vpop.f32.mrf.mxu0
    %396 = vdwg.mxu0
    %v397 = vld [vmem:[%s3] sm:$0x7]
    %v399 = vlaneseq
    %v400 = vshrl.u32 %v399, 7
    %v401 = vsub.s32 0, %v400
    %v402 = vrot.slane %v397, %v401
    %v403 = vlaneseq
    %v404 = vshrl.u32 %v403, 7
    %v405 = vsub.s32 1, %v404
    %v406 = vrot.slane %v397, %v405
    %v407 = vlaneseq
    %v408 = vshrl.u32 %v407, 7
    %v409 = vsub.s32 2, %v408
    %v410 = vrot.slane %v397, %v409
    %v414 = vld [vmem:[%s4] sm:$0x1]
    %v416 = vlaneseq
    %v417 = vshrl.u32 %v416, 7
    %v418 = vsub.s32 0, %v417
    %v419 = vrot.slane %v414, %v418
    %v421 = vld [vmem:[%s5] sm:$0x1]
    %v423 = vlaneseq
    %v424 = vshrl.u32 %v423, 7
    %v425 = vsub.s32 0, %v424
    %v426 = vrot.slane %v421, %v425
    %s428 = smul.u32 4, 16
    %s429 = smul.u32 %s428, 3
    %s430 = sshll.u32 %s429, 4
    %431 = dma.done [#allocation6], %s430
    %s432 = sshll.u32 %s429, 4
    %433 = dma.done %s42, %s432
    %s434 = sshll.u32 %s429, 4
    %435 = dma.done %s54, %s434
    %v436 = vld [vmem:[#allocation2] sm:$0xff]
    %v437 = vld [vmem:[#allocation2 + $0x8] sm:$0xf]
    %v438 = vld [vmem:[#allocation2 + $0xc] sm:$0xff]
    %v439 = vld [vmem:[#allocation2 + $0x14] sm:$0xf]
    %v440 = vld [vmem:[#allocation2 + $0x18] sm:$0xff]
    %v441 = vld [vmem:[#allocation2 + $0x20] sm:$0xf]
    %v442 = vld [vmem:[#allocation2 + $0x24] sm:$0xff]
    %v443 = vld [vmem:[#allocation2 + $0x2c] sm:$0xf]
    %v444 = vld [vmem:[#allocation2 + $0x30] sm:$0xff]
    %v445 = vld [vmem:[#allocation2 + $0x38] sm:$0xf]
    %v446 = vld [vmem:[#allocation2 + $0x3c] sm:$0xff]
    %v447 = vld [vmem:[#allocation2 + $0x44] sm:$0xf]
    %v448 = vld [vmem:[#allocation2 + $0x48] sm:$0xff]
    %v449 = vld [vmem:[#allocation2 + $0x50] sm:$0xf]
    %v450 = vld [vmem:[#allocation2 + $0x54] sm:$0xff]
    %v451 = vld [vmem:[#allocation2 + $0x5c] sm:$0xf]
    %v452 = vld [vmem:[#allocation2 + $0x60] sm:$0xff]
    %v453 = vld [vmem:[#allocation2 + $0x68] sm:$0xf]
    %v454 = vld [vmem:[#allocation2 + $0x6c] sm:$0xff]
    %v455 = vld [vmem:[#allocation2 + $0x74] sm:$0xf]
    %v456 = vld [vmem:[#allocation2 + $0x78] sm:$0xff]
    %v457 = vld [vmem:[#allocation2 + $0x80] sm:$0xf]
    %v458 = vld [vmem:[#allocation2 + $0x84] sm:$0xff]
    %v459 = vld [vmem:[#allocation2 + $0x8c] sm:$0xf]
    %v460 = vld [vmem:[#allocation2 + $0x90] sm:$0xff]
    %v461 = vld [vmem:[#allocation2 + $0x98] sm:$0xf]
    %v462 = vld [vmem:[#allocation2 + $0x9c] sm:$0xff]
    %v463 = vld [vmem:[#allocation2 + $0xa4] sm:$0xf]
    %v464 = vld [vmem:[#allocation2 + $0xa8] sm:$0xff]
    %v465 = vld [vmem:[#allocation2 + $0xb0] sm:$0xf]
    %v466 = vld [vmem:[#allocation2 + $0xb4] sm:$0xff]
    %v467 = vld [vmem:[#allocation2 + $0xbc] sm:$0xf]
    %v468 = vunpack.c.l.bf16 %v436
    %v469 = vunpack.c.h.bf16 %v436
    %v470 = vunpack.c.l.bf16 %v437
    %v471 = vunpack.c.l.bf16 %v438
    %v472 = vunpack.c.h.bf16 %v438
    %v473 = vunpack.c.l.bf16 %v439
    %v474 = vunpack.c.l.bf16 %v440
    %v475 = vunpack.c.h.bf16 %v440
    %v476 = vunpack.c.l.bf16 %v441
    %v477 = vunpack.c.l.bf16 %v442
    %v478 = vunpack.c.h.bf16 %v442
    %v479 = vunpack.c.l.bf16 %v443
    %v480 = vunpack.c.l.bf16 %v444
    %v481 = vunpack.c.h.bf16 %v444
    %v482 = vunpack.c.l.bf16 %v445
    %v483 = vunpack.c.l.bf16 %v446
    %v484 = vunpack.c.h.bf16 %v446
    %v485 = vunpack.c.l.bf16 %v447
    %v486 = vunpack.c.l.bf16 %v448
    %v487 = vunpack.c.h.bf16 %v448
    %v488 = vunpack.c.l.bf16 %v449
    %v489 = vunpack.c.l.bf16 %v450
    %v490 = vunpack.c.h.bf16 %v450
    %v491 = vunpack.c.l.bf16 %v451
    %v492 = vunpack.c.l.bf16 %v452
    %v493 = vunpack.c.h.bf16 %v452
    %v494 = vunpack.c.l.bf16 %v453
    %v495 = vunpack.c.l.bf16 %v454
    %v496 = vunpack.c.h.bf16 %v454
    %v497 = vunpack.c.l.bf16 %v455
    %v498 = vunpack.c.l.bf16 %v456
    %v499 = vunpack.c.h.bf16 %v456
    %v500 = vunpack.c.l.bf16 %v457
    %v501 = vunpack.c.l.bf16 %v458
    %v502 = vunpack.c.h.bf16 %v458
    %v503 = vunpack.c.l.bf16 %v459
    %v504 = vunpack.c.l.bf16 %v460
    %v505 = vunpack.c.h.bf16 %v460
    %v506 = vunpack.c.l.bf16 %v461
    %v507 = vunpack.c.l.bf16 %v462
    %v508 = vunpack.c.h.bf16 %v462
    %v509 = vunpack.c.l.bf16 %v463
    %v510 = vunpack.c.l.bf16 %v464
    %v511 = vunpack.c.h.bf16 %v464
    %v512 = vunpack.c.l.bf16 %v465
    %v513 = vunpack.c.l.bf16 %v466
    %v514 = vunpack.c.h.bf16 %v466
    %v515 = vunpack.c.l.bf16 %v467
    %v516 = vld [vmem:[#allocation3] sm:$0xff]
    %v517 = vld [vmem:[#allocation3 + $0x8] sm:$0xf]
    %v518 = vld [vmem:[#allocation3 + $0xc] sm:$0xff]
    %v519 = vld [vmem:[#allocation3 + $0x14] sm:$0xf]
    %v520 = vld [vmem:[#allocation3 + $0x18] sm:$0xff]
    %v521 = vld [vmem:[#allocation3 + $0x20] sm:$0xf]
    %v522 = vld [vmem:[#allocation3 + $0x24] sm:$0xff]
    %v523 = vld [vmem:[#allocation3 + $0x2c] sm:$0xf]
    %v524 = vld [vmem:[#allocation3 + $0x30] sm:$0xff]
    %v525 = vld [vmem:[#allocation3 + $0x38] sm:$0xf]
    %v526 = vld [vmem:[#allocation3 + $0x3c] sm:$0xff]
    %v527 = vld [vmem:[#allocation3 + $0x44] sm:$0xf]
    %v528 = vld [vmem:[#allocation3 + $0x48] sm:$0xff]
    %v529 = vld [vmem:[#allocation3 + $0x50] sm:$0xf]
    %v530 = vld [vmem:[#allocation3 + $0x54] sm:$0xff]
    %v531 = vld [vmem:[#allocation3 + $0x5c] sm:$0xf]
    %v532 = vld [vmem:[#allocation3 + $0x60] sm:$0xff]
    %v533 = vld [vmem:[#allocation3 + $0x68] sm:$0xf]
    %v534 = vld [vmem:[#allocation3 + $0x6c] sm:$0xff]
    %v535 = vld [vmem:[#allocation3 + $0x74] sm:$0xf]
    %v536 = vld [vmem:[#allocation3 + $0x78] sm:$0xff]
    %v537 = vld [vmem:[#allocation3 + $0x80] sm:$0xf]
    %v538 = vld [vmem:[#allocation3 + $0x84] sm:$0xff]
    %v539 = vld [vmem:[#allocation3 + $0x8c] sm:$0xf]
    %v540 = vld [vmem:[#allocation3 + $0x90] sm:$0xff]
    %v541 = vld [vmem:[#allocation3 + $0x98] sm:$0xf]
    %v542 = vld [vmem:[#allocation3 + $0x9c] sm:$0xff]
    %v543 = vld [vmem:[#allocation3 + $0xa4] sm:$0xf]
    %v544 = vld [vmem:[#allocation3 + $0xa8] sm:$0xff]
    %v545 = vld [vmem:[#allocation3 + $0xb0] sm:$0xf]
    %v546 = vld [vmem:[#allocation3 + $0xb4] sm:$0xff]
    %v547 = vld [vmem:[#allocation3 + $0xbc] sm:$0xf]
    %v548 = vunpack.c.l.bf16 %v516
    %v549 = vunpack.c.h.bf16 %v516
    %v550 = vunpack.c.l.bf16 %v517
    %v551 = vunpack.c.l.bf16 %v518
    %v552 = vunpack.c.h.bf16 %v518
    %v553 = vunpack.c.l.bf16 %v519
    %v554 = vunpack.c.l.bf16 %v520
    %v555 = vunpack.c.h.bf16 %v520
    %v556 = vunpack.c.l.bf16 %v521
    %v557 = vunpack.c.l.bf16 %v522
    %v558 = vunpack.c.h.bf16 %v522
    %v559 = vunpack.c.l.bf16 %v523
    %v560 = vunpack.c.l.bf16 %v524
    %v561 = vunpack.c.h.bf16 %v524
    %v562 = vunpack.c.l.bf16 %v525
    %v563 = vunpack.c.l.bf16 %v526
    %v564 = vunpack.c.h.bf16 %v526
    %v565 = vunpack.c.l.bf16 %v527
    %v566 = vunpack.c.l.bf16 %v528
    %v567 = vunpack.c.h.bf16 %v528
    %v568 = vunpack.c.l.bf16 %v529
    %v569 = vunpack.c.l.bf16 %v530
    %v570 = vunpack.c.h.bf16 %v530
    %v571 = vunpack.c.l.bf16 %v531
    %v572 = vunpack.c.l.bf16 %v532
    %v573 = vunpack.c.h.bf16 %v532
    %v574 = vunpack.c.l.bf16 %v533
    %v575 = vunpack.c.l.bf16 %v534
    %v576 = vunpack.c.h.bf16 %v534
    %v577 = vunpack.c.l.bf16 %v535
    %v578 = vunpack.c.l.bf16 %v536
    %v579 = vunpack.c.h.bf16 %v536
    %v580 = vunpack.c.l.bf16 %v537
    %v581 = vunpack.c.l.bf16 %v538
    %v582 = vunpack.c.h.bf16 %v538
    %v583 = vunpack.c.l.bf16 %v539
    %v584 = vunpack.c.l.bf16 %v540
    %v585 = vunpack.c.h.bf16 %v540
    %v586 = vunpack.c.l.bf16 %v541
    %v587 = vunpack.c.l.bf16 %v542
    %v588 = vunpack.c.h.bf16 %v542
    %v589 = vunpack.c.l.bf16 %v543
    %v590 = vunpack.c.l.bf16 %v544
    %v591 = vunpack.c.h.bf16 %v544
    %v592 = vunpack.c.l.bf16 %v545
    %v593 = vunpack.c.l.bf16 %v546
    %v594 = vunpack.c.h.bf16 %v546
    %v595 = vunpack.c.l.bf16 %v547
    %v596 = vld [vmem:[#allocation4] sm:$0xff]
    %v597 = vld [vmem:[#allocation4 + $0x8] sm:$0xf]
    %v598 = vld [vmem:[#allocation4 + $0xc] sm:$0xff]
    %v599 = vld [vmem:[#allocation4 + $0x14] sm:$0xf]
    %v600 = vld [vmem:[#allocation4 + $0x18] sm:$0xff]
    %v601 = vld [vmem:[#allocation4 + $0x20] sm:$0xf]
    %v602 = vld [vmem:[#allocation4 + $0x24] sm:$0xff]
    %v603 = vld [vmem:[#allocation4 + $0x2c] sm:$0xf]
    %v604 = vld [vmem:[#allocation4 + $0x30] sm:$0xff]
    %v605 = vld [vmem:[#allocation4 + $0x38] sm:$0xf]
    %v606 = vld [vmem:[#allocation4 + $0x3c] sm:$0xff]
    %v607 = vld [vmem:[#allocation4 + $0x44] sm:$0xf]
    %v608 = vld [vmem:[#allocation4 + $0x48] sm:$0xff]
    %v609 = vld [vmem:[#allocation4 + $0x50] sm:$0xf]
    %v610 = vld [vmem:[#allocation4 + $0x54] sm:$0xff]
    %v611 = vld [vmem:[#allocation4 + $0x5c] sm:$0xf]
    %v612 = vld [vmem:[#allocation4 + $0x60] sm:$0xff]
    %v613 = vld [vmem:[#allocation4 + $0x68] sm:$0xf]
    %v614 = vld [vmem:[#allocation4 + $0x6c] sm:$0xff]
    %v615 = vld [vmem:[#allocation4 + $0x74] sm:$0xf]
    %v616 = vld [vmem:[#allocation4 + $0x78] sm:$0xff]
    %v617 = vld [vmem:[#allocation4 + $0x80] sm:$0xf]
    %v618 = vld [vmem:[#allocation4 + $0x84] sm:$0xff]
    %v619 = vld [vmem:[#allocation4 + $0x8c] sm:$0xf]
    %v620 = vld [vmem:[#allocation4 + $0x90] sm:$0xff]
    %v621 = vld [vmem:[#allocation4 + $0x98] sm:$0xf]
    %v622 = vld [vmem:[#allocation4 + $0x9c] sm:$0xff]
    %v623 = vld [vmem:[#allocation4 + $0xa4] sm:$0xf]
    %v624 = vld [vmem:[#allocation4 + $0xa8] sm:$0xff]
    %v625 = vld [vmem:[#allocation4 + $0xb0] sm:$0xf]
    %v626 = vld [vmem:[#allocation4 + $0xb4] sm:$0xff]
    %v627 = vld [vmem:[#allocation4 + $0xbc] sm:$0xf]
    %v628 = vunpack.c.l.bf16 %v596
    %v629 = vunpack.c.h.bf16 %v596
    %v630 = vunpack.c.l.bf16 %v597
    %v631 = vunpack.c.l.bf16 %v598
    %v632 = vunpack.c.h.bf16 %v598
    %v633 = vunpack.c.l.bf16 %v599
    %v634 = vunpack.c.l.bf16 %v600
    %v635 = vunpack.c.h.bf16 %v600
    %v636 = vunpack.c.l.bf16 %v601
    %v637 = vunpack.c.l.bf16 %v602
    %v638 = vunpack.c.h.bf16 %v602
    %v639 = vunpack.c.l.bf16 %v603
    %v640 = vunpack.c.l.bf16 %v604
    %v641 = vunpack.c.h.bf16 %v604
    %v642 = vunpack.c.l.bf16 %v605
    %v643 = vunpack.c.l.bf16 %v606
    %v644 = vunpack.c.h.bf16 %v606
    %v645 = vunpack.c.l.bf16 %v607
    %v646 = vunpack.c.l.bf16 %v608
    %v647 = vunpack.c.h.bf16 %v608
    %v648 = vunpack.c.l.bf16 %v609
    %v649 = vunpack.c.l.bf16 %v610
    %v650 = vunpack.c.h.bf16 %v610
    %v651 = vunpack.c.l.bf16 %v611
    %v652 = vunpack.c.l.bf16 %v612
    %v653 = vunpack.c.h.bf16 %v612
    %v654 = vunpack.c.l.bf16 %v613
    %v655 = vunpack.c.l.bf16 %v614
    %v656 = vunpack.c.h.bf16 %v614
    %v657 = vunpack.c.l.bf16 %v615
    %v658 = vunpack.c.l.bf16 %v616
    %v659 = vunpack.c.h.bf16 %v616
    %v660 = vunpack.c.l.bf16 %v617
    %v661 = vunpack.c.l.bf16 %v618
    %v662 = vunpack.c.h.bf16 %v618
    %v663 = vunpack.c.l.bf16 %v619
    %v664 = vunpack.c.l.bf16 %v620
    %v665 = vunpack.c.h.bf16 %v620
    %v666 = vunpack.c.l.bf16 %v621
    %v667 = vunpack.c.l.bf16 %v622
    %v668 = vunpack.c.h.bf16 %v622
    %v669 = vunpack.c.l.bf16 %v623
    %v670 = vunpack.c.l.bf16 %v624
    %v671 = vunpack.c.h.bf16 %v624
    %v672 = vunpack.c.l.bf16 %v625
    %v673 = vunpack.c.l.bf16 %v626
    %v674 = vunpack.c.h.bf16 %v626
    %v675 = vunpack.c.l.bf16 %v627
    %676 = vmatprep.subr.mxu0 %v514
    %677 = vmatpush1.msra.mxu0 %v513
    %678 = vmatprep.subr.mxu0 %v511
    %679 = vmatpush1.msra.mxu0 %v510
    %680 = vmatprep.subr.mxu0 %v508
    %681 = vmatpush1.msra.mxu0 %v507
    %682 = vmatprep.subr.mxu0 %v505
    %683 = vmatpush1.msra.mxu0 %v504
    %684 = vmatprep.subr.mxu0 %v502
    %685 = vmatpush1.msra.mxu0 %v501
    %686 = vmatprep.subr.mxu0 %v499
    %687 = vmatpush1.msra.mxu0 %v498
    %688 = vmatprep.subr.mxu0 %v496
    %689 = vmatpush1.msra.mxu0 %v495
    %690 = vmatprep.subr.mxu0 %v493
    %691 = vmatpush1.msra.mxu0 %v492
    %692 = vmatprep.subr.mxu0 %v490
    %693 = vmatpush1.msra.mxu0 %v489
    %694 = vmatprep.subr.mxu0 %v487
    %695 = vmatpush1.msra.mxu0 %v486
    %696 = vmatprep.subr.mxu0 %v484
    %697 = vmatpush1.msra.mxu0 %v483
    %698 = vmatprep.subr.mxu0 %v481
    %699 = vmatpush1.msra.mxu0 %v480
    %700 = vmatprep.subr.mxu0 %v478
    %701 = vmatpush1.msra.mxu0 %v477
    %702 = vmatprep.subr.mxu0 %v475
    %703 = vmatpush1.msra.mxu0 %v474
    %704 = vmatprep.subr.mxu0 %v472
    %705 = vmatpush1.msra.mxu0 %v471
    %706 = vmatprep.subr.mxu0 %v469
    %707 = vmatpush1.msra.mxu0 %v468
    %708 = vmatprep.subr.mxu0 0.0
    %709 = vmatpush2.msra.mxu0 0.0
    %710 = vmatprep.subr.mxu0 0.0
    %711 = vmatpush2.msra.mxu0 0.0
    %712 = vmatprep.subr.mxu0 0.0
    %713 = vmatpush2.msra.mxu0 0.0
    %714 = vmatprep.subr.mxu0 0.0
    %715 = vmatpush2.msra.mxu0 0.0
    %716 = vmatprep.subr.mxu0 0.0
    %717 = vmatpush2.msra.mxu0 0.0
    %718 = vmatprep.subr.mxu0 0.0
    %719 = vmatpush2.msra.mxu0 0.0
    %720 = vmatprep.subr.mxu0 0.0
    %721 = vmatpush2.msra.mxu0 0.0
    %722 = vmatprep.subr.mxu0 0.0
    %723 = vmatpush2.msra.mxu0 0.0
    %724 = vmatprep.subr.mxu0 0.0
    %725 = vmatpush2.msra.mxu0 0.0
    %726 = vmatprep.subr.mxu0 0.0
    %727 = vmatpush2.msra.mxu0 0.0
    %728 = vmatprep.subr.mxu0 0.0
    %729 = vmatpush2.msra.mxu0 0.0
    %730 = vmatprep.subr.mxu0 0.0
    %731 = vmatpush2.msra.mxu0 0.0
    %732 = vmatprep.subr.mxu0 0.0
    %733 = vmatpush2.msra.mxu0 0.0
    %734 = vmatprep.subr.mxu0 0.0
    %735 = vmatpush2.msra.mxu0 0.0
    %736 = vmatprep.subr.mxu0 0.0
    %737 = vmatpush2.msra.mxu0 0.0
    %738 = vmatprep.subr.mxu0 0.0
    %739 = vmatpush2.msra.mxu0 0.0
    %740 = vmatprep.mubr.f32.mxu0 0.0
    %741 = vmatmul.mubr.f32.gmra.mxu0 0.0
    %v742 = vpop.f32.mrf.mxu0
    %v743 = vadd.f32 0.0, %v742
    %v744 = vpop.f32.mrf.mxu0
    %v745 = vadd.f32 0.0, %v744
    %746 = vdwg.mxu0
    %747 = vmatprep.subr.mxu0 0.0
    %748 = vmatpush1.msra.mxu0 %v515
    %749 = vmatprep.subr.mxu0 0.0
    %750 = vmatpush1.msra.mxu0 %v512
    %751 = vmatprep.subr.mxu0 0.0
    %752 = vmatpush1.msra.mxu0 %v509
    %753 = vmatprep.subr.mxu0 0.0
    %754 = vmatpush1.msra.mxu0 %v506
    %755 = vmatprep.subr.mxu0 0.0
    %756 = vmatpush1.msra.mxu0 %v503
    %757 = vmatprep.subr.mxu0 0.0
    %758 = vmatpush1.msra.mxu0 %v500
    %759 = vmatprep.subr.mxu0 0.0
    %760 = vmatpush1.msra.mxu0 %v497
    %761 = vmatprep.subr.mxu0 0.0
    %762 = vmatpush1.msra.mxu0 %v494
    %763 = vmatprep.subr.mxu0 0.0
    %764 = vmatpush1.msra.mxu0 %v491
    %765 = vmatprep.subr.mxu0 0.0
    %766 = vmatpush1.msra.mxu0 %v488
    %767 = vmatprep.subr.mxu0 0.0
    %768 = vmatpush1.msra.mxu0 %v485
    %769 = vmatprep.subr.mxu0 0.0
    %770 = vmatpush1.msra.mxu0 %v482
    %771 = vmatprep.subr.mxu0 0.0
    %772 = vmatpush1.msra.mxu0 %v479
    %773 = vmatprep.subr.mxu0 0.0
    %774 = vmatpush1.msra.mxu0 %v476
    %775 = vmatprep.subr.mxu0 0.0
    %776 = vmatpush1.msra.mxu0 %v473
    %777 = vmatprep.subr.mxu0 0.0
    %778 = vmatpush1.msra.mxu0 %v470
    %779 = vmatprep.subr.mxu0 0.0
    %780 = vmatpush2.msra.mxu0 0.0
    %781 = vmatprep.subr.mxu0 0.0
    %782 = vmatpush2.msra.mxu0 0.0
    %783 = vmatprep.subr.mxu0 0.0
    %784 = vmatpush2.msra.mxu0 0.0
    %785 = vmatprep.subr.mxu0 0.0
    %786 = vmatpush2.msra.mxu0 0.0
    %787 = vmatprep.subr.mxu0 0.0
    %788 = vmatpush2.msra.mxu0 0.0
    %789 = vmatprep.subr.mxu0 0.0
    %790 = vmatpush2.msra.mxu0 0.0
    %791 = vmatprep.subr.mxu0 0.0
    %792 = vmatpush2.msra.mxu0 0.0
    %793 = vmatprep.subr.mxu0 0.0
    %794 = vmatpush2.msra.mxu0 0.0
    %795 = vmatprep.subr.mxu0 0.0
    %796 = vmatpush2.msra.mxu0 0.0
    %797 = vmatprep.subr.mxu0 0.0
    %798 = vmatpush2.msra.mxu0 0.0
    %799 = vmatprep.subr.mxu0 0.0
    %800 = vmatpush2.msra.mxu0 0.0
    %801 = vmatprep.subr.mxu0 0.0
    %802 = vmatpush2.msra.mxu0 0.0
    %803 = vmatprep.subr.mxu0 0.0
    %804 = vmatpush2.msra.mxu0 0.0
    %805 = vmatprep.subr.mxu0 0.0
    %806 = vmatpush2.msra.mxu0 0.0
    %807 = vmatprep.subr.mxu0 0.0
    %808 = vmatpush2.msra.mxu0 0.0
    %809 = vmatprep.subr.mxu0 0.0
    %810 = vmatpush2.msra.mxu0 0.0
    %811 = vmatprep.mubr.f32.mxu0 0.0
    %812 = vmatmul.mubr.f32.gmra.mxu0 0.0
    %v813 = vpop.f32.mrf.mxu0
    %v814 = vadd.f32 0.0, %v813
    %v815 = vpop.f32.mrf.mxu0
    %816 = vdwg.mxu0
    %v817 = vadd.f32 %v246, %v743
    %v818 = vxor.u32 %v817, 2147483648
    %v819 = vmul.f32 %v818, 1.442695
    %v820 = vpow.pop %v819
    %v821 = vadd.f32 %v820, 1.0
    %v822 = vrcp.pop %v821
    %v823 = vmul.f32 1.0, %v822
    %v824 = vadd.f32 %v248, %v745
    %v825 = vxor.u32 %v824, 2147483648
    %v826 = vmul.f32 %v825, 1.442695
    %v827 = vpow.pop %v826
    %v828 = vadd.f32 %v827, 1.0
    %v829 = vrcp.pop %v828
    %v830 = vmul.f32 1.0, %v829
    %v831 = vadd.f32 %v814, %v419
    %v832 = vmul.f32 %v823, %v831
    %v833 = vadd.f32 %v359, %v832
    %v834 = vtanh.pop %v833
    %v835 = vsub.f32 1.0, %v830
    %v836 = vmul.f32 %v835, %v834
    %v837 = vmul.f32 %v830, 0.0
    %v838 = vadd.f32 %v836, %v837
    %839 = vmatprep.subr.mxu0 %v674
    %840 = vmatpush1.msra.mxu0 %v673
    %841 = vmatprep.subr.mxu0 %v671
    %842 = vmatpush1.msra.mxu0 %v670
    %843 = vmatprep.subr.mxu0 %v668
    %844 = vmatpush1.msra.mxu0 %v667
    %845 = vmatprep.subr.mxu0 %v665
    %846 = vmatpush1.msra.mxu0 %v664
    %847 = vmatprep.subr.mxu0 %v662
    %848 = vmatpush1.msra.mxu0 %v661
    %849 = vmatprep.subr.mxu0 %v659
    %850 = vmatpush1.msra.mxu0 %v658
    %851 = vmatprep.subr.mxu0 %v656
    %852 = vmatpush1.msra.mxu0 %v655
    %853 = vmatprep.subr.mxu0 %v653
    %854 = vmatpush1.msra.mxu0 %v652
    %855 = vmatprep.subr.mxu0 %v650
    %856 = vmatpush1.msra.mxu0 %v649
    %857 = vmatprep.subr.mxu0 %v647
    %858 = vmatpush1.msra.mxu0 %v646
    %859 = vmatprep.subr.mxu0 %v644
    %860 = vmatpush1.msra.mxu0 %v643
    %861 = vmatprep.subr.mxu0 %v641
    %862 = vmatpush1.msra.mxu0 %v640
    %863 = vmatprep.subr.mxu0 %v638
    %864 = vmatpush1.msra.mxu0 %v637
    %865 = vmatprep.subr.mxu0 %v635
    %866 = vmatpush1.msra.mxu0 %v634
    %867 = vmatprep.subr.mxu0 %v632
    %868 = vmatpush1.msra.mxu0 %v631
    %869 = vmatprep.subr.mxu0 %v629
    %870 = vmatpush1.msra.mxu0 %v628
    %871 = vmatprep.subr.mxu0 0.0
    %872 = vmatpush2.msra.mxu0 0.0
    %873 = vmatprep.subr.mxu0 0.0
    %874 = vmatpush2.msra.mxu0 0.0
    %875 = vmatprep.subr.mxu0 0.0
    %876 = vmatpush2.msra.mxu0 0.0
    %877 = vmatprep.subr.mxu0 0.0
    %878 = vmatpush2.msra.mxu0 0.0
    %879 = vmatprep.subr.mxu0 0.0
    %880 = vmatpush2.msra.mxu0 0.0
    %881 = vmatprep.subr.mxu0 0.0
    %882 = vmatpush2.msra.mxu0 0.0
    %883 = vmatprep.subr.mxu0 0.0
    %884 = vmatpush2.msra.mxu0 0.0
    %885 = vmatprep.subr.mxu0 0.0
    %886 = vmatpush2.msra.mxu0 0.0
    %887 = vmatprep.subr.mxu0 0.0
    %888 = vmatpush2.msra.mxu0 0.0
    %889 = vmatprep.subr.mxu0 0.0
    %890 = vmatpush2.msra.mxu0 0.0
    %891 = vmatprep.subr.mxu0 0.0
    %892 = vmatpush2.msra.mxu0 0.0
    %893 = vmatprep.subr.mxu0 0.0
    %894 = vmatpush2.msra.mxu0 0.0
    %895 = vmatprep.subr.mxu0 0.0
    %896 = vmatpush2.msra.mxu0 0.0
    %897 = vmatprep.subr.mxu0 0.0
    %898 = vmatpush2.msra.mxu0 0.0
    %899 = vmatprep.subr.mxu0 0.0
    %900 = vmatpush2.msra.mxu0 0.0
    %901 = vmatprep.subr.mxu0 0.0
    %902 = vmatpush2.msra.mxu0 0.0
    %903 = vmatprep.mubr.f32.mxu0 0.0
    %904 = vmatmul.mubr.f32.gmra.mxu0 %v838
    %v905 = vpop.f32.mrf.mxu0
    %v906 = vadd.f32 %v402, %v905
    %v907 = vpop.f32.mrf.mxu0
    %v908 = vadd.f32 %v406, %v907
    %909 = vdwg.mxu0
    %910 = vmatprep.subr.mxu0 0.0
    %911 = vmatpush1.msra.mxu0 %v675
    %912 = vmatprep.subr.mxu0 0.0
    %913 = vmatpush1.msra.mxu0 %v672
    %914 = vmatprep.subr.mxu0 0.0
    %915 = vmatpush1.msra.mxu0 %v669
    %916 = vmatprep.subr.mxu0 0.0
    %917 = vmatpush1.msra.mxu0 %v666
    %918 = vmatprep.subr.mxu0 0.0
    %919 = vmatpush1.msra.mxu0 %v663
    %920 = vmatprep.subr.mxu0 0.0
    %921 = vmatpush1.msra.mxu0 %v660
    %922 = vmatprep.subr.mxu0 0.0
    %923 = vmatpush1.msra.mxu0 %v657
    %924 = vmatprep.subr.mxu0 0.0
    %925 = vmatpush1.msra.mxu0 %v654
    %926 = vmatprep.subr.mxu0 0.0
    %927 = vmatpush1.msra.mxu0 %v651
    %928 = vmatprep.subr.mxu0 0.0
    %929 = vmatpush1.msra.mxu0 %v648
    %930 = vmatprep.subr.mxu0 0.0
    %931 = vmatpush1.msra.mxu0 %v645
    %932 = vmatprep.subr.mxu0 0.0
    %933 = vmatpush1.msra.mxu0 %v642
    %934 = vmatprep.subr.mxu0 0.0
    %935 = vmatpush1.msra.mxu0 %v639
    %936 = vmatprep.subr.mxu0 0.0
    %937 = vmatpush1.msra.mxu0 %v636
    %938 = vmatprep.subr.mxu0 0.0
    %939 = vmatpush1.msra.mxu0 %v633
    %940 = vmatprep.subr.mxu0 0.0
    %941 = vmatpush1.msra.mxu0 %v630
    %942 = vmatprep.subr.mxu0 0.0
    %943 = vmatpush2.msra.mxu0 0.0
    %944 = vmatprep.subr.mxu0 0.0
    %945 = vmatpush2.msra.mxu0 0.0
    %946 = vmatprep.subr.mxu0 0.0
    %947 = vmatpush2.msra.mxu0 0.0
    %948 = vmatprep.subr.mxu0 0.0
    %949 = vmatpush2.msra.mxu0 0.0
    %950 = vmatprep.subr.mxu0 0.0
    %951 = vmatpush2.msra.mxu0 0.0
    %952 = vmatprep.subr.mxu0 0.0
    %953 = vmatpush2.msra.mxu0 0.0
    %954 = vmatprep.subr.mxu0 0.0
    %955 = vmatpush2.msra.mxu0 0.0
    %956 = vmatprep.subr.mxu0 0.0
    %957 = vmatpush2.msra.mxu0 0.0
    %958 = vmatprep.subr.mxu0 0.0
    %959 = vmatpush2.msra.mxu0 0.0
    %960 = vmatprep.subr.mxu0 0.0
    %961 = vmatpush2.msra.mxu0 0.0
    %962 = vmatprep.subr.mxu0 0.0
    %963 = vmatpush2.msra.mxu0 0.0
    %964 = vmatprep.subr.mxu0 0.0
    %965 = vmatpush2.msra.mxu0 0.0
    %966 = vmatprep.subr.mxu0 0.0
    %967 = vmatpush2.msra.mxu0 0.0
    %968 = vmatprep.subr.mxu0 0.0
    %969 = vmatpush2.msra.mxu0 0.0
    %970 = vmatprep.subr.mxu0 0.0
    %971 = vmatpush2.msra.mxu0 0.0
    %972 = vmatprep.subr.mxu0 0.0
    %973 = vmatpush2.msra.mxu0 0.0
    %974 = vmatprep.mubr.f32.mxu0 0.0
    %975 = vmatmul.mubr.f32.gmra.mxu0 %v838
    %v976 = vpop.f32.mrf.mxu0
    %v977 = vadd.f32 %v410, %v976
    %v978 = vpop.f32.mrf.mxu0
    %979 = vdwg.mxu0
    %980 = vmatprep.subr.mxu0 %v594
    %981 = vmatpush1.msra.mxu0 %v593
    %982 = vmatprep.subr.mxu0 %v591
    %983 = vmatpush1.msra.mxu0 %v590
    %984 = vmatprep.subr.mxu0 %v588
    %985 = vmatpush1.msra.mxu0 %v587
    %986 = vmatprep.subr.mxu0 %v585
    %987 = vmatpush1.msra.mxu0 %v584
    %988 = vmatprep.subr.mxu0 %v582
    %989 = vmatpush1.msra.mxu0 %v581
    %990 = vmatprep.subr.mxu0 %v579
    %991 = vmatpush1.msra.mxu0 %v578
    %992 = vmatprep.subr.mxu0 %v576
    %993 = vmatpush1.msra.mxu0 %v575
    %994 = vmatprep.subr.mxu0 %v573
    %995 = vmatpush1.msra.mxu0 %v572
    %996 = vmatprep.subr.mxu0 %v570
    %997 = vmatpush1.msra.mxu0 %v569
    %998 = vmatprep.subr.mxu0 %v567
    %999 = vmatpush1.msra.mxu0 %v566
    %1000 = vmatprep.subr.mxu0 %v564
    %1001 = vmatpush1.msra.mxu0 %v563
    %1002 = vmatprep.subr.mxu0 %v561
    %1003 = vmatpush1.msra.mxu0 %v560
    %1004 = vmatprep.subr.mxu0 %v558
    %1005 = vmatpush1.msra.mxu0 %v557
    %1006 = vmatprep.subr.mxu0 %v555
    %1007 = vmatpush1.msra.mxu0 %v554
    %1008 = vmatprep.subr.mxu0 %v552
    %1009 = vmatpush1.msra.mxu0 %v551
    %1010 = vmatprep.subr.mxu0 %v549
    %1011 = vmatpush1.msra.mxu0 %v548
    %1012 = vmatprep.subr.mxu0 0.0
    %1013 = vmatpush2.msra.mxu0 0.0
    %1014 = vmatprep.subr.mxu0 0.0
    %1015 = vmatpush2.msra.mxu0 0.0
    %1016 = vmatprep.subr.mxu0 0.0
    %1017 = vmatpush2.msra.mxu0 0.0
    %1018 = vmatprep.subr.mxu0 0.0
    %1019 = vmatpush2.msra.mxu0 0.0
    %1020 = vmatprep.subr.mxu0 0.0
    %1021 = vmatpush2.msra.mxu0 0.0
    %1022 = vmatprep.subr.mxu0 0.0
    %1023 = vmatpush2.msra.mxu0 0.0
    %1024 = vmatprep.subr.mxu0 0.0
    %1025 = vmatpush2.msra.mxu0 0.0
    %1026 = vmatprep.subr.mxu0 0.0
    %1027 = vmatpush2.msra.mxu0 0.0
    %1028 = vmatprep.subr.mxu0 0.0
    %1029 = vmatpush2.msra.mxu0 0.0
    %1030 = vmatprep.subr.mxu0 0.0
    %1031 = vmatpush2.msra.mxu0 0.0
    %1032 = vmatprep.subr.mxu0 0.0
    %1033 = vmatpush2.msra.mxu0 0.0
    %1034 = vmatprep.subr.mxu0 0.0
    %1035 = vmatpush2.msra.mxu0 0.0
    %1036 = vmatprep.subr.mxu0 0.0
    %1037 = vmatpush2.msra.mxu0 0.0
    %1038 = vmatprep.subr.mxu0 0.0
    %1039 = vmatpush2.msra.mxu0 0.0
    %1040 = vmatprep.subr.mxu0 0.0
    %1041 = vmatpush2.msra.mxu0 0.0
    %1042 = vmatprep.subr.mxu0 0.0
    %1043 = vmatpush2.msra.mxu0 0.0
    %1044 = vmatprep.mubr.f32.mxu0 0.0
    %1045 = vmatmul.mubr.f32.gmra.mxu0 0.0
    %v1046 = vpop.f32.mrf.mxu0
    %v1047 = vadd.f32 0.0, %v1046
    %v1048 = vpop.f32.mrf.mxu0
    %v1049 = vadd.f32 0.0, %v1048
    %1050 = vdwg.mxu0
    %1051 = vmatprep.subr.mxu0 0.0
    %1052 = vmatpush1.msra.mxu0 %v595
    %1053 = vmatprep.subr.mxu0 0.0
    %1054 = vmatpush1.msra.mxu0 %v592
    %1055 = vmatprep.subr.mxu0 0.0
    %1056 = vmatpush1.msra.mxu0 %v589
    %1057 = vmatprep.subr.mxu0 0.0
    %1058 = vmatpush1.msra.mxu0 %v586
    %1059 = vmatprep.subr.mxu0 0.0
    %1060 = vmatpush1.msra.mxu0 %v583
    %1061 = vmatprep.subr.mxu0 0.0
    %1062 = vmatpush1.msra.mxu0 %v580
    %1063 = vmatprep.subr.mxu0 0.0
    %1064 = vmatpush1.msra.mxu0 %v577
    %1065 = vmatprep.subr.mxu0 0.0
    %1066 = vmatpush1.msra.mxu0 %v574
    %1067 = vmatprep.subr.mxu0 0.0
    %1068 = vmatpush1.msra.mxu0 %v571
    %1069 = vmatprep.subr.mxu0 0.0
    %1070 = vmatpush1.msra.mxu0 %v568
    %1071 = vmatprep.subr.mxu0 0.0
    %1072 = vmatpush1.msra.mxu0 %v565
    %1073 = vmatprep.subr.mxu0 0.0
    %1074 = vmatpush1.msra.mxu0 %v562
    %1075 = vmatprep.subr.mxu0 0.0
    %1076 = vmatpush1.msra.mxu0 %v559
    %1077 = vmatprep.subr.mxu0 0.0
    %1078 = vmatpush1.msra.mxu0 %v556
    %1079 = vmatprep.subr.mxu0 0.0
    %1080 = vmatpush1.msra.mxu0 %v553
    %1081 = vmatprep.subr.mxu0 0.0
    %1082 = vmatpush1.msra.mxu0 %v550
    %1083 = vmatprep.subr.mxu0 0.0
    %1084 = vmatpush2.msra.mxu0 0.0
    %1085 = vmatprep.subr.mxu0 0.0
    %1086 = vmatpush2.msra.mxu0 0.0
    %1087 = vmatprep.subr.mxu0 0.0
    %1088 = vmatpush2.msra.mxu0 0.0
    %1089 = vmatprep.subr.mxu0 0.0
    %1090 = vmatpush2.msra.mxu0 0.0
    %1091 = vmatprep.subr.mxu0 0.0
    %1092 = vmatpush2.msra.mxu0 0.0
    %1093 = vmatprep.subr.mxu0 0.0
    %1094 = vmatpush2.msra.mxu0 0.0
    %1095 = vmatprep.subr.mxu0 0.0
    %1096 = vmatpush2.msra.mxu0 0.0
    %1097 = vmatprep.subr.mxu0 0.0
    %1098 = vmatpush2.msra.mxu0 0.0
    %1099 = vmatprep.subr.mxu0 0.0
    %1100 = vmatpush2.msra.mxu0 0.0
    %1101 = vmatprep.subr.mxu0 0.0
    %1102 = vmatpush2.msra.mxu0 0.0
    %1103 = vmatprep.subr.mxu0 0.0
    %1104 = vmatpush2.msra.mxu0 0.0
    %1105 = vmatprep.subr.mxu0 0.0
    %1106 = vmatpush2.msra.mxu0 0.0
    %1107 = vmatprep.subr.mxu0 0.0
    %1108 = vmatpush2.msra.mxu0 0.0
    %1109 = vmatprep.subr.mxu0 0.0
    %1110 = vmatpush2.msra.mxu0 0.0
    %1111 = vmatprep.subr.mxu0 0.0
    %1112 = vmatpush2.msra.mxu0 0.0
    %1113 = vmatprep.subr.mxu0 0.0
    %1114 = vmatpush2.msra.mxu0 0.0
    %1115 = vmatprep.mubr.f32.mxu0 0.0
    %1116 = vmatmul.mubr.f32.gmra.mxu0 0.0
    %v1117 = vpop.f32.mrf.mxu0
    %v1118 = vadd.f32 0.0, %v1117
    %v1119 = vpop.f32.mrf.mxu0
    %1120 = vdwg.mxu0
    %v1121 = vadd.f32 %v906, %v1047
    %v1122 = vxor.u32 %v1121, 2147483648
    %v1123 = vmul.f32 %v1122, 1.442695
    %v1124 = vpow.pop %v1123
    %v1125 = vadd.f32 %v1124, 1.0
    %v1126 = vrcp.pop %v1125
    %v1127 = vmul.f32 1.0, %v1126
    %v1128 = vadd.f32 %v908, %v1049
    %v1129 = vxor.u32 %v1128, 2147483648
    %v1130 = vmul.f32 %v1129, 1.442695
    %v1131 = vpow.pop %v1130
    %v1132 = vadd.f32 %v1131, 1.0
    %v1133 = vrcp.pop %v1132
    %v1134 = vmul.f32 1.0, %v1133
    %v1135 = vadd.f32 %v1118, %v426
    %v1136 = vmul.f32 %v1127, %v1135
    %v1137 = vadd.f32 %v977, %v1136
    %v1138 = vtanh.pop %v1137
    %v1139 = vsub.f32 1.0, %v1134
    %v1140 = vmul.f32 %v1139, %v1138
    %v1141 = vmul.f32 %v1134, 0.0
    %v1142 = vadd.f32 %v1140, %v1141
    %1143 = vmatprep.subr.mxu0 %v514
    %1144 = vmatpush1.msra.mxu0 %v513
    %1145 = vmatprep.subr.mxu0 %v511
    %1146 = vmatpush1.msra.mxu0 %v510
    %1147 = vmatprep.subr.mxu0 %v508
    %1148 = vmatpush1.msra.mxu0 %v507
    %1149 = vmatprep.subr.mxu0 %v505
    %1150 = vmatpush1.msra.mxu0 %v504
    %1151 = vmatprep.subr.mxu0 %v502
    %1152 = vmatpush1.msra.mxu0 %v501
    %1153 = vmatprep.subr.mxu0 %v499
    %1154 = vmatpush1.msra.mxu0 %v498
    %1155 = vmatprep.subr.mxu0 %v496
    %1156 = vmatpush1.msra.mxu0 %v495
    %1157 = vmatprep.subr.mxu0 %v493
    %1158 = vmatpush1.msra.mxu0 %v492
    %1159 = vmatprep.subr.mxu0 %v490
    %1160 = vmatpush1.msra.mxu0 %v489
    %1161 = vmatprep.subr.mxu0 %v487
    %1162 = vmatpush1.msra.mxu0 %v486
    %1163 = vmatprep.subr.mxu0 %v484
    %1164 = vmatpush1.msra.mxu0 %v483
    %1165 = vmatprep.subr.mxu0 %v481
    %1166 = vmatpush1.msra.mxu0 %v480
    %1167 = vmatprep.subr.mxu0 %v478
    %1168 = vmatpush1.msra.mxu0 %v477
    %1169 = vmatprep.subr.mxu0 %v475
    %1170 = vmatpush1.msra.mxu0 %v474
    %1171 = vmatprep.subr.mxu0 %v472
    %1172 = vmatpush1.msra.mxu0 %v471
    %1173 = vmatprep.subr.mxu0 %v469
    %1174 = vmatpush1.msra.mxu0 %v468
    %1175 = vmatprep.subr.mxu0 0.0
    %1176 = vmatpush2.msra.mxu0 0.0
    %1177 = vmatprep.subr.mxu0 0.0
    %1178 = vmatpush2.msra.mxu0 0.0
    %1179 = vmatprep.subr.mxu0 0.0
    %1180 = vmatpush2.msra.mxu0 0.0
    %1181 = vmatprep.subr.mxu0 0.0
    %1182 = vmatpush2.msra.mxu0 0.0
    %1183 = vmatprep.subr.mxu0 0.0
    %1184 = vmatpush2.msra.mxu0 0.0
    %1185 = vmatprep.subr.mxu0 0.0
    %1186 = vmatpush2.msra.mxu0 0.0
    %1187 = vmatprep.subr.mxu0 0.0
    %1188 = vmatpush2.msra.mxu0 0.0
    %1189 = vmatprep.subr.mxu0 0.0
    %1190 = vmatpush2.msra.mxu0 0.0
    %1191 = vmatprep.subr.mxu0 0.0
    %1192 = vmatpush2.msra.mxu0 0.0
    %1193 = vmatprep.subr.mxu0 0.0
    %1194 = vmatpush2.msra.mxu0 0.0
    %1195 = vmatprep.subr.mxu0 0.0
    %1196 = vmatpush2.msra.mxu0 0.0
    %1197 = vmatprep.subr.mxu0 0.0
    %1198 = vmatpush2.msra.mxu0 0.0
    %1199 = vmatprep.subr.mxu0 0.0
    %1200 = vmatpush2.msra.mxu0 0.0
    %1201 = vmatprep.subr.mxu0 0.0
    %1202 = vmatpush2.msra.mxu0 0.0
    %1203 = vmatprep.subr.mxu0 0.0
    %1204 = vmatpush2.msra.mxu0 0.0
    %1205 = vmatprep.subr.mxu0 0.0
    %1206 = vmatpush2.msra.mxu0 0.0
    %1207 = vmatprep.mubr.f32.mxu0 0.0
    %1208 = vmatmul.mubr.f32.gmra.mxu0 %v838
    %v1209 = vpop.f32.mrf.mxu0
    %v1210 = vadd.f32 0.0, %v1209
    %v1211 = vpop.f32.mrf.mxu0
    %v1212 = vadd.f32 0.0, %v1211
    %1213 = vdwg.mxu0
    %1214 = vmatprep.subr.mxu0 0.0
    %1215 = vmatpush1.msra.mxu0 %v515
    %1216 = vmatprep.subr.mxu0 0.0
    %1217 = vmatpush1.msra.mxu0 %v512
    %1218 = vmatprep.subr.mxu0 0.0
    %1219 = vmatpush1.msra.mxu0 %v509
    %1220 = vmatprep.subr.mxu0 0.0
    %1221 = vmatpush1.msra.mxu0 %v506
    %1222 = vmatprep.subr.mxu0 0.0
    %1223 = vmatpush1.msra.mxu0 %v503
    %1224 = vmatprep.subr.mxu0 0.0
    %1225 = vmatpush1.msra.mxu0 %v500
    %1226 = vmatprep.subr.mxu0 0.0
    %1227 = vmatpush1.msra.mxu0 %v497
    %1228 = vmatprep.subr.mxu0 0.0
    %1229 = vmatpush1.msra.mxu0 %v494
    %1230 = vmatprep.subr.mxu0 0.0
    %1231 = vmatpush1.msra.mxu0 %v491
    %1232 = vmatprep.subr.mxu0 0.0
    %1233 = vmatpush1.msra.mxu0 %v488
    %1234 = vmatprep.subr.mxu0 0.0
    %1235 = vmatpush1.msra.mxu0 %v485
    %1236 = vmatprep.subr.mxu0 0.0
    %1237 = vmatpush1.msra.mxu0 %v482
    %1238 = vmatprep.subr.mxu0 0.0
    %1239 = vmatpush1.msra.mxu0 %v479
    %1240 = vmatprep.subr.mxu0 0.0
    %1241 = vmatpush1.msra.mxu0 %v476
    %1242 = vmatprep.subr.mxu0 0.0
    %1243 = vmatpush1.msra.mxu0 %v473
    %1244 = vmatprep.subr.mxu0 0.0
    %1245 = vmatpush1.msra.mxu0 %v470
    %1246 = vmatprep.subr.mxu0 0.0
    %1247 = vmatpush2.msra.mxu0 0.0
    %1248 = vmatprep.subr.mxu0 0.0
    %1249 = vmatpush2.msra.mxu0 0.0
    %1250 = vmatprep.subr.mxu0 0.0
    %1251 = vmatpush2.msra.mxu0 0.0
    %1252 = vmatprep.subr.mxu0 0.0
    %1253 = vmatpush2.msra.mxu0 0.0
    %1254 = vmatprep.subr.mxu0 0.0
    %1255 = vmatpush2.msra.mxu0 0.0
    %1256 = vmatprep.subr.mxu0 0.0
    %1257 = vmatpush2.msra.mxu0 0.0
    %1258 = vmatprep.subr.mxu0 0.0
    %1259 = vmatpush2.msra.mxu0 0.0
    %1260 = vmatprep.subr.mxu0 0.0
    %1261 = vmatpush2.msra.mxu0 0.0
    %1262 = vmatprep.subr.mxu0 0.0
    %1263 = vmatpush2.msra.mxu0 0.0
    %1264 = vmatprep.subr.mxu0 0.0
    %1265 = vmatpush2.msra.mxu0 0.0
    %1266 = vmatprep.subr.mxu0 0.0
    %1267 = vmatpush2.msra.mxu0 0.0
    %1268 = vmatprep.subr.mxu0 0.0
    %1269 = vmatpush2.msra.mxu0 0.0
    %1270 = vmatprep.subr.mxu0 0.0
    %1271 = vmatpush2.msra.mxu0 0.0
    %1272 = vmatprep.subr.mxu0 0.0
    %1273 = vmatpush2.msra.mxu0 0.0
    %1274 = vmatprep.subr.mxu0 0.0
    %1275 = vmatpush2.msra.mxu0 0.0
    %1276 = vmatprep.subr.mxu0 0.0
    %1277 = vmatpush2.msra.mxu0 0.0
    %1278 = vmatprep.mubr.f32.mxu0 0.0
    %1279 = vmatmul.mubr.f32.gmra.mxu0 %v838
    %v1280 = vpop.f32.mrf.mxu0
    %v1281 = vadd.f32 0.0, %v1280
    %v1282 = vpop.f32.mrf.mxu0
    %1283 = vdwg.mxu0
    %v1284 = vadd.f32 %v252, %v1210
    %v1285 = vxor.u32 %v1284, 2147483648
    %v1286 = vmul.f32 %v1285, 1.442695
    %v1287 = vpow.pop %v1286
    %v1288 = vadd.f32 %v1287, 1.0
    %v1289 = vrcp.pop %v1288
    %v1290 = vmul.f32 1.0, %v1289
    %v1291 = vadd.f32 %v254, %v1212
    %v1292 = vxor.u32 %v1291, 2147483648
    %v1293 = vmul.f32 %v1292, 1.442695
    %v1294 = vpow.pop %v1293
    %v1295 = vadd.f32 %v1294, 1.0
    %v1296 = vrcp.pop %v1295
    %v1297 = vmul.f32 1.0, %v1296
    %v1298 = vadd.f32 %v1281, %v419
    %v1299 = vmul.f32 %v1290, %v1298
    %v1300 = vadd.f32 %v364, %v1299
    %v1301 = vtanh.pop %v1300
    %v1302 = vsub.f32 1.0, %v1297
    %v1303 = vmul.f32 %v1302, %v1301
    %v1304 = vmul.f32 %v1297, %v838
    %v1305 = vadd.f32 %v1303, %v1304
    %1306 = vmatprep.subr.mxu0 %v674
    %1307 = vmatpush1.msra.mxu0 %v673
    %1308 = vmatprep.subr.mxu0 %v671
    %1309 = vmatpush1.msra.mxu0 %v670
    %1310 = vmatprep.subr.mxu0 %v668
    %1311 = vmatpush1.msra.mxu0 %v667
    %1312 = vmatprep.subr.mxu0 %v665
    %1313 = vmatpush1.msra.mxu0 %v664
    %1314 = vmatprep.subr.mxu0 %v662
    %1315 = vmatpush1.msra.mxu0 %v661
    %1316 = vmatprep.subr.mxu0 %v659
    %1317 = vmatpush1.msra.mxu0 %v658
    %1318 = vmatprep.subr.mxu0 %v656
    %1319 = vmatpush1.msra.mxu0 %v655
    %1320 = vmatprep.subr.mxu0 %v653
    %1321 = vmatpush1.msra.mxu0 %v652
    %1322 = vmatprep.subr.mxu0 %v650
    %1323 = vmatpush1.msra.mxu0 %v649
    %1324 = vmatprep.subr.mxu0 %v647
    %1325 = vmatpush1.msra.mxu0 %v646
    %1326 = vmatprep.subr.mxu0 %v644
    %1327 = vmatpush1.msra.mxu0 %v643
    %1328 = vmatprep.subr.mxu0 %v641
    %1329 = vmatpush1.msra.mxu0 %v640
    %1330 = vmatprep.subr.mxu0 %v638
    %1331 = vmatpush1.msra.mxu0 %v637
    %1332 = vmatprep.subr.mxu0 %v635
    %1333 = vmatpush1.msra.mxu0 %v634
    %1334 = vmatprep.subr.mxu0 %v632
    %1335 = vmatpush1.msra.mxu0 %v631
    %1336 = vmatprep.subr.mxu0 %v629
    %1337 = vmatpush1.msra.mxu0 %v628
    %1338 = vmatprep.subr.mxu0 0.0
    %1339 = vmatpush2.msra.mxu0 0.0
    %1340 = vmatprep.subr.mxu0 0.0
    %1341 = vmatpush2.msra.mxu0 0.0
    %1342 = vmatprep.subr.mxu0 0.0
    %1343 = vmatpush2.msra.mxu0 0.0
    %1344 = vmatprep.subr.mxu0 0.0
    %1345 = vmatpush2.msra.mxu0 0.0
    %1346 = vmatprep.subr.mxu0 0.0
    %1347 = vmatpush2.msra.mxu0 0.0
    %1348 = vmatprep.subr.mxu0 0.0
    %1349 = vmatpush2.msra.mxu0 0.0
    %1350 = vmatprep.subr.mxu0 0.0
    %1351 = vmatpush2.msra.mxu0 0.0
    %1352 = vmatprep.subr.mxu0 0.0
    %1353 = vmatpush2.msra.mxu0 0.0
    %1354 = vmatprep.subr.mxu0 0.0
    %1355 = vmatpush2.msra.mxu0 0.0
    %1356 = vmatprep.subr.mxu0 0.0
    %1357 = vmatpush2.msra.mxu0 0.0
    %1358 = vmatprep.subr.mxu0 0.0
    %1359 = vmatpush2.msra.mxu0 0.0
    %1360 = vmatprep.subr.mxu0 0.0
    %1361 = vmatpush2.msra.mxu0 0.0
    %1362 = vmatprep.subr.mxu0 0.0
    %1363 = vmatpush2.msra.mxu0 0.0
    %1364 = vmatprep.subr.mxu0 0.0
    %1365 = vmatpush2.msra.mxu0 0.0
    %1366 = vmatprep.subr.mxu0 0.0
    %1367 = vmatpush2.msra.mxu0 0.0
    %1368 = vmatprep.subr.mxu0 0.0
    %1369 = vmatpush2.msra.mxu0 0.0
    %1370 = vmatprep.mubr.f32.mxu0 0.0
    %1371 = vmatmul.mubr.f32.gmra.mxu0 %v1305
    %v1372 = vpop.f32.mrf.mxu0
    %v1373 = vadd.f32 %v402, %v1372
    %v1374 = vpop.f32.mrf.mxu0
    %v1375 = vadd.f32 %v406, %v1374
    %1376 = vdwg.mxu0
    %1377 = vmatprep.subr.mxu0 0.0
    %1378 = vmatpush1.msra.mxu0 %v675
    %1379 = vmatprep.subr.mxu0 0.0
    %1380 = vmatpush1.msra.mxu0 %v672
    %1381 = vmatprep.subr.mxu0 0.0
    %1382 = vmatpush1.msra.mxu0 %v669
    %1383 = vmatprep.subr.mxu0 0.0
    %1384 = vmatpush1.msra.mxu0 %v666
    %1385 = vmatprep.subr.mxu0 0.0
    %1386 = vmatpush1.msra.mxu0 %v663
    %1387 = vmatprep.subr.mxu0 0.0
    %1388 = vmatpush1.msra.mxu0 %v660
    %1389 = vmatprep.subr.mxu0 0.0
    %1390 = vmatpush1.msra.mxu0 %v657
    %1391 = vmatprep.subr.mxu0 0.0
    %1392 = vmatpush1.msra.mxu0 %v654
    %1393 = vmatprep.subr.mxu0 0.0
    %1394 = vmatpush1.msra.mxu0 %v651
    %1395 = vmatprep.subr.mxu0 0.0
    %1396 = vmatpush1.msra.mxu0 %v648
    %1397 = vmatprep.subr.mxu0 0.0
    %1398 = vmatpush1.msra.mxu0 %v645
    %1399 = vmatprep.subr.mxu0 0.0
    %1400 = vmatpush1.msra.mxu0 %v642
    %1401 = vmatprep.subr.mxu0 0.0
    %1402 = vmatpush1.msra.mxu0 %v639
    %1403 = vmatprep.subr.mxu0 0.0
    %1404 = vmatpush1.msra.mxu0 %v636
    %1405 = vmatprep.subr.mxu0 0.0
    %1406 = vmatpush1.msra.mxu0 %v633
    %1407 = vmatprep.subr.mxu0 0.0
    %1408 = vmatpush1.msra.mxu0 %v630
    %1409 = vmatprep.subr.mxu0 0.0
    %1410 = vmatpush2.msra.mxu0 0.0
    %1411 = vmatprep.subr.mxu0 0.0
    %1412 = vmatpush2.msra.mxu0 0.0
    %1413 = vmatprep.subr.mxu0 0.0
    %1414 = vmatpush2.msra.mxu0 0.0
    %1415 = vmatprep.subr.mxu0 0.0
    %1416 = vmatpush2.msra.mxu0 0.0
    %1417 = vmatprep.subr.mxu0 0.0
    %1418 = vmatpush2.msra.mxu0 0.0
    %1419 = vmatprep.subr.mxu0 0.0
    %1420 = vmatpush2.msra.mxu0 0.0
    %1421 = vmatprep.subr.mxu0 0.0
    %1422 = vmatpush2.msra.mxu0 0.0
    %1423 = vmatprep.subr.mxu0 0.0
    %1424 = vmatpush2.msra.mxu0 0.0
    %1425 = vmatprep.subr.mxu0 0.0
    %1426 = vmatpush2.msra.mxu0 0.0
    %1427 = vmatprep.subr.mxu0 0.0
    %1428 = vmatpush2.msra.mxu0 0.0
    %1429 = vmatprep.subr.mxu0 0.0
    %1430 = vmatpush2.msra.mxu0 0.0
    %1431 = vmatprep.subr.mxu0 0.0
    %1432 = vmatpush2.msra.mxu0 0.0
    %1433 = vmatprep.subr.mxu0 0.0
    %1434 = vmatpush2.msra.mxu0 0.0
    %1435 = vmatprep.subr.mxu0 0.0
    %1436 = vmatpush2.msra.mxu0 0.0
    %1437 = vmatprep.subr.mxu0 0.0
    %1438 = vmatpush2.msra.mxu0 0.0
    %1439 = vmatprep.subr.mxu0 0.0
    %1440 = vmatpush2.msra.mxu0 0.0
    %1441 = vmatprep.mubr.f32.mxu0 0.0
    %1442 = vmatmul.mubr.f32.gmra.mxu0 %v1305
    %v1443 = vpop.f32.mrf.mxu0
    %v1444 = vadd.f32 %v410, %v1443
    %v1445 = vpop.f32.mrf.mxu0
    %1446 = vdwg.mxu0
    %1447 = vmatprep.subr.mxu0 %v594
    %1448 = vmatpush1.msra.mxu0 %v593
    %1449 = vmatprep.subr.mxu0 %v591
    %1450 = vmatpush1.msra.mxu0 %v590
    %1451 = vmatprep.subr.mxu0 %v588
    %1452 = vmatpush1.msra.mxu0 %v587
    %1453 = vmatprep.subr.mxu0 %v585
    %1454 = vmatpush1.msra.mxu0 %v584
    %1455 = vmatprep.subr.mxu0 %v582
    %1456 = vmatpush1.msra.mxu0 %v581
    %1457 = vmatprep.subr.mxu0 %v579
    %1458 = vmatpush1.msra.mxu0 %v578
    %1459 = vmatprep.subr.mxu0 %v576
    %1460 = vmatpush1.msra.mxu0 %v575
    %1461 = vmatprep.subr.mxu0 %v573
    %1462 = vmatpush1.msra.mxu0 %v572
    %1463 = vmatprep.subr.mxu0 %v570
    %1464 = vmatpush1.msra.mxu0 %v569
    %1465 = vmatprep.subr.mxu0 %v567
    %1466 = vmatpush1.msra.mxu0 %v566
    %1467 = vmatprep.subr.mxu0 %v564
    %1468 = vmatpush1.msra.mxu0 %v563
    %1469 = vmatprep.subr.mxu0 %v561
    %1470 = vmatpush1.msra.mxu0 %v560
    %1471 = vmatprep.subr.mxu0 %v558
    %1472 = vmatpush1.msra.mxu0 %v557
    %1473 = vmatprep.subr.mxu0 %v555
    %1474 = vmatpush1.msra.mxu0 %v554
    %1475 = vmatprep.subr.mxu0 %v552
    %1476 = vmatpush1.msra.mxu0 %v551
    %1477 = vmatprep.subr.mxu0 %v549
    %1478 = vmatpush1.msra.mxu0 %v548
    %1479 = vmatprep.subr.mxu0 0.0
    %1480 = vmatpush2.msra.mxu0 0.0
    %1481 = vmatprep.subr.mxu0 0.0
    %1482 = vmatpush2.msra.mxu0 0.0
    %1483 = vmatprep.subr.mxu0 0.0
    %1484 = vmatpush2.msra.mxu0 0.0
    %1485 = vmatprep.subr.mxu0 0.0
    %1486 = vmatpush2.msra.mxu0 0.0
    %1487 = vmatprep.subr.mxu0 0.0
    %1488 = vmatpush2.msra.mxu0 0.0
    %1489 = vmatprep.subr.mxu0 0.0
    %1490 = vmatpush2.msra.mxu0 0.0
    %1491 = vmatprep.subr.mxu0 0.0
    %1492 = vmatpush2.msra.mxu0 0.0
    %1493 = vmatprep.subr.mxu0 0.0
    %1494 = vmatpush2.msra.mxu0 0.0
    %1495 = vmatprep.subr.mxu0 0.0
    %1496 = vmatpush2.msra.mxu0 0.0
    %1497 = vmatprep.subr.mxu0 0.0
    %1498 = vmatpush2.msra.mxu0 0.0
    %1499 = vmatprep.subr.mxu0 0.0
    %1500 = vmatpush2.msra.mxu0 0.0
    %1501 = vmatprep.subr.mxu0 0.0
    %1502 = vmatpush2.msra.mxu0 0.0
    %1503 = vmatprep.subr.mxu0 0.0
    %1504 = vmatpush2.msra.mxu0 0.0
    %1505 = vmatprep.subr.mxu0 0.0
    %1506 = vmatpush2.msra.mxu0 0.0
    %1507 = vmatprep.subr.mxu0 0.0
    %1508 = vmatpush2.msra.mxu0 0.0
    %1509 = vmatprep.subr.mxu0 0.0
    %1510 = vmatpush2.msra.mxu0 0.0
    %1511 = vmatprep.mubr.f32.mxu0 0.0
    %1512 = vmatmul.mubr.f32.gmra.mxu0 %v1142
    %v1513 = vpop.f32.mrf.mxu0
    %v1514 = vadd.f32 0.0, %v1513
    %v1515 = vpop.f32.mrf.mxu0
    %v1516 = vadd.f32 0.0, %v1515
    %1517 = vdwg.mxu0
    %1518 = vmatprep.subr.mxu0 0.0
    %1519 = vmatpush1.msra.mxu0 %v595
    %1520 = vmatprep.subr.mxu0 0.0
    %1521 = vmatpush1.msra.mxu0 %v592
    %1522 = vmatprep.subr.mxu0 0.0
    %1523 = vmatpush1.msra.mxu0 %v589
    %1524 = vmatprep.subr.mxu0 0.0
    %1525 = vmatpush1.msra.mxu0 %v586
    %1526 = vmatprep.subr.mxu0 0.0
    %1527 = vmatpush1.msra.mxu0 %v583
    %1528 = vmatprep.subr.mxu0 0.0
    %1529 = vmatpush1.msra.mxu0 %v580
    %1530 = vmatprep.subr.mxu0 0.0
    %1531 = vmatpush1.msra.mxu0 %v577
    %1532 = vmatprep.subr.mxu0 0.0
    %1533 = vmatpush1.msra.mxu0 %v574
    %1534 = vmatprep.subr.mxu0 0.0
    %1535 = vmatpush1.msra.mxu0 %v571
    %1536 = vmatprep.subr.mxu0 0.0
    %1537 = vmatpush1.msra.mxu0 %v568
    %1538 = vmatprep.subr.mxu0 0.0
    %1539 = vmatpush1.msra.mxu0 %v565
    %1540 = vmatprep.subr.mxu0 0.0
    %1541 = vmatpush1.msra.mxu0 %v562
    %1542 = vmatprep.subr.mxu0 0.0
    %1543 = vmatpush1.msra.mxu0 %v559
    %1544 = vmatprep.subr.mxu0 0.0
    %1545 = vmatpush1.msra.mxu0 %v556
    %1546 = vmatprep.subr.mxu0 0.0
    %1547 = vmatpush1.msra.mxu0 %v553
    %1548 = vmatprep.subr.mxu0 0.0
    %1549 = vmatpush1.msra.mxu0 %v550
    %1550 = vmatprep.subr.mxu0 0.0
    %1551 = vmatpush2.msra.mxu0 0.0
    %1552 = vmatprep.subr.mxu0 0.0
    %1553 = vmatpush2.msra.mxu0 0.0
    %1554 = vmatprep.subr.mxu0 0.0
    %1555 = vmatpush2.msra.mxu0 0.0
    %1556 = vmatprep.subr.mxu0 0.0
    %1557 = vmatpush2.msra.mxu0 0.0
    %1558 = vmatprep.subr.mxu0 0.0
    %1559 = vmatpush2.msra.mxu0 0.0
    %1560 = vmatprep.subr.mxu0 0.0
    %1561 = vmatpush2.msra.mxu0 0.0
    %1562 = vmatprep.subr.mxu0 0.0
    %1563 = vmatpush2.msra.mxu0 0.0
    %1564 = vmatprep.subr.mxu0 0.0
    %1565 = vmatpush2.msra.mxu0 0.0
    %1566 = vmatprep.subr.mxu0 0.0
    %1567 = vmatpush2.msra.mxu0 0.0
    %1568 = vmatprep.subr.mxu0 0.0
    %1569 = vmatpush2.msra.mxu0 0.0
    %1570 = vmatprep.subr.mxu0 0.0
    %1571 = vmatpush2.msra.mxu0 0.0
    %1572 = vmatprep.subr.mxu0 0.0
    %1573 = vmatpush2.msra.mxu0 0.0
    %1574 = vmatprep.subr.mxu0 0.0
    %1575 = vmatpush2.msra.mxu0 0.0
    %1576 = vmatprep.subr.mxu0 0.0
    %1577 = vmatpush2.msra.mxu0 0.0
    %1578 = vmatprep.subr.mxu0 0.0
    %1579 = vmatpush2.msra.mxu0 0.0
    %1580 = vmatprep.subr.mxu0 0.0
    %1581 = vmatpush2.msra.mxu0 0.0
    %1582 = vmatprep.mubr.f32.mxu0 0.0
    %1583 = vmatmul.mubr.f32.gmra.mxu0 %v1142
    %v1584 = vpop.f32.mrf.mxu0
    %v1585 = vadd.f32 0.0, %v1584
    %v1586 = vpop.f32.mrf.mxu0
    %1587 = vdwg.mxu0
    %v1588 = vadd.f32 %v1373, %v1514
    %v1589 = vxor.u32 %v1588, 2147483648
    %v1590 = vmul.f32 %v1589, 1.442695
    %v1591 = vpow.pop %v1590
    %v1592 = vadd.f32 %v1591, 1.0
    %v1593 = vrcp.pop %v1592
    %v1594 = vmul.f32 1.0, %v1593
    %v1595 = vadd.f32 %v1375, %v1516
    %v1596 = vxor.u32 %v1595, 2147483648
    %v1597 = vmul.f32 %v1596, 1.442695
    %v1598 = vpow.pop %v1597
    %v1599 = vadd.f32 %v1598, 1.0
    %v1600 = vrcp.pop %v1599
    %v1601 = vmul.f32 1.0, %v1600
    %v1602 = vadd.f32 %v1585, %v426
    %v1603 = vmul.f32 %v1594, %v1602
    %v1604 = vadd.f32 %v1444, %v1603
    %v1605 = vtanh.pop %v1604
    %v1606 = vsub.f32 1.0, %v1601
    %v1607 = vmul.f32 %v1606, %v1605
    %v1608 = vmul.f32 %v1601, %v1142
    %v1609 = vadd.f32 %v1607, %v1608
    %1610 = vmatprep.subr.mxu0 %v514
    %1611 = vmatpush1.msra.mxu0 %v513
    %1612 = vmatprep.subr.mxu0 %v511
    %1613 = vmatpush1.msra.mxu0 %v510
    %1614 = vmatprep.subr.mxu0 %v508
    %1615 = vmatpush1.msra.mxu0 %v507
    %1616 = vmatprep.subr.mxu0 %v505
    %1617 = vmatpush1.msra.mxu0 %v504
    %1618 = vmatprep.subr.mxu0 %v502
    %1619 = vmatpush1.msra.mxu0 %v501
    %1620 = vmatprep.subr.mxu0 %v499
    %1621 = vmatpush1.msra.mxu0 %v498
    %1622 = vmatprep.subr.mxu0 %v496
    %1623 = vmatpush1.msra.mxu0 %v495
    %1624 = vmatprep.subr.mxu0 %v493
    %1625 = vmatpush1.msra.mxu0 %v492
    %1626 = vmatprep.subr.mxu0 %v490
    %1627 = vmatpush1.msra.mxu0 %v489
    %1628 = vmatprep.subr.mxu0 %v487
    %1629 = vmatpush1.msra.mxu0 %v486
    %1630 = vmatprep.subr.mxu0 %v484
    %1631 = vmatpush1.msra.mxu0 %v483
    %1632 = vmatprep.subr.mxu0 %v481
    %1633 = vmatpush1.msra.mxu0 %v480
    %1634 = vmatprep.subr.mxu0 %v478
    %1635 = vmatpush1.msra.mxu0 %v477
    %1636 = vmatprep.subr.mxu0 %v475
    %1637 = vmatpush1.msra.mxu0 %v474
    %1638 = vmatprep.subr.mxu0 %v472
    %1639 = vmatpush1.msra.mxu0 %v471
    %1640 = vmatprep.subr.mxu0 %v469
    %1641 = vmatpush1.msra.mxu0 %v468
    %1642 = vmatprep.subr.mxu0 0.0
    %1643 = vmatpush2.msra.mxu0 0.0
    %1644 = vmatprep.subr.mxu0 0.0
    %1645 = vmatpush2.msra.mxu0 0.0
    %1646 = vmatprep.subr.mxu0 0.0
    %1647 = vmatpush2.msra.mxu0 0.0
    %1648 = vmatprep.subr.mxu0 0.0
    %1649 = vmatpush2.msra.mxu0 0.0
    %1650 = vmatprep.subr.mxu0 0.0
    %1651 = vmatpush2.msra.mxu0 0.0
    %1652 = vmatprep.subr.mxu0 0.0
    %1653 = vmatpush2.msra.mxu0 0.0
    %1654 = vmatprep.subr.mxu0 0.0
    %1655 = vmatpush2.msra.mxu0 0.0
    %1656 = vmatprep.subr.mxu0 0.0
    %1657 = vmatpush2.msra.mxu0 0.0
    %1658 = vmatprep.subr.mxu0 0.0
    %1659 = vmatpush2.msra.mxu0 0.0
    %1660 = vmatprep.subr.mxu0 0.0
    %1661 = vmatpush2.msra.mxu0 0.0
    %1662 = vmatprep.subr.mxu0 0.0
    %1663 = vmatpush2.msra.mxu0 0.0
    %1664 = vmatprep.subr.mxu0 0.0
    %1665 = vmatpush2.msra.mxu0 0.0
    %1666 = vmatprep.subr.mxu0 0.0
    %1667 = vmatpush2.msra.mxu0 0.0
    %1668 = vmatprep.subr.mxu0 0.0
    %1669 = vmatpush2.msra.mxu0 0.0
    %1670 = vmatprep.subr.mxu0 0.0
    %1671 = vmatpush2.msra.mxu0 0.0
    %1672 = vmatprep.subr.mxu0 0.0
    %1673 = vmatpush2.msra.mxu0 0.0
    %1674 = vmatprep.mubr.f32.mxu0 0.0
    %1675 = vmatmul.mubr.f32.gmra.mxu0 %v1305
    %v1676 = vpop.f32.mrf.mxu0
    %v1677 = vadd.f32 0.0, %v1676
    %v1678 = vpop.f32.mrf.mxu0
    %v1679 = vadd.f32 0.0, %v1678
    %1680 = vdwg.mxu0
    %1681 = vmatprep.subr.mxu0 0.0
    %1682 = vmatpush1.msra.mxu0 %v515
    %1683 = vmatprep.subr.mxu0 0.0
    %1684 = vmatpush1.msra.mxu0 %v512
    %1685 = vmatprep.subr.mxu0 0.0
    %1686 = vmatpush1.msra.mxu0 %v509
    %1687 = vmatprep.subr.mxu0 0.0
    %1688 = vmatpush1.msra.mxu0 %v506
    %1689 = vmatprep.subr.mxu0 0.0
    %1690 = vmatpush1.msra.mxu0 %v503
    %1691 = vmatprep.subr.mxu0 0.0
    %1692 = vmatpush1.msra.mxu0 %v500
    %1693 = vmatprep.subr.mxu0 0.0
    %1694 = vmatpush1.msra.mxu0 %v497
    %1695 = vmatprep.subr.mxu0 0.0
    %1696 = vmatpush1.msra.mxu0 %v494
    %1697 = vmatprep.subr.mxu0 0.0
    %1698 = vmatpush1.msra.mxu0 %v491
    %1699 = vmatprep.subr.mxu0 0.0
    %1700 = vmatpush1.msra.mxu0 %v488
    %1701 = vmatprep.subr.mxu0 0.0
    %1702 = vmatpush1.msra.mxu0 %v485
    %1703 = vmatprep.subr.mxu0 0.0
    %1704 = vmatpush1.msra.mxu0 %v482
    %1705 = vmatprep.subr.mxu0 0.0
    %1706 = vmatpush1.msra.mxu0 %v479
    %1707 = vmatprep.subr.mxu0 0.0
    %1708 = vmatpush1.msra.mxu0 %v476
    %1709 = vmatprep.subr.mxu0 0.0
    %1710 = vmatpush1.msra.mxu0 %v473
    %1711 = vmatprep.subr.mxu0 0.0
    %1712 = vmatpush1.msra.mxu0 %v470
    %1713 = vmatprep.subr.mxu0 0.0
    %1714 = vmatpush2.msra.mxu0 0.0
    %1715 = vmatprep.subr.mxu0 0.0
    %1716 = vmatpush2.msra.mxu0 0.0
    %1717 = vmatprep.subr.mxu0 0.0
    %1718 = vmatpush2.msra.mxu0 0.0
    %1719 = vmatprep.subr.mxu0 0.0
    %1720 = vmatpush2.msra.mxu0 0.0
    %1721 = vmatprep.subr.mxu0 0.0
    %1722 = vmatpush2.msra.mxu0 0.0
    %1723 = vmatprep.subr.mxu0 0.0
    %1724 = vmatpush2.msra.mxu0 0.0
    %1725 = vmatprep.subr.mxu0 0.0
    %1726 = vmatpush2.msra.mxu0 0.0
    %1727 = vmatprep.subr.mxu0 0.0
    %1728 = vmatpush2.msra.mxu0 0.0
    %1729 = vmatprep.subr.mxu0 0.0
    %1730 = vmatpush2.msra.mxu0 0.0
    %1731 = vmatprep.subr.mxu0 0.0
    %1732 = vmatpush2.msra.mxu0 0.0
    %1733 = vmatprep.subr.mxu0 0.0
    %1734 = vmatpush2.msra.mxu0 0.0
    %1735 = vmatprep.subr.mxu0 0.0
    %1736 = vmatpush2.msra.mxu0 0.0
    %1737 = vmatprep.subr.mxu0 0.0
    %1738 = vmatpush2.msra.mxu0 0.0
    %1739 = vmatprep.subr.mxu0 0.0
    %1740 = vmatpush2.msra.mxu0 0.0
    %1741 = vmatprep.subr.mxu0 0.0
    %1742 = vmatpush2.msra.mxu0 0.0
    %1743 = vmatprep.subr.mxu0 0.0
    %1744 = vmatpush2.msra.mxu0 0.0
    %1745 = vmatprep.mubr.f32.mxu0 0.0
    %1746 = vmatmul.mubr.f32.gmra.mxu0 %v1305
    %v1747 = vpop.f32.mrf.mxu0
    %v1748 = vadd.f32 0.0, %v1747
    %v1749 = vpop.f32.mrf.mxu0
    %1750 = vdwg.mxu0
    %v1751 = vadd.f32 %v258, %v1677
    %v1752 = vxor.u32 %v1751, 2147483648
    %v1753 = vmul.f32 %v1752, 1.442695
    %v1754 = vpow.pop %v1753
    %v1755 = vadd.f32 %v1754, 1.0
    %v1756 = vrcp.pop %v1755
    %v1757 = vmul.f32 1.0, %v1756
    %v1758 = vadd.f32 %v260, %v1679
    %v1759 = vxor.u32 %v1758, 2147483648
    %v1760 = vmul.f32 %v1759, 1.442695
    %v1761 = vpow.pop %v1760
    %v1762 = vadd.f32 %v1761, 1.0
    %v1763 = vrcp.pop %v1762
    %v1764 = vmul.f32 1.0, %v1763
    %v1765 = vadd.f32 %v1748, %v419
    %v1766 = vmul.f32 %v1757, %v1765
    %v1767 = vadd.f32 %v369, %v1766
    %v1768 = vtanh.pop %v1767
    %v1769 = vsub.f32 1.0, %v1764
    %v1770 = vmul.f32 %v1769, %v1768
    %v1771 = vmul.f32 %v1764, %v1305
    %v1772 = vadd.f32 %v1770, %v1771
    %1773 = vmatprep.subr.mxu0 %v674
    %1774 = vmatpush1.msra.mxu0 %v673
    %1775 = vmatprep.subr.mxu0 %v671
    %1776 = vmatpush1.msra.mxu0 %v670
    %1777 = vmatprep.subr.mxu0 %v668
    %1778 = vmatpush1.msra.mxu0 %v667
    %1779 = vmatprep.subr.mxu0 %v665
    %1780 = vmatpush1.msra.mxu0 %v664
    %1781 = vmatprep.subr.mxu0 %v662
    %1782 = vmatpush1.msra.mxu0 %v661
    %1783 = vmatprep.subr.mxu0 %v659
    %1784 = vmatpush1.msra.mxu0 %v658
    %1785 = vmatprep.subr.mxu0 %v656
    %1786 = vmatpush1.msra.mxu0 %v655
    %1787 = vmatprep.subr.mxu0 %v653
    %1788 = vmatpush1.msra.mxu0 %v652
    %1789 = vmatprep.subr.mxu0 %v650
    %1790 = vmatpush1.msra.mxu0 %v649
    %1791 = vmatprep.subr.mxu0 %v647
    %1792 = vmatpush1.msra.mxu0 %v646
    %1793 = vmatprep.subr.mxu0 %v644
    %1794 = vmatpush1.msra.mxu0 %v643
    %1795 = vmatprep.subr.mxu0 %v641
    %1796 = vmatpush1.msra.mxu0 %v640
    %1797 = vmatprep.subr.mxu0 %v638
    %1798 = vmatpush1.msra.mxu0 %v637
    %1799 = vmatprep.subr.mxu0 %v635
    %1800 = vmatpush1.msra.mxu0 %v634
    %1801 = vmatprep.subr.mxu0 %v632
    %1802 = vmatpush1.msra.mxu0 %v631
    %1803 = vmatprep.subr.mxu0 %v629
    %1804 = vmatpush1.msra.mxu0 %v628
    %1805 = vmatprep.subr.mxu0 0.0
    %1806 = vmatpush2.msra.mxu0 0.0
    %1807 = vmatprep.subr.mxu0 0.0
    %1808 = vmatpush2.msra.mxu0 0.0
    %1809 = vmatprep.subr.mxu0 0.0
    %1810 = vmatpush2.msra.mxu0 0.0
    %1811 = vmatprep.subr.mxu0 0.0
    %1812 = vmatpush2.msra.mxu0 0.0
    %1813 = vmatprep.subr.mxu0 0.0
    %1814 = vmatpush2.msra.mxu0 0.0
    %1815 = vmatprep.subr.mxu0 0.0
    %1816 = vmatpush2.msra.mxu0 0.0
    %1817 = vmatprep.subr.mxu0 0.0
    %1818 = vmatpush2.msra.mxu0 0.0
    %1819 = vmatprep.subr.mxu0 0.0
    %1820 = vmatpush2.msra.mxu0 0.0
    %1821 = vmatprep.subr.mxu0 0.0
    %1822 = vmatpush2.msra.mxu0 0.0
    %1823 = vmatprep.subr.mxu0 0.0
    %1824 = vmatpush2.msra.mxu0 0.0
    %1825 = vmatprep.subr.mxu0 0.0
    %1826 = vmatpush2.msra.mxu0 0.0
    %1827 = vmatprep.subr.mxu0 0.0
    %1828 = vmatpush2.msra.mxu0 0.0
    %1829 = vmatprep.subr.mxu0 0.0
    %1830 = vmatpush2.msra.mxu0 0.0
    %1831 = vmatprep.subr.mxu0 0.0
    %1832 = vmatpush2.msra.mxu0 0.0
    %1833 = vmatprep.subr.mxu0 0.0
    %1834 = vmatpush2.msra.mxu0 0.0
    %1835 = vmatprep.subr.mxu0 0.0
    %1836 = vmatpush2.msra.mxu0 0.0
    %1837 = vmatprep.mubr.f32.mxu0 0.0
    %1838 = vmatmul.mubr.f32.gmra.mxu0 %v1772
    %v1839 = vpop.f32.mrf.mxu0
    %v1840 = vadd.f32 %v402, %v1839
    %v1841 = vpop.f32.mrf.mxu0
    %v1842 = vadd.f32 %v406, %v1841
    %1843 = vdwg.mxu0
    %1844 = vmatprep.subr.mxu0 0.0
    %1845 = vmatpush1.msra.mxu0 %v675
    %1846 = vmatprep.subr.mxu0 0.0
    %1847 = vmatpush1.msra.mxu0 %v672
    %1848 = vmatprep.subr.mxu0 0.0
    %1849 = vmatpush1.msra.mxu0 %v669
    %1850 = vmatprep.subr.mxu0 0.0
    %1851 = vmatpush1.msra.mxu0 %v666
    %1852 = vmatprep.subr.mxu0 0.0
    %1853 = vmatpush1.msra.mxu0 %v663
    %1854 = vmatprep.subr.mxu0 0.0
    %1855 = vmatpush1.msra.mxu0 %v660
    %1856 = vmatprep.subr.mxu0 0.0
    %1857 = vmatpush1.msra.mxu0 %v657
    %1858 = vmatprep.subr.mxu0 0.0
    %1859 = vmatpush1.msra.mxu0 %v654
    %1860 = vmatprep.subr.mxu0 0.0
    %1861 = vmatpush1.msra.mxu0 %v651
    %1862 = vmatprep.subr.mxu0 0.0
    %1863 = vmatpush1.msra.mxu0 %v648
    %1864 = vmatprep.subr.mxu0 0.0
    %1865 = vmatpush1.msra.mxu0 %v645
    %1866 = vmatprep.subr.mxu0 0.0
    %1867 = vmatpush1.msra.mxu0 %v642
    %1868 = vmatprep.subr.mxu0 0.0
    %1869 = vmatpush1.msra.mxu0 %v639
    %1870 = vmatprep.subr.mxu0 0.0
    %1871 = vmatpush1.msra.mxu0 %v636
    %1872 = vmatprep.subr.mxu0 0.0
    %1873 = vmatpush1.msra.mxu0 %v633
    %1874 = vmatprep.subr.mxu0 0.0
    %1875 = vmatpush1.msra.mxu0 %v630
    %1876 = vmatprep.subr.mxu0 0.0
    %1877 = vmatpush2.msra.mxu0 0.0
    %1878 = vmatprep.subr.mxu0 0.0
    %1879 = vmatpush2.msra.mxu0 0.0
    %1880 = vmatprep.subr.mxu0 0.0
    %1881 = vmatpush2.msra.mxu0 0.0
    %1882 = vmatprep.subr.mxu0 0.0
    %1883 = vmatpush2.msra.mxu0 0.0
    %1884 = vmatprep.subr.mxu0 0.0
    %1885 = vmatpush2.msra.mxu0 0.0
    %1886 = vmatprep.subr.mxu0 0.0
    %1887 = vmatpush2.msra.mxu0 0.0
    %1888 = vmatprep.subr.mxu0 0.0
    %1889 = vmatpush2.msra.mxu0 0.0
    %1890 = vmatprep.subr.mxu0 0.0
    %1891 = vmatpush2.msra.mxu0 0.0
    %1892 = vmatprep.subr.mxu0 0.0
    %1893 = vmatpush2.msra.mxu0 0.0
    %1894 = vmatprep.subr.mxu0 0.0
    %1895 = vmatpush2.msra.mxu0 0.0
    %1896 = vmatprep.subr.mxu0 0.0
    %1897 = vmatpush2.msra.mxu0 0.0
    %1898 = vmatprep.subr.mxu0 0.0
    %1899 = vmatpush2.msra.mxu0 0.0
    %1900 = vmatprep.subr.mxu0 0.0
    %1901 = vmatpush2.msra.mxu0 0.0
    %1902 = vmatprep.subr.mxu0 0.0
    %1903 = vmatpush2.msra.mxu0 0.0
    %1904 = vmatprep.subr.mxu0 0.0
    %1905 = vmatpush2.msra.mxu0 0.0
    %1906 = vmatprep.subr.mxu0 0.0
    %1907 = vmatpush2.msra.mxu0 0.0
    %1908 = vmatprep.mubr.f32.mxu0 0.0
    %1909 = vmatmul.mubr.f32.gmra.mxu0 %v1772
    %v1910 = vpop.f32.mrf.mxu0
    %v1911 = vadd.f32 %v410, %v1910
    %v1912 = vpop.f32.mrf.mxu0
    %1913 = vdwg.mxu0
    %1914 = vmatprep.subr.mxu0 %v594
    %1915 = vmatpush1.msra.mxu0 %v593
    %1916 = vmatprep.subr.mxu0 %v591
    %1917 = vmatpush1.msra.mxu0 %v590
    %1918 = vmatprep.subr.mxu0 %v588
    %1919 = vmatpush1.msra.mxu0 %v587
    %1920 = vmatprep.subr.mxu0 %v585
    %1921 = vmatpush1.msra.mxu0 %v584
    %1922 = vmatprep.subr.mxu0 %v582
    %1923 = vmatpush1.msra.mxu0 %v581
    %1924 = vmatprep.subr.mxu0 %v579
    %1925 = vmatpush1.msra.mxu0 %v578
    %1926 = vmatprep.subr.mxu0 %v576
    %1927 = vmatpush1.msra.mxu0 %v575
    %1928 = vmatprep.subr.mxu0 %v573
    %1929 = vmatpush1.msra.mxu0 %v572
    %1930 = vmatprep.subr.mxu0 %v570
    %1931 = vmatpush1.msra.mxu0 %v569
    %1932 = vmatprep.subr.mxu0 %v567
    %1933 = vmatpush1.msra.mxu0 %v566
    %1934 = vmatprep.subr.mxu0 %v564
    %1935 = vmatpush1.msra.mxu0 %v563
    %1936 = vmatprep.subr.mxu0 %v561
    %1937 = vmatpush1.msra.mxu0 %v560
    %1938 = vmatprep.subr.mxu0 %v558
    %1939 = vmatpush1.msra.mxu0 %v557
    %1940 = vmatprep.subr.mxu0 %v555
    %1941 = vmatpush1.msra.mxu0 %v554
    %1942 = vmatprep.subr.mxu0 %v552
    %1943 = vmatpush1.msra.mxu0 %v551
    %1944 = vmatprep.subr.mxu0 %v549
    %1945 = vmatpush1.msra.mxu0 %v548
    %1946 = vmatprep.subr.mxu0 0.0
    %1947 = vmatpush2.msra.mxu0 0.0
    %1948 = vmatprep.subr.mxu0 0.0
    %1949 = vmatpush2.msra.mxu0 0.0
    %1950 = vmatprep.subr.mxu0 0.0
    %1951 = vmatpush2.msra.mxu0 0.0
    %1952 = vmatprep.subr.mxu0 0.0
    %1953 = vmatpush2.msra.mxu0 0.0
    %1954 = vmatprep.subr.mxu0 0.0
    %1955 = vmatpush2.msra.mxu0 0.0
    %1956 = vmatprep.subr.mxu0 0.0
    %1957 = vmatpush2.msra.mxu0 0.0
    %1958 = vmatprep.subr.mxu0 0.0
    %1959 = vmatpush2.msra.mxu0 0.0
    %1960 = vmatprep.subr.mxu0 0.0
    %1961 = vmatpush2.msra.mxu0 0.0
    %1962 = vmatprep.subr.mxu0 0.0
    %1963 = vmatpush2.msra.mxu0 0.0
    %1964 = vmatprep.subr.mxu0 0.0
    %1965 = vmatpush2.msra.mxu0 0.0
    %1966 = vmatprep.subr.mxu0 0.0
    %1967 = vmatpush2.msra.mxu0 0.0
    %1968 = vmatprep.subr.mxu0 0.0
    %1969 = vmatpush2.msra.mxu0 0.0
    %1970 = vmatprep.subr.mxu0 0.0
    %1971 = vmatpush2.msra.mxu0 0.0
    %1972 = vmatprep.subr.mxu0 0.0
    %1973 = vmatpush2.msra.mxu0 0.0
    %1974 = vmatprep.subr.mxu0 0.0
    %1975 = vmatpush2.msra.mxu0 0.0
    %1976 = vmatprep.subr.mxu0 0.0
    %1977 = vmatpush2.msra.mxu0 0.0
    %1978 = vmatprep.mubr.f32.mxu0 0.0
    %1979 = vmatmul.mubr.f32.gmra.mxu0 %v1609
    %v1980 = vpop.f32.mrf.mxu0
    %v1981 = vadd.f32 0.0, %v1980
    %v1982 = vpop.f32.mrf.mxu0
    %v1983 = vadd.f32 0.0, %v1982
    %1984 = vdwg.mxu0
    %1985 = vmatprep.subr.mxu0 0.0
    %1986 = vmatpush1.msra.mxu0 %v595
    %1987 = vmatprep.subr.mxu0 0.0
    %1988 = vmatpush1.msra.mxu0 %v592
    %1989 = vmatprep.subr.mxu0 0.0
    %1990 = vmatpush1.msra.mxu0 %v589
    %1991 = vmatprep.subr.mxu0 0.0
    %1992 = vmatpush1.msra.mxu0 %v586
    %1993 = vmatprep.subr.mxu0 0.0
    %1994 = vmatpush1.msra.mxu0 %v583
    %1995 = vmatprep.subr.mxu0 0.0
    %1996 = vmatpush1.msra.mxu0 %v580
    %1997 = vmatprep.subr.mxu0 0.0
    %1998 = vmatpush1.msra.mxu0 %v577
    %1999 = vmatprep.subr.mxu0 0.0
    %2000 = vmatpush1.msra.mxu0 %v574
    %2001 = vmatprep.subr.mxu0 0.0
    %2002 = vmatpush1.msra.mxu0 %v571
    %2003 = vmatprep.subr.mxu0 0.0
    %2004 = vmatpush1.msra.mxu0 %v568
    %2005 = vmatprep.subr.mxu0 0.0
    %2006 = vmatpush1.msra.mxu0 %v565
    %2007 = vmatprep.subr.mxu0 0.0
    %2008 = vmatpush1.msra.mxu0 %v562
    %2009 = vmatprep.subr.mxu0 0.0
    %2010 = vmatpush1.msra.mxu0 %v559
    %2011 = vmatprep.subr.mxu0 0.0
    %2012 = vmatpush1.msra.mxu0 %v556
    %2013 = vmatprep.subr.mxu0 0.0
    %2014 = vmatpush1.msra.mxu0 %v553
    %2015 = vmatprep.subr.mxu0 0.0
    %2016 = vmatpush1.msra.mxu0 %v550
    %2017 = vmatprep.subr.mxu0 0.0
    %2018 = vmatpush2.msra.mxu0 0.0
    %2019 = vmatprep.subr.mxu0 0.0
    %2020 = vmatpush2.msra.mxu0 0.0
    %2021 = vmatprep.subr.mxu0 0.0
    %2022 = vmatpush2.msra.mxu0 0.0
    %2023 = vmatprep.subr.mxu0 0.0
    %2024 = vmatpush2.msra.mxu0 0.0
    %2025 = vmatprep.subr.mxu0 0.0
    %2026 = vmatpush2.msra.mxu0 0.0
    %2027 = vmatprep.subr.mxu0 0.0
    %2028 = vmatpush2.msra.mxu0 0.0
    %2029 = vmatprep.subr.mxu0 0.0
    %2030 = vmatpush2.msra.mxu0 0.0
    %2031 = vmatprep.subr.mxu0 0.0
    %2032 = vmatpush2.msra.mxu0 0.0
    %2033 = vmatprep.subr.mxu0 0.0
    %2034 = vmatpush2.msra.mxu0 0.0
    %2035 = vmatprep.subr.mxu0 0.0
    %2036 = vmatpush2.msra.mxu0 0.0
    %2037 = vmatprep.subr.mxu0 0.0
    %2038 = vmatpush2.msra.mxu0 0.0
    %2039 = vmatprep.subr.mxu0 0.0
    %2040 = vmatpush2.msra.mxu0 0.0
    %2041 = vmatprep.subr.mxu0 0.0
    %2042 = vmatpush2.msra.mxu0 0.0
    %2043 = vmatprep.subr.mxu0 0.0
    %2044 = vmatpush2.msra.mxu0 0.0
    %2045 = vmatprep.subr.mxu0 0.0
    %2046 = vmatpush2.msra.mxu0 0.0
    %2047 = vmatprep.subr.mxu0 0.0
    %2048 = vmatpush2.msra.mxu0 0.0
    %2049 = vmatprep.mubr.f32.mxu0 0.0
    %2050 = vmatmul.mubr.f32.gmra.mxu0 %v1609
    %v2051 = vpop.f32.mrf.mxu0
    %v2052 = vadd.f32 0.0, %v2051
    %v2053 = vpop.f32.mrf.mxu0
    %2054 = vdwg.mxu0
    %v2055 = vadd.f32 %v1840, %v1981
    %v2056 = vxor.u32 %v2055, 2147483648
    %v2057 = vmul.f32 %v2056, 1.442695
    %v2058 = vpow.pop %v2057
    %v2059 = vadd.f32 %v2058, 1.0
    %v2060 = vrcp.pop %v2059
    %v2061 = vmul.f32 1.0, %v2060
    %v2062 = vadd.f32 %v1842, %v1983
    %v2063 = vxor.u32 %v2062, 2147483648
    %v2064 = vmul.f32 %v2063, 1.442695
    %v2065 = vpow.pop %v2064
    %v2066 = vadd.f32 %v2065, 1.0
    %v2067 = vrcp.pop %v2066
    %v2068 = vmul.f32 1.0, %v2067
    %v2069 = vadd.f32 %v2052, %v426
    %v2070 = vmul.f32 %v2061, %v2069
    %v2071 = vadd.f32 %v1911, %v2070
    %v2072 = vtanh.pop %v2071
    %v2073 = vsub.f32 1.0, %v2068
    %v2074 = vmul.f32 %v2073, %v2072
    %v2075 = vmul.f32 %v2068, %v1609
    %v2076 = vadd.f32 %v2074, %v2075
    %2077 = vmatprep.subr.mxu0 %v514
    %2078 = vmatpush1.msra.mxu0 %v513
    %2079 = vmatprep.subr.mxu0 %v511
    %2080 = vmatpush1.msra.mxu0 %v510
    %2081 = vmatprep.subr.mxu0 %v508
    %2082 = vmatpush1.msra.mxu0 %v507
    %2083 = vmatprep.subr.mxu0 %v505
    %2084 = vmatpush1.msra.mxu0 %v504
    %2085 = vmatprep.subr.mxu0 %v502
    %2086 = vmatpush1.msra.mxu0 %v501
    %2087 = vmatprep.subr.mxu0 %v499
    %2088 = vmatpush1.msra.mxu0 %v498
    %2089 = vmatprep.subr.mxu0 %v496
    %2090 = vmatpush1.msra.mxu0 %v495
    %2091 = vmatprep.subr.mxu0 %v493
    %2092 = vmatpush1.msra.mxu0 %v492
    %2093 = vmatprep.subr.mxu0 %v490
    %2094 = vmatpush1.msra.mxu0 %v489
    %2095 = vmatprep.subr.mxu0 %v487
    %2096 = vmatpush1.msra.mxu0 %v486
    %2097 = vmatprep.subr.mxu0 %v484
    %2098 = vmatpush1.msra.mxu0 %v483
    %2099 = vmatprep.subr.mxu0 %v481
    %2100 = vmatpush1.msra.mxu0 %v480
    %2101 = vmatprep.subr.mxu0 %v478
    %2102 = vmatpush1.msra.mxu0 %v477
    %2103 = vmatprep.subr.mxu0 %v475
    %2104 = vmatpush1.msra.mxu0 %v474
    %2105 = vmatprep.subr.mxu0 %v472
    %2106 = vmatpush1.msra.mxu0 %v471
    %2107 = vmatprep.subr.mxu0 %v469
    %2108 = vmatpush1.msra.mxu0 %v468
    %2109 = vmatprep.subr.mxu0 0.0
    %2110 = vmatpush2.msra.mxu0 0.0
    %2111 = vmatprep.subr.mxu0 0.0
    %2112 = vmatpush2.msra.mxu0 0.0
    %2113 = vmatprep.subr.mxu0 0.0
    %2114 = vmatpush2.msra.mxu0 0.0
    %2115 = vmatprep.subr.mxu0 0.0
    %2116 = vmatpush2.msra.mxu0 0.0
    %2117 = vmatprep.subr.mxu0 0.0
    %2118 = vmatpush2.msra.mxu0 0.0
    %2119 = vmatprep.subr.mxu0 0.0
    %2120 = vmatpush2.msra.mxu0 0.0
    %2121 = vmatprep.subr.mxu0 0.0
    %2122 = vmatpush2.msra.mxu0 0.0
    %2123 = vmatprep.subr.mxu0 0.0
    %2124 = vmatpush2.msra.mxu0 0.0
    %2125 = vmatprep.subr.mxu0 0.0
    %2126 = vmatpush2.msra.mxu0 0.0
    %2127 = vmatprep.subr.mxu0 0.0
    %2128 = vmatpush2.msra.mxu0 0.0
    %2129 = vmatprep.subr.mxu0 0.0
    %2130 = vmatpush2.msra.mxu0 0.0
    %2131 = vmatprep.subr.mxu0 0.0
    %2132 = vmatpush2.msra.mxu0 0.0
    %2133 = vmatprep.subr.mxu0 0.0
    %2134 = vmatpush2.msra.mxu0 0.0
    %2135 = vmatprep.subr.mxu0 0.0
    %2136 = vmatpush2.msra.mxu0 0.0
    %2137 = vmatprep.subr.mxu0 0.0
    %2138 = vmatpush2.msra.mxu0 0.0
    %2139 = vmatprep.subr.mxu0 0.0
    %2140 = vmatpush2.msra.mxu0 0.0
    %2141 = vmatprep.mubr.f32.mxu0 0.0
    %2142 = vmatmul.mubr.f32.gmra.mxu0 %v1772
    %v2143 = vpop.f32.mrf.mxu0
    %v2144 = vadd.f32 0.0, %v2143
    %v2145 = vpop.f32.mrf.mxu0
    %v2146 = vadd.f32 0.0, %v2145
    %2147 = vdwg.mxu0
    %2148 = vmatprep.subr.mxu0 0.0
    %2149 = vmatpush1.msra.mxu0 %v515
    %2150 = vmatprep.subr.mxu0 0.0
    %2151 = vmatpush1.msra.mxu0 %v512
    %2152 = vmatprep.subr.mxu0 0.0
    %2153 = vmatpush1.msra.mxu0 %v509
    %2154 = vmatprep.subr.mxu0 0.0
    %2155 = vmatpush1.msra.mxu0 %v506
    %2156 = vmatprep.subr.mxu0 0.0
    %2157 = vmatpush1.msra.mxu0 %v503
    %2158 = vmatprep.subr.mxu0 0.0
    %2159 = vmatpush1.msra.mxu0 %v500
    %2160 = vmatprep.subr.mxu0 0.0
    %2161 = vmatpush1.msra.mxu0 %v497
    %2162 = vmatprep.subr.mxu0 0.0
    %2163 = vmatpush1.msra.mxu0 %v494
    %2164 = vmatprep.subr.mxu0 0.0
    %2165 = vmatpush1.msra.mxu0 %v491
    %2166 = vmatprep.subr.mxu0 0.0
    %2167 = vmatpush1.msra.mxu0 %v488
    %2168 = vmatprep.subr.mxu0 0.0
    %2169 = vmatpush1.msra.mxu0 %v485
    %2170 = vmatprep.subr.mxu0 0.0
    %2171 = vmatpush1.msra.mxu0 %v482
    %2172 = vmatprep.subr.mxu0 0.0
    %2173 = vmatpush1.msra.mxu0 %v479
    %2174 = vmatprep.subr.mxu0 0.0
    %2175 = vmatpush1.msra.mxu0 %v476
    %2176 = vmatprep.subr.mxu0 0.0
    %2177 = vmatpush1.msra.mxu0 %v473
    %2178 = vmatprep.subr.mxu0 0.0
    %2179 = vmatpush1.msra.mxu0 %v470
    %2180 = vmatprep.subr.mxu0 0.0
    %2181 = vmatpush2.msra.mxu0 0.0
    %2182 = vmatprep.subr.mxu0 0.0
    %2183 = vmatpush2.msra.mxu0 0.0
    %2184 = vmatprep.subr.mxu0 0.0
    %2185 = vmatpush2.msra.mxu0 0.0
    %2186 = vmatprep.subr.mxu0 0.0
    %2187 = vmatpush2.msra.mxu0 0.0
    %2188 = vmatprep.subr.mxu0 0.0
    %2189 = vmatpush2.msra.mxu0 0.0
    %2190 = vmatprep.subr.mxu0 0.0
    %2191 = vmatpush2.msra.mxu0 0.0
    %2192 = vmatprep.subr.mxu0 0.0
    %2193 = vmatpush2.msra.mxu0 0.0
    %2194 = vmatprep.subr.mxu0 0.0
    %2195 = vmatpush2.msra.mxu0 0.0
    %2196 = vmatprep.subr.mxu0 0.0
    %2197 = vmatpush2.msra.mxu0 0.0
    %2198 = vmatprep.subr.mxu0 0.0
    %2199 = vmatpush2.msra.mxu0 0.0
    %2200 = vmatprep.subr.mxu0 0.0
    %2201 = vmatpush2.msra.mxu0 0.0
    %2202 = vmatprep.subr.mxu0 0.0
    %2203 = vmatpush2.msra.mxu0 0.0
    %2204 = vmatprep.subr.mxu0 0.0
    %2205 = vmatpush2.msra.mxu0 0.0
    %2206 = vmatprep.subr.mxu0 0.0
    %2207 = vmatpush2.msra.mxu0 0.0
    %2208 = vmatprep.subr.mxu0 0.0
    %2209 = vmatpush2.msra.mxu0 0.0
    %2210 = vmatprep.subr.mxu0 0.0
    %2211 = vmatpush2.msra.mxu0 0.0
    %2212 = vmatprep.mubr.f32.mxu0 0.0
    %2213 = vmatmul.mubr.f32.gmra.mxu0 %v1772
    %v2214 = vpop.f32.mrf.mxu0
    %v2215 = vadd.f32 0.0, %v2214
    %v2216 = vpop.f32.mrf.mxu0
    %2217 = vdwg.mxu0
    %v2218 = vadd.f32 %v264, %v2144
    %v2219 = vxor.u32 %v2218, 2147483648
    %v2220 = vmul.f32 %v2219, 1.442695
    %v2221 = vpow.pop %v2220
    %v2222 = vadd.f32 %v2221, 1.0
    %v2223 = vrcp.pop %v2222
    %v2224 = vmul.f32 1.0, %v2223
    %v2225 = vadd.f32 %v266, %v2146
    %v2226 = vxor.u32 %v2225, 2147483648
    %v2227 = vmul.f32 %v2226, 1.442695
    %v2228 = vpow.pop %v2227
    %v2229 = vadd.f32 %v2228, 1.0
    %v2230 = vrcp.pop %v2229
    %v2231 = vmul.f32 1.0, %v2230
    %v2232 = vadd.f32 %v2215, %v419
    %v2233 = vmul.f32 %v2224, %v2232
    %v2234 = vadd.f32 %v374, %v2233
    %v2235 = vtanh.pop %v2234
    %v2236 = vsub.f32 1.0, %v2231
    %v2237 = vmul.f32 %v2236, %v2235
    %v2238 = vmul.f32 %v2231, %v1772
    %v2239 = vadd.f32 %v2237, %v2238
    %2240 = vmatprep.subr.mxu0 %v674
    %2241 = vmatpush1.msra.mxu0 %v673
    %2242 = vmatprep.subr.mxu0 %v671
    %2243 = vmatpush1.msra.mxu0 %v670
    %2244 = vmatprep.subr.mxu0 %v668
    %2245 = vmatpush1.msra.mxu0 %v667
    %2246 = vmatprep.subr.mxu0 %v665
    %2247 = vmatpush1.msra.mxu0 %v664
    %2248 = vmatprep.subr.mxu0 %v662
    %2249 = vmatpush1.msra.mxu0 %v661
    %2250 = vmatprep.subr.mxu0 %v659
    %2251 = vmatpush1.msra.mxu0 %v658
    %2252 = vmatprep.subr.mxu0 %v656
    %2253 = vmatpush1.msra.mxu0 %v655
    %2254 = vmatprep.subr.mxu0 %v653
    %2255 = vmatpush1.msra.mxu0 %v652
    %2256 = vmatprep.subr.mxu0 %v650
    %2257 = vmatpush1.msra.mxu0 %v649
    %2258 = vmatprep.subr.mxu0 %v647
    %2259 = vmatpush1.msra.mxu0 %v646
    %2260 = vmatprep.subr.mxu0 %v644
    %2261 = vmatpush1.msra.mxu0 %v643
    %2262 = vmatprep.subr.mxu0 %v641
    %2263 = vmatpush1.msra.mxu0 %v640
    %2264 = vmatprep.subr.mxu0 %v638
    %2265 = vmatpush1.msra.mxu0 %v637
    %2266 = vmatprep.subr.mxu0 %v635
    %2267 = vmatpush1.msra.mxu0 %v634
    %2268 = vmatprep.subr.mxu0 %v632
    %2269 = vmatpush1.msra.mxu0 %v631
    %2270 = vmatprep.subr.mxu0 %v629
    %2271 = vmatpush1.msra.mxu0 %v628
    %2272 = vmatprep.subr.mxu0 0.0
    %2273 = vmatpush2.msra.mxu0 0.0
    %2274 = vmatprep.subr.mxu0 0.0
    %2275 = vmatpush2.msra.mxu0 0.0
    %2276 = vmatprep.subr.mxu0 0.0
    %2277 = vmatpush2.msra.mxu0 0.0
    %2278 = vmatprep.subr.mxu0 0.0
    %2279 = vmatpush2.msra.mxu0 0.0
    %2280 = vmatprep.subr.mxu0 0.0
    %2281 = vmatpush2.msra.mxu0 0.0
    %2282 = vmatprep.subr.mxu0 0.0
    %2283 = vmatpush2.msra.mxu0 0.0
    %2284 = vmatprep.subr.mxu0 0.0
    %2285 = vmatpush2.msra.mxu0 0.0
    %2286 = vmatprep.subr.mxu0 0.0
    %2287 = vmatpush2.msra.mxu0 0.0
    %2288 = vmatprep.subr.mxu0 0.0
    %2289 = vmatpush2.msra.mxu0 0.0
    %2290 = vmatprep.subr.mxu0 0.0
    %2291 = vmatpush2.msra.mxu0 0.0
    %2292 = vmatprep.subr.mxu0 0.0
    %2293 = vmatpush2.msra.mxu0 0.0
    %2294 = vmatprep.subr.mxu0 0.0
    %2295 = vmatpush2.msra.mxu0 0.0
    %2296 = vmatprep.subr.mxu0 0.0
    %2297 = vmatpush2.msra.mxu0 0.0
    %2298 = vmatprep.subr.mxu0 0.0
    %2299 = vmatpush2.msra.mxu0 0.0
    %2300 = vmatprep.subr.mxu0 0.0
    %2301 = vmatpush2.msra.mxu0 0.0
    %2302 = vmatprep.subr.mxu0 0.0
    %2303 = vmatpush2.msra.mxu0 0.0
    %2304 = vmatprep.mubr.f32.mxu0 0.0
    %2305 = vmatmul.mubr.f32.gmra.mxu0 %v2239
    %v2306 = vpop.f32.mrf.mxu0
    %v2307 = vadd.f32 %v402, %v2306
    %v2308 = vpop.f32.mrf.mxu0
    %v2309 = vadd.f32 %v406, %v2308
    %2310 = vdwg.mxu0
    %2311 = vmatprep.subr.mxu0 0.0
    %2312 = vmatpush1.msra.mxu0 %v675
    %2313 = vmatprep.subr.mxu0 0.0
    %2314 = vmatpush1.msra.mxu0 %v672
    %2315 = vmatprep.subr.mxu0 0.0
    %2316 = vmatpush1.msra.mxu0 %v669
    %2317 = vmatprep.subr.mxu0 0.0
    %2318 = vmatpush1.msra.mxu0 %v666
    %2319 = vmatprep.subr.mxu0 0.0
    %2320 = vmatpush1.msra.mxu0 %v663
    %2321 = vmatprep.subr.mxu0 0.0
    %2322 = vmatpush1.msra.mxu0 %v660
    %2323 = vmatprep.subr.mxu0 0.0
    %2324 = vmatpush1.msra.mxu0 %v657
    %2325 = vmatprep.subr.mxu0 0.0
    %2326 = vmatpush1.msra.mxu0 %v654
    %2327 = vmatprep.subr.mxu0 0.0
    %2328 = vmatpush1.msra.mxu0 %v651
    %2329 = vmatprep.subr.mxu0 0.0
    %2330 = vmatpush1.msra.mxu0 %v648
    %2331 = vmatprep.subr.mxu0 0.0
    %2332 = vmatpush1.msra.mxu0 %v645
    %2333 = vmatprep.subr.mxu0 0.0
    %2334 = vmatpush1.msra.mxu0 %v642
    %2335 = vmatprep.subr.mxu0 0.0
    %2336 = vmatpush1.msra.mxu0 %v639
    %2337 = vmatprep.subr.mxu0 0.0
    %2338 = vmatpush1.msra.mxu0 %v636
    %2339 = vmatprep.subr.mxu0 0.0
    %2340 = vmatpush1.msra.mxu0 %v633
    %2341 = vmatprep.subr.mxu0 0.0
    %2342 = vmatpush1.msra.mxu0 %v630
    %2343 = vmatprep.subr.mxu0 0.0
    %2344 = vmatpush2.msra.mxu0 0.0
    %2345 = vmatprep.subr.mxu0 0.0
    %2346 = vmatpush2.msra.mxu0 0.0
    %2347 = vmatprep.subr.mxu0 0.0
    %2348 = vmatpush2.msra.mxu0 0.0
    %2349 = vmatprep.subr.mxu0 0.0
    %2350 = vmatpush2.msra.mxu0 0.0
    %2351 = vmatprep.subr.mxu0 0.0
    %2352 = vmatpush2.msra.mxu0 0.0
    %2353 = vmatprep.subr.mxu0 0.0
    %2354 = vmatpush2.msra.mxu0 0.0
    %2355 = vmatprep.subr.mxu0 0.0
    %2356 = vmatpush2.msra.mxu0 0.0
    %2357 = vmatprep.subr.mxu0 0.0
    %2358 = vmatpush2.msra.mxu0 0.0
    %2359 = vmatprep.subr.mxu0 0.0
    %2360 = vmatpush2.msra.mxu0 0.0
    %2361 = vmatprep.subr.mxu0 0.0
    %2362 = vmatpush2.msra.mxu0 0.0
    %2363 = vmatprep.subr.mxu0 0.0
    %2364 = vmatpush2.msra.mxu0 0.0
    %2365 = vmatprep.subr.mxu0 0.0
    %2366 = vmatpush2.msra.mxu0 0.0
    %2367 = vmatprep.subr.mxu0 0.0
    %2368 = vmatpush2.msra.mxu0 0.0
    %2369 = vmatprep.subr.mxu0 0.0
    %2370 = vmatpush2.msra.mxu0 0.0
    %2371 = vmatprep.subr.mxu0 0.0
    %2372 = vmatpush2.msra.mxu0 0.0
    %2373 = vmatprep.subr.mxu0 0.0
    %2374 = vmatpush2.msra.mxu0 0.0
    %2375 = vmatprep.mubr.f32.mxu0 0.0
    %2376 = vmatmul.mubr.f32.gmra.mxu0 %v2239
    %v2377 = vpop.f32.mrf.mxu0
    %v2378 = vadd.f32 %v410, %v2377
    %v2379 = vpop.f32.mrf.mxu0
    %2380 = vdwg.mxu0
    %2381 = vmatprep.subr.mxu0 %v594
    %2382 = vmatpush1.msra.mxu0 %v593
    %2383 = vmatprep.subr.mxu0 %v591
    %2384 = vmatpush1.msra.mxu0 %v590
    %2385 = vmatprep.subr.mxu0 %v588
    %2386 = vmatpush1.msra.mxu0 %v587
    %2387 = vmatprep.subr.mxu0 %v585
    %2388 = vmatpush1.msra.mxu0 %v584
    %2389 = vmatprep.subr.mxu0 %v582
    %2390 = vmatpush1.msra.mxu0 %v581
    %2391 = vmatprep.subr.mxu0 %v579
    %2392 = vmatpush1.msra.mxu0 %v578
    %2393 = vmatprep.subr.mxu0 %v576
    %2394 = vmatpush1.msra.mxu0 %v575
    %2395 = vmatprep.subr.mxu0 %v573
    %2396 = vmatpush1.msra.mxu0 %v572
    %2397 = vmatprep.subr.mxu0 %v570
    %2398 = vmatpush1.msra.mxu0 %v569
    %2399 = vmatprep.subr.mxu0 %v567
    %2400 = vmatpush1.msra.mxu0 %v566
    %2401 = vmatprep.subr.mxu0 %v564
    %2402 = vmatpush1.msra.mxu0 %v563
    %2403 = vmatprep.subr.mxu0 %v561
    %2404 = vmatpush1.msra.mxu0 %v560
    %2405 = vmatprep.subr.mxu0 %v558
    %2406 = vmatpush1.msra.mxu0 %v557
    %2407 = vmatprep.subr.mxu0 %v555
    %2408 = vmatpush1.msra.mxu0 %v554
    %2409 = vmatprep.subr.mxu0 %v552
    %2410 = vmatpush1.msra.mxu0 %v551
    %2411 = vmatprep.subr.mxu0 %v549
    %2412 = vmatpush1.msra.mxu0 %v548
    %2413 = vmatprep.subr.mxu0 0.0
    %2414 = vmatpush2.msra.mxu0 0.0
    %2415 = vmatprep.subr.mxu0 0.0
    %2416 = vmatpush2.msra.mxu0 0.0
    %2417 = vmatprep.subr.mxu0 0.0
    %2418 = vmatpush2.msra.mxu0 0.0
    %2419 = vmatprep.subr.mxu0 0.0
    %2420 = vmatpush2.msra.mxu0 0.0
    %2421 = vmatprep.subr.mxu0 0.0
    %2422 = vmatpush2.msra.mxu0 0.0
    %2423 = vmatprep.subr.mxu0 0.0
    %2424 = vmatpush2.msra.mxu0 0.0
    %2425 = vmatprep.subr.mxu0 0.0
    %2426 = vmatpush2.msra.mxu0 0.0
    %2427 = vmatprep.subr.mxu0 0.0
    %2428 = vmatpush2.msra.mxu0 0.0
    %2429 = vmatprep.subr.mxu0 0.0
    %2430 = vmatpush2.msra.mxu0 0.0
    %2431 = vmatprep.subr.mxu0 0.0
    %2432 = vmatpush2.msra.mxu0 0.0
    %2433 = vmatprep.subr.mxu0 0.0
    %2434 = vmatpush2.msra.mxu0 0.0
    %2435 = vmatprep.subr.mxu0 0.0
    %2436 = vmatpush2.msra.mxu0 0.0
    %2437 = vmatprep.subr.mxu0 0.0
    %2438 = vmatpush2.msra.mxu0 0.0
    %2439 = vmatprep.subr.mxu0 0.0
    %2440 = vmatpush2.msra.mxu0 0.0
    %2441 = vmatprep.subr.mxu0 0.0
    %2442 = vmatpush2.msra.mxu0 0.0
    %2443 = vmatprep.subr.mxu0 0.0
    %2444 = vmatpush2.msra.mxu0 0.0
    %2445 = vmatprep.mubr.f32.mxu0 0.0
    %2446 = vmatmul.mubr.f32.gmra.mxu0 %v2076
    %v2447 = vpop.f32.mrf.mxu0
    %v2448 = vadd.f32 0.0, %v2447
    %v2449 = vpop.f32.mrf.mxu0
    %v2450 = vadd.f32 0.0, %v2449
    %2451 = vdwg.mxu0
    %2452 = vmatprep.subr.mxu0 0.0
    %2453 = vmatpush1.msra.mxu0 %v595
    %2454 = vmatprep.subr.mxu0 0.0
    %2455 = vmatpush1.msra.mxu0 %v592
    %2456 = vmatprep.subr.mxu0 0.0
    %2457 = vmatpush1.msra.mxu0 %v589
    %2458 = vmatprep.subr.mxu0 0.0
    %2459 = vmatpush1.msra.mxu0 %v586
    %2460 = vmatprep.subr.mxu0 0.0
    %2461 = vmatpush1.msra.mxu0 %v583
    %2462 = vmatprep.subr.mxu0 0.0
    %2463 = vmatpush1.msra.mxu0 %v580
    %2464 = vmatprep.subr.mxu0 0.0
    %2465 = vmatpush1.msra.mxu0 %v577
    %2466 = vmatprep.subr.mxu0 0.0
    %2467 = vmatpush1.msra.mxu0 %v574
    %2468 = vmatprep.subr.mxu0 0.0
    %2469 = vmatpush1.msra.mxu0 %v571
    %2470 = vmatprep.subr.mxu0 0.0
    %2471 = vmatpush1.msra.mxu0 %v568
    %2472 = vmatprep.subr.mxu0 0.0
    %2473 = vmatpush1.msra.mxu0 %v565
    %2474 = vmatprep.subr.mxu0 0.0
    %2475 = vmatpush1.msra.mxu0 %v562
    %2476 = vmatprep.subr.mxu0 0.0
    %2477 = vmatpush1.msra.mxu0 %v559
    %2478 = vmatprep.subr.mxu0 0.0
    %2479 = vmatpush1.msra.mxu0 %v556
    %2480 = vmatprep.subr.mxu0 0.0
    %2481 = vmatpush1.msra.mxu0 %v553
    %2482 = vmatprep.subr.mxu0 0.0
    %2483 = vmatpush1.msra.mxu0 %v550
    %2484 = vmatprep.subr.mxu0 0.0
    %2485 = vmatpush2.msra.mxu0 0.0
    %2486 = vmatprep.subr.mxu0 0.0
    %2487 = vmatpush2.msra.mxu0 0.0
    %2488 = vmatprep.subr.mxu0 0.0
    %2489 = vmatpush2.msra.mxu0 0.0
    %2490 = vmatprep.subr.mxu0 0.0
    %2491 = vmatpush2.msra.mxu0 0.0
    %2492 = vmatprep.subr.mxu0 0.0
    %2493 = vmatpush2.msra.mxu0 0.0
    %2494 = vmatprep.subr.mxu0 0.0
    %2495 = vmatpush2.msra.mxu0 0.0
    %2496 = vmatprep.subr.mxu0 0.0
    %2497 = vmatpush2.msra.mxu0 0.0
    %2498 = vmatprep.subr.mxu0 0.0
    %2499 = vmatpush2.msra.mxu0 0.0
    %2500 = vmatprep.subr.mxu0 0.0
    %2501 = vmatpush2.msra.mxu0 0.0
    %2502 = vmatprep.subr.mxu0 0.0
    %2503 = vmatpush2.msra.mxu0 0.0
    %2504 = vmatprep.subr.mxu0 0.0
    %2505 = vmatpush2.msra.mxu0 0.0
    %2506 = vmatprep.subr.mxu0 0.0
    %2507 = vmatpush2.msra.mxu0 0.0
    %2508 = vmatprep.subr.mxu0 0.0
    %2509 = vmatpush2.msra.mxu0 0.0
    %2510 = vmatprep.subr.mxu0 0.0
    %2511 = vmatpush2.msra.mxu0 0.0
    %2512 = vmatprep.subr.mxu0 0.0
    %2513 = vmatpush2.msra.mxu0 0.0
    %2514 = vmatprep.subr.mxu0 0.0
    %2515 = vmatpush2.msra.mxu0 0.0
    %2516 = vmatprep.mubr.f32.mxu0 0.0
    %2517 = vmatmul.mubr.f32.gmra.mxu0 %v2076
    %v2518 = vpop.f32.mrf.mxu0
    %v2519 = vadd.f32 0.0, %v2518
    %v2520 = vpop.f32.mrf.mxu0
    %2521 = vdwg.mxu0
    %v2522 = vadd.f32 %v2307, %v2448
    %v2523 = vxor.u32 %v2522, 2147483648
    %v2524 = vmul.f32 %v2523, 1.442695
    %v2525 = vpow.pop %v2524
    %v2526 = vadd.f32 %v2525, 1.0
    %v2527 = vrcp.pop %v2526
    %v2528 = vmul.f32 1.0, %v2527
    %v2529 = vadd.f32 %v2309, %v2450
    %v2530 = vxor.u32 %v2529, 2147483648
    %v2531 = vmul.f32 %v2530, 1.442695
    %v2532 = vpow.pop %v2531
    %v2533 = vadd.f32 %v2532, 1.0
    %v2534 = vrcp.pop %v2533
    %v2535 = vmul.f32 1.0, %v2534
    %v2536 = vadd.f32 %v2519, %v426
    %v2537 = vmul.f32 %v2528, %v2536
    %v2538 = vadd.f32 %v2378, %v2537
    %v2539 = vtanh.pop %v2538
    %v2540 = vsub.f32 1.0, %v2535
    %v2541 = vmul.f32 %v2540, %v2539
    %v2542 = vmul.f32 %v2535, %v2076
    %v2543 = vadd.f32 %v2541, %v2542
    %2544 = vmatprep.subr.mxu0 %v514
    %2545 = vmatpush1.msra.mxu0 %v513
    %2546 = vmatprep.subr.mxu0 %v511
    %2547 = vmatpush1.msra.mxu0 %v510
    %2548 = vmatprep.subr.mxu0 %v508
    %2549 = vmatpush1.msra.mxu0 %v507
    %2550 = vmatprep.subr.mxu0 %v505
    %2551 = vmatpush1.msra.mxu0 %v504
    %2552 = vmatprep.subr.mxu0 %v502
    %2553 = vmatpush1.msra.mxu0 %v501
    %2554 = vmatprep.subr.mxu0 %v499
    %2555 = vmatpush1.msra.mxu0 %v498
    %2556 = vmatprep.subr.mxu0 %v496
    %2557 = vmatpush1.msra.mxu0 %v495
    %2558 = vmatprep.subr.mxu0 %v493
    %2559 = vmatpush1.msra.mxu0 %v492
    %2560 = vmatprep.subr.mxu0 %v490
    %2561 = vmatpush1.msra.mxu0 %v489
    %2562 = vmatprep.subr.mxu0 %v487
    %2563 = vmatpush1.msra.mxu0 %v486
    %2564 = vmatprep.subr.mxu0 %v484
    %2565 = vmatpush1.msra.mxu0 %v483
    %2566 = vmatprep.subr.mxu0 %v481
    %2567 = vmatpush1.msra.mxu0 %v480
    %2568 = vmatprep.subr.mxu0 %v478
    %2569 = vmatpush1.msra.mxu0 %v477
    %2570 = vmatprep.subr.mxu0 %v475
    %2571 = vmatpush1.msra.mxu0 %v474
    %2572 = vmatprep.subr.mxu0 %v472
    %2573 = vmatpush1.msra.mxu0 %v471
    %2574 = vmatprep.subr.mxu0 %v469
    %2575 = vmatpush1.msra.mxu0 %v468
    %2576 = vmatprep.subr.mxu0 0.0
    %2577 = vmatpush2.msra.mxu0 0.0
    %2578 = vmatprep.subr.mxu0 0.0
    %2579 = vmatpush2.msra.mxu0 0.0
    %2580 = vmatprep.subr.mxu0 0.0
    %2581 = vmatpush2.msra.mxu0 0.0
    %2582 = vmatprep.subr.mxu0 0.0
    %2583 = vmatpush2.msra.mxu0 0.0
    %2584 = vmatprep.subr.mxu0 0.0
    %2585 = vmatpush2.msra.mxu0 0.0
    %2586 = vmatprep.subr.mxu0 0.0
    %2587 = vmatpush2.msra.mxu0 0.0
    %2588 = vmatprep.subr.mxu0 0.0
    %2589 = vmatpush2.msra.mxu0 0.0
    %2590 = vmatprep.subr.mxu0 0.0
    %2591 = vmatpush2.msra.mxu0 0.0
    %2592 = vmatprep.subr.mxu0 0.0
    %2593 = vmatpush2.msra.mxu0 0.0
    %2594 = vmatprep.subr.mxu0 0.0
    %2595 = vmatpush2.msra.mxu0 0.0
    %2596 = vmatprep.subr.mxu0 0.0
    %2597 = vmatpush2.msra.mxu0 0.0
    %2598 = vmatprep.subr.mxu0 0.0
    %2599 = vmatpush2.msra.mxu0 0.0
    %2600 = vmatprep.subr.mxu0 0.0
    %2601 = vmatpush2.msra.mxu0 0.0
    %2602 = vmatprep.subr.mxu0 0.0
    %2603 = vmatpush2.msra.mxu0 0.0
    %2604 = vmatprep.subr.mxu0 0.0
    %2605 = vmatpush2.msra.mxu0 0.0
    %2606 = vmatprep.subr.mxu0 0.0
    %2607 = vmatpush2.msra.mxu0 0.0
    %2608 = vmatprep.mubr.f32.mxu0 0.0
    %2609 = vmatmul.mubr.f32.gmra.mxu0 %v2239
    %v2610 = vpop.f32.mrf.mxu0
    %v2611 = vadd.f32 0.0, %v2610
    %v2612 = vpop.f32.mrf.mxu0
    %v2613 = vadd.f32 0.0, %v2612
    %2614 = vdwg.mxu0
    %2615 = vmatprep.subr.mxu0 0.0
    %2616 = vmatpush1.msra.mxu0 %v515
    %2617 = vmatprep.subr.mxu0 0.0
    %2618 = vmatpush1.msra.mxu0 %v512
    %2619 = vmatprep.subr.mxu0 0.0
    %2620 = vmatpush1.msra.mxu0 %v509
    %2621 = vmatprep.subr.mxu0 0.0
    %2622 = vmatpush1.msra.mxu0 %v506
    %2623 = vmatprep.subr.mxu0 0.0
    %2624 = vmatpush1.msra.mxu0 %v503
    %2625 = vmatprep.subr.mxu0 0.0
    %2626 = vmatpush1.msra.mxu0 %v500
    %2627 = vmatprep.subr.mxu0 0.0
    %2628 = vmatpush1.msra.mxu0 %v497
    %2629 = vmatprep.subr.mxu0 0.0
    %2630 = vmatpush1.msra.mxu0 %v494
    %2631 = vmatprep.subr.mxu0 0.0
    %2632 = vmatpush1.msra.mxu0 %v491
    %2633 = vmatprep.subr.mxu0 0.0
    %2634 = vmatpush1.msra.mxu0 %v488
    %2635 = vmatprep.subr.mxu0 0.0
    %2636 = vmatpush1.msra.mxu0 %v485
    %2637 = vmatprep.subr.mxu0 0.0
    %2638 = vmatpush1.msra.mxu0 %v482
    %2639 = vmatprep.subr.mxu0 0.0
    %2640 = vmatpush1.msra.mxu0 %v479
    %2641 = vmatprep.subr.mxu0 0.0
    %2642 = vmatpush1.msra.mxu0 %v476
    %2643 = vmatprep.subr.mxu0 0.0
    %2644 = vmatpush1.msra.mxu0 %v473
    %2645 = vmatprep.subr.mxu0 0.0
    %2646 = vmatpush1.msra.mxu0 %v470
    %2647 = vmatprep.subr.mxu0 0.0
    %2648 = vmatpush2.msra.mxu0 0.0
    %2649 = vmatprep.subr.mxu0 0.0
    %2650 = vmatpush2.msra.mxu0 0.0
    %2651 = vmatprep.subr.mxu0 0.0
    %2652 = vmatpush2.msra.mxu0 0.0
    %2653 = vmatprep.subr.mxu0 0.0
    %2654 = vmatpush2.msra.mxu0 0.0
    %2655 = vmatprep.subr.mxu0 0.0
    %2656 = vmatpush2.msra.mxu0 0.0
    %2657 = vmatprep.subr.mxu0 0.0
    %2658 = vmatpush2.msra.mxu0 0.0
    %2659 = vmatprep.subr.mxu0 0.0
    %2660 = vmatpush2.msra.mxu0 0.0
    %2661 = vmatprep.subr.mxu0 0.0
    %2662 = vmatpush2.msra.mxu0 0.0
    %2663 = vmatprep.subr.mxu0 0.0
    %2664 = vmatpush2.msra.mxu0 0.0
    %2665 = vmatprep.subr.mxu0 0.0
    %2666 = vmatpush2.msra.mxu0 0.0
    %2667 = vmatprep.subr.mxu0 0.0
    %2668 = vmatpush2.msra.mxu0 0.0
    %2669 = vmatprep.subr.mxu0 0.0
    %2670 = vmatpush2.msra.mxu0 0.0
    %2671 = vmatprep.subr.mxu0 0.0
    %2672 = vmatpush2.msra.mxu0 0.0
    %2673 = vmatprep.subr.mxu0 0.0
    %2674 = vmatpush2.msra.mxu0 0.0
    %2675 = vmatprep.subr.mxu0 0.0
    %2676 = vmatpush2.msra.mxu0 0.0
    %2677 = vmatprep.subr.mxu0 0.0
    %2678 = vmatpush2.msra.mxu0 0.0
    %2679 = vmatprep.mubr.f32.mxu0 0.0
    %2680 = vmatmul.mubr.f32.gmra.mxu0 %v2239
    %v2681 = vpop.f32.mrf.mxu0
    %v2682 = vadd.f32 0.0, %v2681
    %v2683 = vpop.f32.mrf.mxu0
    %2684 = vdwg.mxu0
    %v2685 = vadd.f32 %v270, %v2611
    %v2686 = vxor.u32 %v2685, 2147483648
    %v2687 = vmul.f32 %v2686, 1.442695
    %v2688 = vpow.pop %v2687
    %v2689 = vadd.f32 %v2688, 1.0
    %v2690 = vrcp.pop %v2689
    %v2691 = vmul.f32 1.0, %v2690
    %v2692 = vadd.f32 %v272, %v2613
    %v2693 = vxor.u32 %v2692, 2147483648
    %v2694 = vmul.f32 %v2693, 1.442695
    %v2695 = vpow.pop %v2694
    %v2696 = vadd.f32 %v2695, 1.0
    %v2697 = vrcp.pop %v2696
    %v2698 = vmul.f32 1.0, %v2697
    %v2699 = vadd.f32 %v2682, %v419
    %v2700 = vmul.f32 %v2691, %v2699
    %v2701 = vadd.f32 %v379, %v2700
    %v2702 = vtanh.pop %v2701
    %v2703 = vsub.f32 1.0, %v2698
    %v2704 = vmul.f32 %v2703, %v2702
    %v2705 = vmul.f32 %v2698, %v2239
    %v2706 = vadd.f32 %v2704, %v2705
    %2707 = vmatprep.subr.mxu0 %v674
    %2708 = vmatpush1.msra.mxu0 %v673
    %2709 = vmatprep.subr.mxu0 %v671
    %2710 = vmatpush1.msra.mxu0 %v670
    %2711 = vmatprep.subr.mxu0 %v668
    %2712 = vmatpush1.msra.mxu0 %v667
    %2713 = vmatprep.subr.mxu0 %v665
    %2714 = vmatpush1.msra.mxu0 %v664
    %2715 = vmatprep.subr.mxu0 %v662
    %2716 = vmatpush1.msra.mxu0 %v661
    %2717 = vmatprep.subr.mxu0 %v659
    %2718 = vmatpush1.msra.mxu0 %v658
    %2719 = vmatprep.subr.mxu0 %v656
    %2720 = vmatpush1.msra.mxu0 %v655
    %2721 = vmatprep.subr.mxu0 %v653
    %2722 = vmatpush1.msra.mxu0 %v652
    %2723 = vmatprep.subr.mxu0 %v650
    %2724 = vmatpush1.msra.mxu0 %v649
    %2725 = vmatprep.subr.mxu0 %v647
    %2726 = vmatpush1.msra.mxu0 %v646
    %2727 = vmatprep.subr.mxu0 %v644
    %2728 = vmatpush1.msra.mxu0 %v643
    %2729 = vmatprep.subr.mxu0 %v641
    %2730 = vmatpush1.msra.mxu0 %v640
    %2731 = vmatprep.subr.mxu0 %v638
    %2732 = vmatpush1.msra.mxu0 %v637
    %2733 = vmatprep.subr.mxu0 %v635
    %2734 = vmatpush1.msra.mxu0 %v634
    %2735 = vmatprep.subr.mxu0 %v632
    %2736 = vmatpush1.msra.mxu0 %v631
    %2737 = vmatprep.subr.mxu0 %v629
    %2738 = vmatpush1.msra.mxu0 %v628
    %2739 = vmatprep.subr.mxu0 0.0
    %2740 = vmatpush2.msra.mxu0 0.0
    %2741 = vmatprep.subr.mxu0 0.0
    %2742 = vmatpush2.msra.mxu0 0.0
    %2743 = vmatprep.subr.mxu0 0.0
    %2744 = vmatpush2.msra.mxu0 0.0
    %2745 = vmatprep.subr.mxu0 0.0
    %2746 = vmatpush2.msra.mxu0 0.0
    %2747 = vmatprep.subr.mxu0 0.0
    %2748 = vmatpush2.msra.mxu0 0.0
    %2749 = vmatprep.subr.mxu0 0.0
    %2750 = vmatpush2.msra.mxu0 0.0
    %2751 = vmatprep.subr.mxu0 0.0
    %2752 = vmatpush2.msra.mxu0 0.0
    %2753 = vmatprep.subr.mxu0 0.0
    %2754 = vmatpush2.msra.mxu0 0.0
    %2755 = vmatprep.subr.mxu0 0.0
    %2756 = vmatpush2.msra.mxu0 0.0
    %2757 = vmatprep.subr.mxu0 0.0
    %2758 = vmatpush2.msra.mxu0 0.0
    %2759 = vmatprep.subr.mxu0 0.0
    %2760 = vmatpush2.msra.mxu0 0.0
    %2761 = vmatprep.subr.mxu0 0.0
    %2762 = vmatpush2.msra.mxu0 0.0
    %2763 = vmatprep.subr.mxu0 0.0
    %2764 = vmatpush2.msra.mxu0 0.0
    %2765 = vmatprep.subr.mxu0 0.0
    %2766 = vmatpush2.msra.mxu0 0.0
    %2767 = vmatprep.subr.mxu0 0.0
    %2768 = vmatpush2.msra.mxu0 0.0
    %2769 = vmatprep.subr.mxu0 0.0
    %2770 = vmatpush2.msra.mxu0 0.0
    %2771 = vmatprep.mubr.f32.mxu0 0.0
    %2772 = vmatmul.mubr.f32.gmra.mxu0 %v2706
    %v2773 = vpop.f32.mrf.mxu0
    %v2774 = vadd.f32 %v402, %v2773
    %v2775 = vpop.f32.mrf.mxu0
    %v2776 = vadd.f32 %v406, %v2775
    %2777 = vdwg.mxu0
    %2778 = vmatprep.subr.mxu0 0.0
    %2779 = vmatpush1.msra.mxu0 %v675
    %2780 = vmatprep.subr.mxu0 0.0
    %2781 = vmatpush1.msra.mxu0 %v672
    %2782 = vmatprep.subr.mxu0 0.0
    %2783 = vmatpush1.msra.mxu0 %v669
    %2784 = vmatprep.subr.mxu0 0.0
    %2785 = vmatpush1.msra.mxu0 %v666
    %2786 = vmatprep.subr.mxu0 0.0
    %2787 = vmatpush1.msra.mxu0 %v663
    %2788 = vmatprep.subr.mxu0 0.0
    %2789 = vmatpush1.msra.mxu0 %v660
    %2790 = vmatprep.subr.mxu0 0.0
    %2791 = vmatpush1.msra.mxu0 %v657
    %2792 = vmatprep.subr.mxu0 0.0
    %2793 = vmatpush1.msra.mxu0 %v654
    %2794 = vmatprep.subr.mxu0 0.0
    %2795 = vmatpush1.msra.mxu0 %v651
    %2796 = vmatprep.subr.mxu0 0.0
    %2797 = vmatpush1.msra.mxu0 %v648
    %2798 = vmatprep.subr.mxu0 0.0
    %2799 = vmatpush1.msra.mxu0 %v645
    %2800 = vmatprep.subr.mxu0 0.0
    %2801 = vmatpush1.msra.mxu0 %v642
    %2802 = vmatprep.subr.mxu0 0.0
    %2803 = vmatpush1.msra.mxu0 %v639
    %2804 = vmatprep.subr.mxu0 0.0
    %2805 = vmatpush1.msra.mxu0 %v636
    %2806 = vmatprep.subr.mxu0 0.0
    %2807 = vmatpush1.msra.mxu0 %v633
    %2808 = vmatprep.subr.mxu0 0.0
    %2809 = vmatpush1.msra.mxu0 %v630
    %2810 = vmatprep.subr.mxu0 0.0
    %2811 = vmatpush2.msra.mxu0 0.0
    %2812 = vmatprep.subr.mxu0 0.0
    %2813 = vmatpush2.msra.mxu0 0.0
    %2814 = vmatprep.subr.mxu0 0.0
    %2815 = vmatpush2.msra.mxu0 0.0
    %2816 = vmatprep.subr.mxu0 0.0
    %2817 = vmatpush2.msra.mxu0 0.0
    %2818 = vmatprep.subr.mxu0 0.0
    %2819 = vmatpush2.msra.mxu0 0.0
    %2820 = vmatprep.subr.mxu0 0.0
    %2821 = vmatpush2.msra.mxu0 0.0
    %2822 = vmatprep.subr.mxu0 0.0
    %2823 = vmatpush2.msra.mxu0 0.0
    %2824 = vmatprep.subr.mxu0 0.0
    %2825 = vmatpush2.msra.mxu0 0.0
    %2826 = vmatprep.subr.mxu0 0.0
    %2827 = vmatpush2.msra.mxu0 0.0
    %2828 = vmatprep.subr.mxu0 0.0
    %2829 = vmatpush2.msra.mxu0 0.0
    %2830 = vmatprep.subr.mxu0 0.0
    %2831 = vmatpush2.msra.mxu0 0.0
    %2832 = vmatprep.subr.mxu0 0.0
    %2833 = vmatpush2.msra.mxu0 0.0
    %2834 = vmatprep.subr.mxu0 0.0
    %2835 = vmatpush2.msra.mxu0 0.0
    %2836 = vmatprep.subr.mxu0 0.0
    %2837 = vmatpush2.msra.mxu0 0.0
    %2838 = vmatprep.subr.mxu0 0.0
    %2839 = vmatpush2.msra.mxu0 0.0
    %2840 = vmatprep.subr.mxu0 0.0
    %2841 = vmatpush2.msra.mxu0 0.0
    %2842 = vmatprep.mubr.f32.mxu0 0.0
    %2843 = vmatmul.mubr.f32.gmra.mxu0 %v2706
    %v2844 = vpop.f32.mrf.mxu0
    %v2845 = vadd.f32 %v410, %v2844
    %v2846 = vpop.f32.mrf.mxu0
    %2847 = vdwg.mxu0
    %2848 = vmatprep.subr.mxu0 %v594
    %2849 = vmatpush1.msra.mxu0 %v593
    %2850 = vmatprep.subr.mxu0 %v591
    %2851 = vmatpush1.msra.mxu0 %v590
    %2852 = vmatprep.subr.mxu0 %v588
    %2853 = vmatpush1.msra.mxu0 %v587
    %2854 = vmatprep.subr.mxu0 %v585
    %2855 = vmatpush1.msra.mxu0 %v584
    %2856 = vmatprep.subr.mxu0 %v582
    %2857 = vmatpush1.msra.mxu0 %v581
    %2858 = vmatprep.subr.mxu0 %v579
    %2859 = vmatpush1.msra.mxu0 %v578
    %2860 = vmatprep.subr.mxu0 %v576
    %2861 = vmatpush1.msra.mxu0 %v575
    %2862 = vmatprep.subr.mxu0 %v573
    %2863 = vmatpush1.msra.mxu0 %v572
    %2864 = vmatprep.subr.mxu0 %v570
    %2865 = vmatpush1.msra.mxu0 %v569
    %2866 = vmatprep.subr.mxu0 %v567
    %2867 = vmatpush1.msra.mxu0 %v566
    %2868 = vmatprep.subr.mxu0 %v564
    %2869 = vmatpush1.msra.mxu0 %v563
    %2870 = vmatprep.subr.mxu0 %v561
    %2871 = vmatpush1.msra.mxu0 %v560
    %2872 = vmatprep.subr.mxu0 %v558
    %2873 = vmatpush1.msra.mxu0 %v557
    %2874 = vmatprep.subr.mxu0 %v555
    %2875 = vmatpush1.msra.mxu0 %v554
    %2876 = vmatprep.subr.mxu0 %v552
    %2877 = vmatpush1.msra.mxu0 %v551
    %2878 = vmatprep.subr.mxu0 %v549
    %2879 = vmatpush1.msra.mxu0 %v548
    %2880 = vmatprep.subr.mxu0 0.0
    %2881 = vmatpush2.msra.mxu0 0.0
    %2882 = vmatprep.subr.mxu0 0.0
    %2883 = vmatpush2.msra.mxu0 0.0
    %2884 = vmatprep.subr.mxu0 0.0
    %2885 = vmatpush2.msra.mxu0 0.0
    %2886 = vmatprep.subr.mxu0 0.0
    %2887 = vmatpush2.msra.mxu0 0.0
    %2888 = vmatprep.subr.mxu0 0.0
    %2889 = vmatpush2.msra.mxu0 0.0
    %2890 = vmatprep.subr.mxu0 0.0
    %2891 = vmatpush2.msra.mxu0 0.0
    %2892 = vmatprep.subr.mxu0 0.0
    %2893 = vmatpush2.msra.mxu0 0.0
    %2894 = vmatprep.subr.mxu0 0.0
    %2895 = vmatpush2.msra.mxu0 0.0
    %2896 = vmatprep.subr.mxu0 0.0
    %2897 = vmatpush2.msra.mxu0 0.0
    %2898 = vmatprep.subr.mxu0 0.0
    %2899 = vmatpush2.msra.mxu0 0.0
    %2900 = vmatprep.subr.mxu0 0.0
    %2901 = vmatpush2.msra.mxu0 0.0
    %2902 = vmatprep.subr.mxu0 0.0
    %2903 = vmatpush2.msra.mxu0 0.0
    %2904 = vmatprep.subr.mxu0 0.0
    %2905 = vmatpush2.msra.mxu0 0.0
    %2906 = vmatprep.subr.mxu0 0.0
    %2907 = vmatpush2.msra.mxu0 0.0
    %2908 = vmatprep.subr.mxu0 0.0
    %2909 = vmatpush2.msra.mxu0 0.0
    %2910 = vmatprep.subr.mxu0 0.0
    %2911 = vmatpush2.msra.mxu0 0.0
    %2912 = vmatprep.mubr.f32.mxu0 0.0
    %2913 = vmatmul.mubr.f32.gmra.mxu0 %v2543
    %v2914 = vpop.f32.mrf.mxu0
    %v2915 = vadd.f32 0.0, %v2914
    %v2916 = vpop.f32.mrf.mxu0
    %v2917 = vadd.f32 0.0, %v2916
    %2918 = vdwg.mxu0
    %2919 = vmatprep.subr.mxu0 0.0
    %2920 = vmatpush1.msra.mxu0 %v595
    %2921 = vmatprep.subr.mxu0 0.0
    %2922 = vmatpush1.msra.mxu0 %v592
    %2923 = vmatprep.subr.mxu0 0.0
    %2924 = vmatpush1.msra.mxu0 %v589
    %2925 = vmatprep.subr.mxu0 0.0
    %2926 = vmatpush1.msra.mxu0 %v586
    %2927 = vmatprep.subr.mxu0 0.0
    %2928 = vmatpush1.msra.mxu0 %v583
    %2929 = vmatprep.subr.mxu0 0.0
    %2930 = vmatpush1.msra.mxu0 %v580
    %2931 = vmatprep.subr.mxu0 0.0
    %2932 = vmatpush1.msra.mxu0 %v577
    %2933 = vmatprep.subr.mxu0 0.0
    %2934 = vmatpush1.msra.mxu0 %v574
    %2935 = vmatprep.subr.mxu0 0.0
    %2936 = vmatpush1.msra.mxu0 %v571
    %2937 = vmatprep.subr.mxu0 0.0
    %2938 = vmatpush1.msra.mxu0 %v568
    %2939 = vmatprep.subr.mxu0 0.0
    %2940 = vmatpush1.msra.mxu0 %v565
    %2941 = vmatprep.subr.mxu0 0.0
    %2942 = vmatpush1.msra.mxu0 %v562
    %2943 = vmatprep.subr.mxu0 0.0
    %2944 = vmatpush1.msra.mxu0 %v559
    %2945 = vmatprep.subr.mxu0 0.0
    %2946 = vmatpush1.msra.mxu0 %v556
    %2947 = vmatprep.subr.mxu0 0.0
    %2948 = vmatpush1.msra.mxu0 %v553
    %2949 = vmatprep.subr.mxu0 0.0
    %2950 = vmatpush1.msra.mxu0 %v550
    %2951 = vmatprep.subr.mxu0 0.0
    %2952 = vmatpush2.msra.mxu0 0.0
    %2953 = vmatprep.subr.mxu0 0.0
    %2954 = vmatpush2.msra.mxu0 0.0
    %2955 = vmatprep.subr.mxu0 0.0
    %2956 = vmatpush2.msra.mxu0 0.0
    %2957 = vmatprep.subr.mxu0 0.0
    %2958 = vmatpush2.msra.mxu0 0.0
    %2959 = vmatprep.subr.mxu0 0.0
    %2960 = vmatpush2.msra.mxu0 0.0
    %2961 = vmatprep.subr.mxu0 0.0
    %2962 = vmatpush2.msra.mxu0 0.0
    %2963 = vmatprep.subr.mxu0 0.0
    %2964 = vmatpush2.msra.mxu0 0.0
    %2965 = vmatprep.subr.mxu0 0.0
    %2966 = vmatpush2.msra.mxu0 0.0
    %2967 = vmatprep.subr.mxu0 0.0
    %2968 = vmatpush2.msra.mxu0 0.0
    %2969 = vmatprep.subr.mxu0 0.0
    %2970 = vmatpush2.msra.mxu0 0.0
    %2971 = vmatprep.subr.mxu0 0.0
    %2972 = vmatpush2.msra.mxu0 0.0
    %2973 = vmatprep.subr.mxu0 0.0
    %2974 = vmatpush2.msra.mxu0 0.0
    %2975 = vmatprep.subr.mxu0 0.0
    %2976 = vmatpush2.msra.mxu0 0.0
    %2977 = vmatprep.subr.mxu0 0.0
    %2978 = vmatpush2.msra.mxu0 0.0
    %2979 = vmatprep.subr.mxu0 0.0
    %2980 = vmatpush2.msra.mxu0 0.0
    %2981 = vmatprep.subr.mxu0 0.0
    %2982 = vmatpush2.msra.mxu0 0.0
    %2983 = vmatprep.mubr.f32.mxu0 0.0
    %2984 = vmatmul.mubr.f32.gmra.mxu0 %v2543
    %v2985 = vpop.f32.mrf.mxu0
    %v2986 = vadd.f32 0.0, %v2985
    %v2987 = vpop.f32.mrf.mxu0
    %2988 = vdwg.mxu0
    %v2989 = vadd.f32 %v2774, %v2915
    %v2990 = vxor.u32 %v2989, 2147483648
    %v2991 = vmul.f32 %v2990, 1.442695
    %v2992 = vpow.pop %v2991
    %v2993 = vadd.f32 %v2992, 1.0
    %v2994 = vrcp.pop %v2993
    %v2995 = vmul.f32 1.0, %v2994
    %v2996 = vadd.f32 %v2776, %v2917
    %v2997 = vxor.u32 %v2996, 2147483648
    %v2998 = vmul.f32 %v2997, 1.442695
    %v2999 = vpow.pop %v2998
    %v3000 = vadd.f32 %v2999, 1.0
    %v3001 = vrcp.pop %v3000
    %v3002 = vmul.f32 1.0, %v3001
    %v3003 = vadd.f32 %v2986, %v426
    %v3004 = vmul.f32 %v2995, %v3003
    %v3005 = vadd.f32 %v2845, %v3004
    %v3006 = vtanh.pop %v3005
    %v3007 = vsub.f32 1.0, %v3002
    %v3008 = vmul.f32 %v3007, %v3006
    %v3009 = vmul.f32 %v3002, %v2543
    %v3010 = vadd.f32 %v3008, %v3009
    %3011 = vmatprep.subr.mxu0 %v514
    %3012 = vmatpush1.msra.mxu0 %v513
    %3013 = vmatprep.subr.mxu0 %v511
    %3014 = vmatpush1.msra.mxu0 %v510
    %3015 = vmatprep.subr.mxu0 %v508
    %3016 = vmatpush1.msra.mxu0 %v507
    %3017 = vmatprep.subr.mxu0 %v505
    %3018 = vmatpush1.msra.mxu0 %v504
    %3019 = vmatprep.subr.mxu0 %v502
    %3020 = vmatpush1.msra.mxu0 %v501
    %3021 = vmatprep.subr.mxu0 %v499
    %3022 = vmatpush1.msra.mxu0 %v498
    %3023 = vmatprep.subr.mxu0 %v496
    %3024 = vmatpush1.msra.mxu0 %v495
    %3025 = vmatprep.subr.mxu0 %v493
    %3026 = vmatpush1.msra.mxu0 %v492
    %3027 = vmatprep.subr.mxu0 %v490
    %3028 = vmatpush1.msra.mxu0 %v489
    %3029 = vmatprep.subr.mxu0 %v487
    %3030 = vmatpush1.msra.mxu0 %v486
    %3031 = vmatprep.subr.mxu0 %v484
    %3032 = vmatpush1.msra.mxu0 %v483
    %3033 = vmatprep.subr.mxu0 %v481
    %3034 = vmatpush1.msra.mxu0 %v480
    %3035 = vmatprep.subr.mxu0 %v478
    %3036 = vmatpush1.msra.mxu0 %v477
    %3037 = vmatprep.subr.mxu0 %v475
    %3038 = vmatpush1.msra.mxu0 %v474
    %3039 = vmatprep.subr.mxu0 %v472
    %3040 = vmatpush1.msra.mxu0 %v471
    %3041 = vmatprep.subr.mxu0 %v469
    %3042 = vmatpush1.msra.mxu0 %v468
    %3043 = vmatprep.subr.mxu0 0.0
    %3044 = vmatpush2.msra.mxu0 0.0
    %3045 = vmatprep.subr.mxu0 0.0
    %3046 = vmatpush2.msra.mxu0 0.0
    %3047 = vmatprep.subr.mxu0 0.0
    %3048 = vmatpush2.msra.mxu0 0.0
    %3049 = vmatprep.subr.mxu0 0.0
    %3050 = vmatpush2.msra.mxu0 0.0
    %3051 = vmatprep.subr.mxu0 0.0
    %3052 = vmatpush2.msra.mxu0 0.0
    %3053 = vmatprep.subr.mxu0 0.0
    %3054 = vmatpush2.msra.mxu0 0.0
    %3055 = vmatprep.subr.mxu0 0.0
    %3056 = vmatpush2.msra.mxu0 0.0
    %3057 = vmatprep.subr.mxu0 0.0
    %3058 = vmatpush2.msra.mxu0 0.0
    %3059 = vmatprep.subr.mxu0 0.0
    %3060 = vmatpush2.msra.mxu0 0.0
    %3061 = vmatprep.subr.mxu0 0.0
    %3062 = vmatpush2.msra.mxu0 0.0
    %3063 = vmatprep.subr.mxu0 0.0
    %3064 = vmatpush2.msra.mxu0 0.0
    %3065 = vmatprep.subr.mxu0 0.0
    %3066 = vmatpush2.msra.mxu0 0.0
    %3067 = vmatprep.subr.mxu0 0.0
    %3068 = vmatpush2.msra.mxu0 0.0
    %3069 = vmatprep.subr.mxu0 0.0
    %3070 = vmatpush2.msra.mxu0 0.0
    %3071 = vmatprep.subr.mxu0 0.0
    %3072 = vmatpush2.msra.mxu0 0.0
    %3073 = vmatprep.subr.mxu0 0.0
    %3074 = vmatpush2.msra.mxu0 0.0
    %3075 = vmatprep.mubr.f32.mxu0 0.0
    %3076 = vmatmul.mubr.f32.gmra.mxu0 %v2706
    %v3077 = vpop.f32.mrf.mxu0
    %v3078 = vadd.f32 0.0, %v3077
    %v3079 = vpop.f32.mrf.mxu0
    %v3080 = vadd.f32 0.0, %v3079
    %3081 = vdwg.mxu0
    %3082 = vmatprep.subr.mxu0 0.0
    %3083 = vmatpush1.msra.mxu0 %v515
    %3084 = vmatprep.subr.mxu0 0.0
    %3085 = vmatpush1.msra.mxu0 %v512
    %3086 = vmatprep.subr.mxu0 0.0
    %3087 = vmatpush1.msra.mxu0 %v509
    %3088 = vmatprep.subr.mxu0 0.0
    %3089 = vmatpush1.msra.mxu0 %v506
    %3090 = vmatprep.subr.mxu0 0.0
    %3091 = vmatpush1.msra.mxu0 %v503
    %3092 = vmatprep.subr.mxu0 0.0
    %3093 = vmatpush1.msra.mxu0 %v500
    %3094 = vmatprep.subr.mxu0 0.0
    %3095 = vmatpush1.msra.mxu0 %v497
    %3096 = vmatprep.subr.mxu0 0.0
    %3097 = vmatpush1.msra.mxu0 %v494
    %3098 = vmatprep.subr.mxu0 0.0
    %3099 = vmatpush1.msra.mxu0 %v491
    %3100 = vmatprep.subr.mxu0 0.0
    %3101 = vmatpush1.msra.mxu0 %v488
    %3102 = vmatprep.subr.mxu0 0.0
    %3103 = vmatpush1.msra.mxu0 %v485
    %3104 = vmatprep.subr.mxu0 0.0
    %3105 = vmatpush1.msra.mxu0 %v482
    %3106 = vmatprep.subr.mxu0 0.0
    %3107 = vmatpush1.msra.mxu0 %v479
    %3108 = vmatprep.subr.mxu0 0.0
    %3109 = vmatpush1.msra.mxu0 %v476
    %3110 = vmatprep.subr.mxu0 0.0
    %3111 = vmatpush1.msra.mxu0 %v473
    %3112 = vmatprep.subr.mxu0 0.0
    %3113 = vmatpush1.msra.mxu0 %v470
    %3114 = vmatprep.subr.mxu0 0.0
    %3115 = vmatpush2.msra.mxu0 0.0
    %3116 = vmatprep.subr.mxu0 0.0
    %3117 = vmatpush2.msra.mxu0 0.0
    %3118 = vmatprep.subr.mxu0 0.0
    %3119 = vmatpush2.msra.mxu0 0.0
    %3120 = vmatprep.subr.mxu0 0.0
    %3121 = vmatpush2.msra.mxu0 0.0
    %3122 = vmatprep.subr.mxu0 0.0
    %3123 = vmatpush2.msra.mxu0 0.0
    %3124 = vmatprep.subr.mxu0 0.0
    %3125 = vmatpush2.msra.mxu0 0.0
    %3126 = vmatprep.subr.mxu0 0.0
    %3127 = vmatpush2.msra.mxu0 0.0
    %3128 = vmatprep.subr.mxu0 0.0
    %3129 = vmatpush2.msra.mxu0 0.0
    %3130 = vmatprep.subr.mxu0 0.0
    %3131 = vmatpush2.msra.mxu0 0.0
    %3132 = vmatprep.subr.mxu0 0.0
    %3133 = vmatpush2.msra.mxu0 0.0
    %3134 = vmatprep.subr.mxu0 0.0
    %3135 = vmatpush2.msra.mxu0 0.0
    %3136 = vmatprep.subr.mxu0 0.0
    %3137 = vmatpush2.msra.mxu0 0.0
    %3138 = vmatprep.subr.mxu0 0.0
    %3139 = vmatpush2.msra.mxu0 0.0
    %3140 = vmatprep.subr.mxu0 0.0
    %3141 = vmatpush2.msra.mxu0 0.0
    %3142 = vmatprep.subr.mxu0 0.0
    %3143 = vmatpush2.msra.mxu0 0.0
    %3144 = vmatprep.subr.mxu0 0.0
    %3145 = vmatpush2.msra.mxu0 0.0
    %3146 = vmatprep.mubr.f32.mxu0 0.0
    %3147 = vmatmul.mubr.f32.gmra.mxu0 %v2706
    %v3148 = vpop.f32.mrf.mxu0
    %v3149 = vadd.f32 0.0, %v3148
    %v3150 = vpop.f32.mrf.mxu0
    %3151 = vdwg.mxu0
    %v3152 = vadd.f32 %v276, %v3078
    %v3153 = vxor.u32 %v3152, 2147483648
    %v3154 = vmul.f32 %v3153, 1.442695
    %v3155 = vpow.pop %v3154
    %v3156 = vadd.f32 %v3155, 1.0
    %v3157 = vrcp.pop %v3156
    %v3158 = vmul.f32 1.0, %v3157
    %v3159 = vadd.f32 %v278, %v3080
    %v3160 = vxor.u32 %v3159, 2147483648
    %v3161 = vmul.f32 %v3160, 1.442695
    %v3162 = vpow.pop %v3161
    %v3163 = vadd.f32 %v3162, 1.0
    %v3164 = vrcp.pop %v3163
    %v3165 = vmul.f32 1.0, %v3164
    %v3166 = vadd.f32 %v3149, %v419
    %v3167 = vmul.f32 %v3158, %v3166
    %v3168 = vadd.f32 %v384, %v3167
    %v3169 = vtanh.pop %v3168
    %v3170 = vsub.f32 1.0, %v3165
    %v3171 = vmul.f32 %v3170, %v3169
    %v3172 = vmul.f32 %v3165, %v2706
    %v3173 = vadd.f32 %v3171, %v3172
    %3174 = vmatprep.subr.mxu0 %v674
    %3175 = vmatpush1.msra.mxu0 %v673
    %3176 = vmatprep.subr.mxu0 %v671
    %3177 = vmatpush1.msra.mxu0 %v670
    %3178 = vmatprep.subr.mxu0 %v668
    %3179 = vmatpush1.msra.mxu0 %v667
    %3180 = vmatprep.subr.mxu0 %v665
    %3181 = vmatpush1.msra.mxu0 %v664
    %3182 = vmatprep.subr.mxu0 %v662
    %3183 = vmatpush1.msra.mxu0 %v661
    %3184 = vmatprep.subr.mxu0 %v659
    %3185 = vmatpush1.msra.mxu0 %v658
    %3186 = vmatprep.subr.mxu0 %v656
    %3187 = vmatpush1.msra.mxu0 %v655
    %3188 = vmatprep.subr.mxu0 %v653
    %3189 = vmatpush1.msra.mxu0 %v652
    %3190 = vmatprep.subr.mxu0 %v650
    %3191 = vmatpush1.msra.mxu0 %v649
    %3192 = vmatprep.subr.mxu0 %v647
    %3193 = vmatpush1.msra.mxu0 %v646
    %3194 = vmatprep.subr.mxu0 %v644
    %3195 = vmatpush1.msra.mxu0 %v643
    %3196 = vmatprep.subr.mxu0 %v641
    %3197 = vmatpush1.msra.mxu0 %v640
    %3198 = vmatprep.subr.mxu0 %v638
    %3199 = vmatpush1.msra.mxu0 %v637
    %3200 = vmatprep.subr.mxu0 %v635
    %3201 = vmatpush1.msra.mxu0 %v634
    %3202 = vmatprep.subr.mxu0 %v632
    %3203 = vmatpush1.msra.mxu0 %v631
    %3204 = vmatprep.subr.mxu0 %v629
    %3205 = vmatpush1.msra.mxu0 %v628
    %3206 = vmatprep.subr.mxu0 0.0
    %3207 = vmatpush2.msra.mxu0 0.0
    %3208 = vmatprep.subr.mxu0 0.0
    %3209 = vmatpush2.msra.mxu0 0.0
    %3210 = vmatprep.subr.mxu0 0.0
    %3211 = vmatpush2.msra.mxu0 0.0
    %3212 = vmatprep.subr.mxu0 0.0
    %3213 = vmatpush2.msra.mxu0 0.0
    %3214 = vmatprep.subr.mxu0 0.0
    %3215 = vmatpush2.msra.mxu0 0.0
    %3216 = vmatprep.subr.mxu0 0.0
    %3217 = vmatpush2.msra.mxu0 0.0
    %3218 = vmatprep.subr.mxu0 0.0
    %3219 = vmatpush2.msra.mxu0 0.0
    %3220 = vmatprep.subr.mxu0 0.0
    %3221 = vmatpush2.msra.mxu0 0.0
    %3222 = vmatprep.subr.mxu0 0.0
    %3223 = vmatpush2.msra.mxu0 0.0
    %3224 = vmatprep.subr.mxu0 0.0
    %3225 = vmatpush2.msra.mxu0 0.0
    %3226 = vmatprep.subr.mxu0 0.0
    %3227 = vmatpush2.msra.mxu0 0.0
    %3228 = vmatprep.subr.mxu0 0.0
    %3229 = vmatpush2.msra.mxu0 0.0
    %3230 = vmatprep.subr.mxu0 0.0
    %3231 = vmatpush2.msra.mxu0 0.0
    %3232 = vmatprep.subr.mxu0 0.0
    %3233 = vmatpush2.msra.mxu0 0.0
    %3234 = vmatprep.subr.mxu0 0.0
    %3235 = vmatpush2.msra.mxu0 0.0
    %3236 = vmatprep.subr.mxu0 0.0
    %3237 = vmatpush2.msra.mxu0 0.0
    %3238 = vmatprep.mubr.f32.mxu0 0.0
    %3239 = vmatmul.mubr.f32.gmra.mxu0 %v3173
    %v3240 = vpop.f32.mrf.mxu0
    %v3241 = vadd.f32 %v402, %v3240
    %v3242 = vpop.f32.mrf.mxu0
    %v3243 = vadd.f32 %v406, %v3242
    %3244 = vdwg.mxu0
    %3245 = vmatprep.subr.mxu0 0.0
    %3246 = vmatpush1.msra.mxu0 %v675
    %3247 = vmatprep.subr.mxu0 0.0
    %3248 = vmatpush1.msra.mxu0 %v672
    %3249 = vmatprep.subr.mxu0 0.0
    %3250 = vmatpush1.msra.mxu0 %v669
    %3251 = vmatprep.subr.mxu0 0.0
    %3252 = vmatpush1.msra.mxu0 %v666
    %3253 = vmatprep.subr.mxu0 0.0
    %3254 = vmatpush1.msra.mxu0 %v663
    %3255 = vmatprep.subr.mxu0 0.0
    %3256 = vmatpush1.msra.mxu0 %v660
    %3257 = vmatprep.subr.mxu0 0.0
    %3258 = vmatpush1.msra.mxu0 %v657
    %3259 = vmatprep.subr.mxu0 0.0
    %3260 = vmatpush1.msra.mxu0 %v654
    %3261 = vmatprep.subr.mxu0 0.0
    %3262 = vmatpush1.msra.mxu0 %v651
    %3263 = vmatprep.subr.mxu0 0.0
    %3264 = vmatpush1.msra.mxu0 %v648
    %3265 = vmatprep.subr.mxu0 0.0
    %3266 = vmatpush1.msra.mxu0 %v645
    %3267 = vmatprep.subr.mxu0 0.0
    %3268 = vmatpush1.msra.mxu0 %v642
    %3269 = vmatprep.subr.mxu0 0.0
    %3270 = vmatpush1.msra.mxu0 %v639
    %3271 = vmatprep.subr.mxu0 0.0
    %3272 = vmatpush1.msra.mxu0 %v636
    %3273 = vmatprep.subr.mxu0 0.0
    %3274 = vmatpush1.msra.mxu0 %v633
    %3275 = vmatprep.subr.mxu0 0.0
    %3276 = vmatpush1.msra.mxu0 %v630
    %3277 = vmatprep.subr.mxu0 0.0
    %3278 = vmatpush2.msra.mxu0 0.0
    %3279 = vmatprep.subr.mxu0 0.0
    %3280 = vmatpush2.msra.mxu0 0.0
    %3281 = vmatprep.subr.mxu0 0.0
    %3282 = vmatpush2.msra.mxu0 0.0
    %3283 = vmatprep.subr.mxu0 0.0
    %3284 = vmatpush2.msra.mxu0 0.0
    %3285 = vmatprep.subr.mxu0 0.0
    %3286 = vmatpush2.msra.mxu0 0.0
    %3287 = vmatprep.subr.mxu0 0.0
    %3288 = vmatpush2.msra.mxu0 0.0
    %3289 = vmatprep.subr.mxu0 0.0
    %3290 = vmatpush2.msra.mxu0 0.0
    %3291 = vmatprep.subr.mxu0 0.0
    %3292 = vmatpush2.msra.mxu0 0.0
    %3293 = vmatprep.subr.mxu0 0.0
    %3294 = vmatpush2.msra.mxu0 0.0
    %3295 = vmatprep.subr.mxu0 0.0
    %3296 = vmatpush2.msra.mxu0 0.0
    %3297 = vmatprep.subr.mxu0 0.0
    %3298 = vmatpush2.msra.mxu0 0.0
    %3299 = vmatprep.subr.mxu0 0.0
    %3300 = vmatpush2.msra.mxu0 0.0
    %3301 = vmatprep.subr.mxu0 0.0
    %3302 = vmatpush2.msra.mxu0 0.0
    %3303 = vmatprep.subr.mxu0 0.0
    %3304 = vmatpush2.msra.mxu0 0.0
    %3305 = vmatprep.subr.mxu0 0.0
    %3306 = vmatpush2.msra.mxu0 0.0
    %3307 = vmatprep.subr.mxu0 0.0
    %3308 = vmatpush2.msra.mxu0 0.0
    %3309 = vmatprep.mubr.f32.mxu0 0.0
    %3310 = vmatmul.mubr.f32.gmra.mxu0 %v3173
    %v3311 = vpop.f32.mrf.mxu0
    %v3312 = vadd.f32 %v410, %v3311
    %v3313 = vpop.f32.mrf.mxu0
    %3314 = vdwg.mxu0
    %3315 = vmatprep.subr.mxu0 %v594
    %3316 = vmatpush1.msra.mxu0 %v593
    %3317 = vmatprep.subr.mxu0 %v591
    %3318 = vmatpush1.msra.mxu0 %v590
    %3319 = vmatprep.subr.mxu0 %v588
    %3320 = vmatpush1.msra.mxu0 %v587
    %3321 = vmatprep.subr.mxu0 %v585
    %3322 = vmatpush1.msra.mxu0 %v584
    %3323 = vmatprep.subr.mxu0 %v582
    %3324 = vmatpush1.msra.mxu0 %v581
    %3325 = vmatprep.subr.mxu0 %v579
    %3326 = vmatpush1.msra.mxu0 %v578
    %3327 = vmatprep.subr.mxu0 %v576
    %3328 = vmatpush1.msra.mxu0 %v575
    %3329 = vmatprep.subr.mxu0 %v573
    %3330 = vmatpush1.msra.mxu0 %v572
    %3331 = vmatprep.subr.mxu0 %v570
    %3332 = vmatpush1.msra.mxu0 %v569
    %3333 = vmatprep.subr.mxu0 %v567
    %3334 = vmatpush1.msra.mxu0 %v566
    %3335 = vmatprep.subr.mxu0 %v564
    %3336 = vmatpush1.msra.mxu0 %v563
    %3337 = vmatprep.subr.mxu0 %v561
    %3338 = vmatpush1.msra.mxu0 %v560
    %3339 = vmatprep.subr.mxu0 %v558
    %3340 = vmatpush1.msra.mxu0 %v557
    %3341 = vmatprep.subr.mxu0 %v555
    %3342 = vmatpush1.msra.mxu0 %v554
    %3343 = vmatprep.subr.mxu0 %v552
    %3344 = vmatpush1.msra.mxu0 %v551
    %3345 = vmatprep.subr.mxu0 %v549
    %3346 = vmatpush1.msra.mxu0 %v548
    %3347 = vmatprep.subr.mxu0 0.0
    %3348 = vmatpush2.msra.mxu0 0.0
    %3349 = vmatprep.subr.mxu0 0.0
    %3350 = vmatpush2.msra.mxu0 0.0
    %3351 = vmatprep.subr.mxu0 0.0
    %3352 = vmatpush2.msra.mxu0 0.0
    %3353 = vmatprep.subr.mxu0 0.0
    %3354 = vmatpush2.msra.mxu0 0.0
    %3355 = vmatprep.subr.mxu0 0.0
    %3356 = vmatpush2.msra.mxu0 0.0
    %3357 = vmatprep.subr.mxu0 0.0
    %3358 = vmatpush2.msra.mxu0 0.0
    %3359 = vmatprep.subr.mxu0 0.0
    %3360 = vmatpush2.msra.mxu0 0.0
    %3361 = vmatprep.subr.mxu0 0.0
    %3362 = vmatpush2.msra.mxu0 0.0
    %3363 = vmatprep.subr.mxu0 0.0
    %3364 = vmatpush2.msra.mxu0 0.0
    %3365 = vmatprep.subr.mxu0 0.0
    %3366 = vmatpush2.msra.mxu0 0.0
    %3367 = vmatprep.subr.mxu0 0.0
    %3368 = vmatpush2.msra.mxu0 0.0
    %3369 = vmatprep.subr.mxu0 0.0
    %3370 = vmatpush2.msra.mxu0 0.0
    %3371 = vmatprep.subr.mxu0 0.0
    %3372 = vmatpush2.msra.mxu0 0.0
    %3373 = vmatprep.subr.mxu0 0.0
    %3374 = vmatpush2.msra.mxu0 0.0
    %3375 = vmatprep.subr.mxu0 0.0
    %3376 = vmatpush2.msra.mxu0 0.0
    %3377 = vmatprep.subr.mxu0 0.0
    %3378 = vmatpush2.msra.mxu0 0.0
    %3379 = vmatprep.mubr.f32.mxu0 0.0
    %3380 = vmatmul.mubr.f32.gmra.mxu0 %v3010
    %v3381 = vpop.f32.mrf.mxu0
    %v3382 = vadd.f32 0.0, %v3381
    %v3383 = vpop.f32.mrf.mxu0
    %v3384 = vadd.f32 0.0, %v3383
    %3385 = vdwg.mxu0
    %3386 = vmatprep.subr.mxu0 0.0
    %3387 = vmatpush1.msra.mxu0 %v595
    %3388 = vmatprep.subr.mxu0 0.0
    %3389 = vmatpush1.msra.mxu0 %v592
    %3390 = vmatprep.subr.mxu0 0.0
    %3391 = vmatpush1.msra.mxu0 %v589
    %3392 = vmatprep.subr.mxu0 0.0
    %3393 = vmatpush1.msra.mxu0 %v586
    %3394 = vmatprep.subr.mxu0 0.0
    %3395 = vmatpush1.msra.mxu0 %v583
    %3396 = vmatprep.subr.mxu0 0.0
    %3397 = vmatpush1.msra.mxu0 %v580
    %3398 = vmatprep.subr.mxu0 0.0
    %3399 = vmatpush1.msra.mxu0 %v577
    %3400 = vmatprep.subr.mxu0 0.0
    %3401 = vmatpush1.msra.mxu0 %v574
    %3402 = vmatprep.subr.mxu0 0.0
    %3403 = vmatpush1.msra.mxu0 %v571
    %3404 = vmatprep.subr.mxu0 0.0
    %3405 = vmatpush1.msra.mxu0 %v568
    %3406 = vmatprep.subr.mxu0 0.0
    %3407 = vmatpush1.msra.mxu0 %v565
    %3408 = vmatprep.subr.mxu0 0.0
    %3409 = vmatpush1.msra.mxu0 %v562
    %3410 = vmatprep.subr.mxu0 0.0
    %3411 = vmatpush1.msra.mxu0 %v559
    %3412 = vmatprep.subr.mxu0 0.0
    %3413 = vmatpush1.msra.mxu0 %v556
    %3414 = vmatprep.subr.mxu0 0.0
    %3415 = vmatpush1.msra.mxu0 %v553
    %3416 = vmatprep.subr.mxu0 0.0
    %3417 = vmatpush1.msra.mxu0 %v550
    %3418 = vmatprep.subr.mxu0 0.0
    %3419 = vmatpush2.msra.mxu0 0.0
    %3420 = vmatprep.subr.mxu0 0.0
    %3421 = vmatpush2.msra.mxu0 0.0
    %3422 = vmatprep.subr.mxu0 0.0
    %3423 = vmatpush2.msra.mxu0 0.0
    %3424 = vmatprep.subr.mxu0 0.0
    %3425 = vmatpush2.msra.mxu0 0.0
    %3426 = vmatprep.subr.mxu0 0.0
    %3427 = vmatpush2.msra.mxu0 0.0
    %3428 = vmatprep.subr.mxu0 0.0
    %3429 = vmatpush2.msra.mxu0 0.0
    %3430 = vmatprep.subr.mxu0 0.0
    %3431 = vmatpush2.msra.mxu0 0.0
    %3432 = vmatprep.subr.mxu0 0.0
    %3433 = vmatpush2.msra.mxu0 0.0
    %3434 = vmatprep.subr.mxu0 0.0
    %3435 = vmatpush2.msra.mxu0 0.0
    %3436 = vmatprep.subr.mxu0 0.0
    %3437 = vmatpush2.msra.mxu0 0.0
    %3438 = vmatprep.subr.mxu0 0.0
    %3439 = vmatpush2.msra.mxu0 0.0
    %3440 = vmatprep.subr.mxu0 0.0
    %3441 = vmatpush2.msra.mxu0 0.0
    %3442 = vmatprep.subr.mxu0 0.0
    %3443 = vmatpush2.msra.mxu0 0.0
    %3444 = vmatprep.subr.mxu0 0.0
    %3445 = vmatpush2.msra.mxu0 0.0
    %3446 = vmatprep.subr.mxu0 0.0
    %3447 = vmatpush2.msra.mxu0 0.0
    %3448 = vmatprep.subr.mxu0 0.0
    %3449 = vmatpush2.msra.mxu0 0.0
    %3450 = vmatprep.mubr.f32.mxu0 0.0
    %3451 = vmatmul.mubr.f32.gmra.mxu0 %v3010
    %v3452 = vpop.f32.mrf.mxu0
    %v3453 = vadd.f32 0.0, %v3452
    %v3454 = vpop.f32.mrf.mxu0
    %3455 = vdwg.mxu0
    %v3456 = vadd.f32 %v3241, %v3382
    %v3457 = vxor.u32 %v3456, 2147483648
    %v3458 = vmul.f32 %v3457, 1.442695
    %v3459 = vpow.pop %v3458
    %v3460 = vadd.f32 %v3459, 1.0
    %v3461 = vrcp.pop %v3460
    %v3462 = vmul.f32 1.0, %v3461
    %v3463 = vadd.f32 %v3243, %v3384
    %v3464 = vxor.u32 %v3463, 2147483648
    %v3465 = vmul.f32 %v3464, 1.442695
    %v3466 = vpow.pop %v3465
    %v3467 = vadd.f32 %v3466, 1.0
    %v3468 = vrcp.pop %v3467
    %v3469 = vmul.f32 1.0, %v3468
    %v3470 = vadd.f32 %v3453, %v426
    %v3471 = vmul.f32 %v3462, %v3470
    %v3472 = vadd.f32 %v3312, %v3471
    %v3473 = vtanh.pop %v3472
    %v3474 = vsub.f32 1.0, %v3469
    %v3475 = vmul.f32 %v3474, %v3473
    %v3476 = vmul.f32 %v3469, %v3010
    %v3477 = vadd.f32 %v3475, %v3476
    %3478 = vmatprep.subr.mxu0 %v514
    %3479 = vmatpush1.msra.mxu0 %v513
    %3480 = vmatprep.subr.mxu0 %v511
    %3481 = vmatpush1.msra.mxu0 %v510
    %3482 = vmatprep.subr.mxu0 %v508
    %3483 = vmatpush1.msra.mxu0 %v507
    %3484 = vmatprep.subr.mxu0 %v505
    %3485 = vmatpush1.msra.mxu0 %v504
    %3486 = vmatprep.subr.mxu0 %v502
    %3487 = vmatpush1.msra.mxu0 %v501
    %3488 = vmatprep.subr.mxu0 %v499
    %3489 = vmatpush1.msra.mxu0 %v498
    %3490 = vmatprep.subr.mxu0 %v496
    %3491 = vmatpush1.msra.mxu0 %v495
    %3492 = vmatprep.subr.mxu0 %v493
    %3493 = vmatpush1.msra.mxu0 %v492
    %3494 = vmatprep.subr.mxu0 %v490
    %3495 = vmatpush1.msra.mxu0 %v489
    %3496 = vmatprep.subr.mxu0 %v487
    %3497 = vmatpush1.msra.mxu0 %v486
    %3498 = vmatprep.subr.mxu0 %v484
    %3499 = vmatpush1.msra.mxu0 %v483
    %3500 = vmatprep.subr.mxu0 %v481
    %3501 = vmatpush1.msra.mxu0 %v480
    %3502 = vmatprep.subr.mxu0 %v478
    %3503 = vmatpush1.msra.mxu0 %v477
    %3504 = vmatprep.subr.mxu0 %v475
    %3505 = vmatpush1.msra.mxu0 %v474
    %3506 = vmatprep.subr.mxu0 %v472
    %3507 = vmatpush1.msra.mxu0 %v471
    %3508 = vmatprep.subr.mxu0 %v469
    %3509 = vmatpush1.msra.mxu0 %v468
    %3510 = vmatprep.subr.mxu0 0.0
    %3511 = vmatpush2.msra.mxu0 0.0
    %3512 = vmatprep.subr.mxu0 0.0
    %3513 = vmatpush2.msra.mxu0 0.0
    %3514 = vmatprep.subr.mxu0 0.0
    %3515 = vmatpush2.msra.mxu0 0.0
    %3516 = vmatprep.subr.mxu0 0.0
    %3517 = vmatpush2.msra.mxu0 0.0
    %3518 = vmatprep.subr.mxu0 0.0
    %3519 = vmatpush2.msra.mxu0 0.0
    %3520 = vmatprep.subr.mxu0 0.0
    %3521 = vmatpush2.msra.mxu0 0.0
    %3522 = vmatprep.subr.mxu0 0.0
    %3523 = vmatpush2.msra.mxu0 0.0
    %3524 = vmatprep.subr.mxu0 0.0
    %3525 = vmatpush2.msra.mxu0 0.0
    %3526 = vmatprep.subr.mxu0 0.0
    %3527 = vmatpush2.msra.mxu0 0.0
    %3528 = vmatprep.subr.mxu0 0.0
    %3529 = vmatpush2.msra.mxu0 0.0
    %3530 = vmatprep.subr.mxu0 0.0
    %3531 = vmatpush2.msra.mxu0 0.0
    %3532 = vmatprep.subr.mxu0 0.0
    %3533 = vmatpush2.msra.mxu0 0.0
    %3534 = vmatprep.subr.mxu0 0.0
    %3535 = vmatpush2.msra.mxu0 0.0
    %3536 = vmatprep.subr.mxu0 0.0
    %3537 = vmatpush2.msra.mxu0 0.0
    %3538 = vmatprep.subr.mxu0 0.0
    %3539 = vmatpush2.msra.mxu0 0.0
    %3540 = vmatprep.subr.mxu0 0.0
    %3541 = vmatpush2.msra.mxu0 0.0
    %3542 = vmatprep.mubr.f32.mxu0 0.0
    %3543 = vmatmul.mubr.f32.gmra.mxu0 %v3173
    %v3544 = vpop.f32.mrf.mxu0
    %v3545 = vadd.f32 0.0, %v3544
    %v3546 = vpop.f32.mrf.mxu0
    %v3547 = vadd.f32 0.0, %v3546
    %3548 = vdwg.mxu0
    %3549 = vmatprep.subr.mxu0 0.0
    %3550 = vmatpush1.msra.mxu0 %v515
    %3551 = vmatprep.subr.mxu0 0.0
    %3552 = vmatpush1.msra.mxu0 %v512
    %3553 = vmatprep.subr.mxu0 0.0
    %3554 = vmatpush1.msra.mxu0 %v509
    %3555 = vmatprep.subr.mxu0 0.0
    %3556 = vmatpush1.msra.mxu0 %v506
    %3557 = vmatprep.subr.mxu0 0.0
    %3558 = vmatpush1.msra.mxu0 %v503
    %3559 = vmatprep.subr.mxu0 0.0
    %3560 = vmatpush1.msra.mxu0 %v500
    %3561 = vmatprep.subr.mxu0 0.0
    %3562 = vmatpush1.msra.mxu0 %v497
    %3563 = vmatprep.subr.mxu0 0.0
    %3564 = vmatpush1.msra.mxu0 %v494
    %3565 = vmatprep.subr.mxu0 0.0
    %3566 = vmatpush1.msra.mxu0 %v491
    %3567 = vmatprep.subr.mxu0 0.0
    %3568 = vmatpush1.msra.mxu0 %v488
    %3569 = vmatprep.subr.mxu0 0.0
    %3570 = vmatpush1.msra.mxu0 %v485
    %3571 = vmatprep.subr.mxu0 0.0
    %3572 = vmatpush1.msra.mxu0 %v482
    %3573 = vmatprep.subr.mxu0 0.0
    %3574 = vmatpush1.msra.mxu0 %v479
    %3575 = vmatprep.subr.mxu0 0.0
    %3576 = vmatpush1.msra.mxu0 %v476
    %3577 = vmatprep.subr.mxu0 0.0
    %3578 = vmatpush1.msra.mxu0 %v473
    %3579 = vmatprep.subr.mxu0 0.0
    %3580 = vmatpush1.msra.mxu0 %v470
    %3581 = vmatprep.subr.mxu0 0.0
    %3582 = vmatpush2.msra.mxu0 0.0
    %3583 = vmatprep.subr.mxu0 0.0
    %3584 = vmatpush2.msra.mxu0 0.0
    %3585 = vmatprep.subr.mxu0 0.0
    %3586 = vmatpush2.msra.mxu0 0.0
    %3587 = vmatprep.subr.mxu0 0.0
    %3588 = vmatpush2.msra.mxu0 0.0
    %3589 = vmatprep.subr.mxu0 0.0
    %3590 = vmatpush2.msra.mxu0 0.0
    %3591 = vmatprep.subr.mxu0 0.0
    %3592 = vmatpush2.msra.mxu0 0.0
    %3593 = vmatprep.subr.mxu0 0.0
    %3594 = vmatpush2.msra.mxu0 0.0
    %3595 = vmatprep.subr.mxu0 0.0
    %3596 = vmatpush2.msra.mxu0 0.0
    %3597 = vmatprep.subr.mxu0 0.0
    %3598 = vmatpush2.msra.mxu0 0.0
    %3599 = vmatprep.subr.mxu0 0.0
    %3600 = vmatpush2.msra.mxu0 0.0
    %3601 = vmatprep.subr.mxu0 0.0
    %3602 = vmatpush2.msra.mxu0 0.0
    %3603 = vmatprep.subr.mxu0 0.0
    %3604 = vmatpush2.msra.mxu0 0.0
    %3605 = vmatprep.subr.mxu0 0.0
    %3606 = vmatpush2.msra.mxu0 0.0
    %3607 = vmatprep.subr.mxu0 0.0
    %3608 = vmatpush2.msra.mxu0 0.0
    %3609 = vmatprep.subr.mxu0 0.0
    %3610 = vmatpush2.msra.mxu0 0.0
    %3611 = vmatprep.subr.mxu0 0.0
    %3612 = vmatpush2.msra.mxu0 0.0
    %3613 = vmatprep.mubr.f32.mxu0 0.0
    %3614 = vmatmul.mubr.f32.gmra.mxu0 %v3173
    %v3615 = vpop.f32.mrf.mxu0
    %v3616 = vadd.f32 0.0, %v3615
    %v3617 = vpop.f32.mrf.mxu0
    %3618 = vdwg.mxu0
    %v3619 = vadd.f32 %v282, %v3545
    %v3620 = vxor.u32 %v3619, 2147483648
    %v3621 = vmul.f32 %v3620, 1.442695
    %v3622 = vpow.pop %v3621
    %v3623 = vadd.f32 %v3622, 1.0
    %v3624 = vrcp.pop %v3623
    %v3625 = vmul.f32 1.0, %v3624
    %v3626 = vadd.f32 %v284, %v3547
    %v3627 = vxor.u32 %v3626, 2147483648
    %v3628 = vmul.f32 %v3627, 1.442695
    %v3629 = vpow.pop %v3628
    %v3630 = vadd.f32 %v3629, 1.0
    %v3631 = vrcp.pop %v3630
    %v3632 = vmul.f32 1.0, %v3631
    %v3633 = vadd.f32 %v3616, %v419
    %v3634 = vmul.f32 %v3625, %v3633
    %v3635 = vadd.f32 %v389, %v3634
    %v3636 = vtanh.pop %v3635
    %v3637 = vsub.f32 1.0, %v3632
    %v3638 = vmul.f32 %v3637, %v3636
    %v3639 = vmul.f32 %v3632, %v3173
    %v3640 = vadd.f32 %v3638, %v3639
    %3641 = vmatprep.subr.mxu0 %v674
    %3642 = vmatpush1.msra.mxu0 %v673
    %3643 = vmatprep.subr.mxu0 %v671
    %3644 = vmatpush1.msra.mxu0 %v670
    %3645 = vmatprep.subr.mxu0 %v668
    %3646 = vmatpush1.msra.mxu0 %v667
    %3647 = vmatprep.subr.mxu0 %v665
    %3648 = vmatpush1.msra.mxu0 %v664
    %3649 = vmatprep.subr.mxu0 %v662
    %3650 = vmatpush1.msra.mxu0 %v661
    %3651 = vmatprep.subr.mxu0 %v659
    %3652 = vmatpush1.msra.mxu0 %v658
    %3653 = vmatprep.subr.mxu0 %v656
    %3654 = vmatpush1.msra.mxu0 %v655
    %3655 = vmatprep.subr.mxu0 %v653
    %3656 = vmatpush1.msra.mxu0 %v652
    %3657 = vmatprep.subr.mxu0 %v650
    %3658 = vmatpush1.msra.mxu0 %v649
    %3659 = vmatprep.subr.mxu0 %v647
    %3660 = vmatpush1.msra.mxu0 %v646
    %3661 = vmatprep.subr.mxu0 %v644
    %3662 = vmatpush1.msra.mxu0 %v643
    %3663 = vmatprep.subr.mxu0 %v641
    %3664 = vmatpush1.msra.mxu0 %v640
    %3665 = vmatprep.subr.mxu0 %v638
    %3666 = vmatpush1.msra.mxu0 %v637
    %3667 = vmatprep.subr.mxu0 %v635
    %3668 = vmatpush1.msra.mxu0 %v634
    %3669 = vmatprep.subr.mxu0 %v632
    %3670 = vmatpush1.msra.mxu0 %v631
    %3671 = vmatprep.subr.mxu0 %v629
    %3672 = vmatpush1.msra.mxu0 %v628
    %3673 = vmatprep.subr.mxu0 0.0
    %3674 = vmatpush2.msra.mxu0 0.0
    %3675 = vmatprep.subr.mxu0 0.0
    %3676 = vmatpush2.msra.mxu0 0.0
    %3677 = vmatprep.subr.mxu0 0.0
    %3678 = vmatpush2.msra.mxu0 0.0
    %3679 = vmatprep.subr.mxu0 0.0
    %3680 = vmatpush2.msra.mxu0 0.0
    %3681 = vmatprep.subr.mxu0 0.0
    %3682 = vmatpush2.msra.mxu0 0.0
    %3683 = vmatprep.subr.mxu0 0.0
    %3684 = vmatpush2.msra.mxu0 0.0
    %3685 = vmatprep.subr.mxu0 0.0
    %3686 = vmatpush2.msra.mxu0 0.0
    %3687 = vmatprep.subr.mxu0 0.0
    %3688 = vmatpush2.msra.mxu0 0.0
    %3689 = vmatprep.subr.mxu0 0.0
    %3690 = vmatpush2.msra.mxu0 0.0
    %3691 = vmatprep.subr.mxu0 0.0
    %3692 = vmatpush2.msra.mxu0 0.0
    %3693 = vmatprep.subr.mxu0 0.0
    %3694 = vmatpush2.msra.mxu0 0.0
    %3695 = vmatprep.subr.mxu0 0.0
    %3696 = vmatpush2.msra.mxu0 0.0
    %3697 = vmatprep.subr.mxu0 0.0
    %3698 = vmatpush2.msra.mxu0 0.0
    %3699 = vmatprep.subr.mxu0 0.0
    %3700 = vmatpush2.msra.mxu0 0.0
    %3701 = vmatprep.subr.mxu0 0.0
    %3702 = vmatpush2.msra.mxu0 0.0
    %3703 = vmatprep.subr.mxu0 0.0
    %3704 = vmatpush2.msra.mxu0 0.0
    %3705 = vmatprep.mubr.f32.mxu0 0.0
    %3706 = vmatmul.mubr.f32.gmra.mxu0 %v3640
    %v3707 = vpop.f32.mrf.mxu0
    %v3708 = vadd.f32 %v402, %v3707
    %v3709 = vpop.f32.mrf.mxu0
    %v3710 = vadd.f32 %v406, %v3709
    %3711 = vdwg.mxu0
    %3712 = vmatprep.subr.mxu0 0.0
    %3713 = vmatpush1.msra.mxu0 %v675
    %3714 = vmatprep.subr.mxu0 0.0
    %3715 = vmatpush1.msra.mxu0 %v672
    %3716 = vmatprep.subr.mxu0 0.0
    %3717 = vmatpush1.msra.mxu0 %v669
    %3718 = vmatprep.subr.mxu0 0.0
    %3719 = vmatpush1.msra.mxu0 %v666
    %3720 = vmatprep.subr.mxu0 0.0
    %3721 = vmatpush1.msra.mxu0 %v663
    %3722 = vmatprep.subr.mxu0 0.0
    %3723 = vmatpush1.msra.mxu0 %v660
    %3724 = vmatprep.subr.mxu0 0.0
    %3725 = vmatpush1.msra.mxu0 %v657
    %3726 = vmatprep.subr.mxu0 0.0
    %3727 = vmatpush1.msra.mxu0 %v654
    %3728 = vmatprep.subr.mxu0 0.0
    %3729 = vmatpush1.msra.mxu0 %v651
    %3730 = vmatprep.subr.mxu0 0.0
    %3731 = vmatpush1.msra.mxu0 %v648
    %3732 = vmatprep.subr.mxu0 0.0
    %3733 = vmatpush1.msra.mxu0 %v645
    %3734 = vmatprep.subr.mxu0 0.0
    %3735 = vmatpush1.msra.mxu0 %v642
    %3736 = vmatprep.subr.mxu0 0.0
    %3737 = vmatpush1.msra.mxu0 %v639
    %3738 = vmatprep.subr.mxu0 0.0
    %3739 = vmatpush1.msra.mxu0 %v636
    %3740 = vmatprep.subr.mxu0 0.0
    %3741 = vmatpush1.msra.mxu0 %v633
    %3742 = vmatprep.subr.mxu0 0.0
    %3743 = vmatpush1.msra.mxu0 %v630
    %3744 = vmatprep.subr.mxu0 0.0
    %3745 = vmatpush2.msra.mxu0 0.0
    %3746 = vmatprep.subr.mxu0 0.0
    %3747 = vmatpush2.msra.mxu0 0.0
    %3748 = vmatprep.subr.mxu0 0.0
    %3749 = vmatpush2.msra.mxu0 0.0
    %3750 = vmatprep.subr.mxu0 0.0
    %3751 = vmatpush2.msra.mxu0 0.0
    %3752 = vmatprep.subr.mxu0 0.0
    %3753 = vmatpush2.msra.mxu0 0.0
    %3754 = vmatprep.subr.mxu0 0.0
    %3755 = vmatpush2.msra.mxu0 0.0
    %3756 = vmatprep.subr.mxu0 0.0
    %3757 = vmatpush2.msra.mxu0 0.0
    %3758 = vmatprep.subr.mxu0 0.0
    %3759 = vmatpush2.msra.mxu0 0.0
    %3760 = vmatprep.subr.mxu0 0.0
    %3761 = vmatpush2.msra.mxu0 0.0
    %3762 = vmatprep.subr.mxu0 0.0
    %3763 = vmatpush2.msra.mxu0 0.0
    %3764 = vmatprep.subr.mxu0 0.0
    %3765 = vmatpush2.msra.mxu0 0.0
    %3766 = vmatprep.subr.mxu0 0.0
    %3767 = vmatpush2.msra.mxu0 0.0
    %3768 = vmatprep.subr.mxu0 0.0
    %3769 = vmatpush2.msra.mxu0 0.0
    %3770 = vmatprep.subr.mxu0 0.0
    %3771 = vmatpush2.msra.mxu0 0.0
    %3772 = vmatprep.subr.mxu0 0.0
    %3773 = vmatpush2.msra.mxu0 0.0
    %3774 = vmatprep.subr.mxu0 0.0
    %3775 = vmatpush2.msra.mxu0 0.0
    %3776 = vmatprep.mubr.f32.mxu0 0.0
    %3777 = vmatmul.mubr.f32.gmra.mxu0 %v3640
    %v3778 = vpop.f32.mrf.mxu0
    %v3779 = vadd.f32 %v410, %v3778
    %v3780 = vpop.f32.mrf.mxu0
    %3781 = vdwg.mxu0
    %3782 = vmatprep.subr.mxu0 %v594
    %3783 = vmatpush1.msra.mxu0 %v593
    %3784 = vmatprep.subr.mxu0 %v591
    %3785 = vmatpush1.msra.mxu0 %v590
    %3786 = vmatprep.subr.mxu0 %v588
    %3787 = vmatpush1.msra.mxu0 %v587
    %3788 = vmatprep.subr.mxu0 %v585
    %3789 = vmatpush1.msra.mxu0 %v584
    %3790 = vmatprep.subr.mxu0 %v582
    %3791 = vmatpush1.msra.mxu0 %v581
    %3792 = vmatprep.subr.mxu0 %v579
    %3793 = vmatpush1.msra.mxu0 %v578
    %3794 = vmatprep.subr.mxu0 %v576
    %3795 = vmatpush1.msra.mxu0 %v575
    %3796 = vmatprep.subr.mxu0 %v573
    %3797 = vmatpush1.msra.mxu0 %v572
    %3798 = vmatprep.subr.mxu0 %v570
    %3799 = vmatpush1.msra.mxu0 %v569
    %3800 = vmatprep.subr.mxu0 %v567
    %3801 = vmatpush1.msra.mxu0 %v566
    %3802 = vmatprep.subr.mxu0 %v564
    %3803 = vmatpush1.msra.mxu0 %v563
    %3804 = vmatprep.subr.mxu0 %v561
    %3805 = vmatpush1.msra.mxu0 %v560
    %3806 = vmatprep.subr.mxu0 %v558
    %3807 = vmatpush1.msra.mxu0 %v557
    %3808 = vmatprep.subr.mxu0 %v555
    %3809 = vmatpush1.msra.mxu0 %v554
    %3810 = vmatprep.subr.mxu0 %v552
    %3811 = vmatpush1.msra.mxu0 %v551
    %3812 = vmatprep.subr.mxu0 %v549
    %3813 = vmatpush1.msra.mxu0 %v548
    %3814 = vmatprep.subr.mxu0 0.0
    %3815 = vmatpush2.msra.mxu0 0.0
    %3816 = vmatprep.subr.mxu0 0.0
    %3817 = vmatpush2.msra.mxu0 0.0
    %3818 = vmatprep.subr.mxu0 0.0
    %3819 = vmatpush2.msra.mxu0 0.0
    %3820 = vmatprep.subr.mxu0 0.0
    %3821 = vmatpush2.msra.mxu0 0.0
    %3822 = vmatprep.subr.mxu0 0.0
    %3823 = vmatpush2.msra.mxu0 0.0
    %3824 = vmatprep.subr.mxu0 0.0
    %3825 = vmatpush2.msra.mxu0 0.0
    %3826 = vmatprep.subr.mxu0 0.0
    %3827 = vmatpush2.msra.mxu0 0.0
    %3828 = vmatprep.subr.mxu0 0.0
    %3829 = vmatpush2.msra.mxu0 0.0
    %3830 = vmatprep.subr.mxu0 0.0
    %3831 = vmatpush2.msra.mxu0 0.0
    %3832 = vmatprep.subr.mxu0 0.0
    %3833 = vmatpush2.msra.mxu0 0.0
    %3834 = vmatprep.subr.mxu0 0.0
    %3835 = vmatpush2.msra.mxu0 0.0
    %3836 = vmatprep.subr.mxu0 0.0
    %3837 = vmatpush2.msra.mxu0 0.0
    %3838 = vmatprep.subr.mxu0 0.0
    %3839 = vmatpush2.msra.mxu0 0.0
    %3840 = vmatprep.subr.mxu0 0.0
    %3841 = vmatpush2.msra.mxu0 0.0
    %3842 = vmatprep.subr.mxu0 0.0
    %3843 = vmatpush2.msra.mxu0 0.0
    %3844 = vmatprep.subr.mxu0 0.0
    %3845 = vmatpush2.msra.mxu0 0.0
    %3846 = vmatprep.mubr.f32.mxu0 0.0
    %3847 = vmatmul.mubr.f32.gmra.mxu0 %v3477
    %v3848 = vpop.f32.mrf.mxu0
    %v3849 = vadd.f32 0.0, %v3848
    %v3850 = vpop.f32.mrf.mxu0
    %v3851 = vadd.f32 0.0, %v3850
    %3852 = vdwg.mxu0
    %3853 = vmatprep.subr.mxu0 0.0
    %3854 = vmatpush1.msra.mxu0 %v595
    %3855 = vmatprep.subr.mxu0 0.0
    %3856 = vmatpush1.msra.mxu0 %v592
    %3857 = vmatprep.subr.mxu0 0.0
    %3858 = vmatpush1.msra.mxu0 %v589
    %3859 = vmatprep.subr.mxu0 0.0
    %3860 = vmatpush1.msra.mxu0 %v586
    %3861 = vmatprep.subr.mxu0 0.0
    %3862 = vmatpush1.msra.mxu0 %v583
    %3863 = vmatprep.subr.mxu0 0.0
    %3864 = vmatpush1.msra.mxu0 %v580
    %3865 = vmatprep.subr.mxu0 0.0
    %3866 = vmatpush1.msra.mxu0 %v577
    %3867 = vmatprep.subr.mxu0 0.0
    %3868 = vmatpush1.msra.mxu0 %v574
    %3869 = vmatprep.subr.mxu0 0.0
    %3870 = vmatpush1.msra.mxu0 %v571
    %3871 = vmatprep.subr.mxu0 0.0
    %3872 = vmatpush1.msra.mxu0 %v568
    %3873 = vmatprep.subr.mxu0 0.0
    %3874 = vmatpush1.msra.mxu0 %v565
    %3875 = vmatprep.subr.mxu0 0.0
    %3876 = vmatpush1.msra.mxu0 %v562
    %3877 = vmatprep.subr.mxu0 0.0
    %3878 = vmatpush1.msra.mxu0 %v559
    %3879 = vmatprep.subr.mxu0 0.0
    %3880 = vmatpush1.msra.mxu0 %v556
    %3881 = vmatprep.subr.mxu0 0.0
    %3882 = vmatpush1.msra.mxu0 %v553
    %3883 = vmatprep.subr.mxu0 0.0
    %3884 = vmatpush1.msra.mxu0 %v550
    %3885 = vmatprep.subr.mxu0 0.0
    %3886 = vmatpush2.msra.mxu0 0.0
    %3887 = vmatprep.subr.mxu0 0.0
    %3888 = vmatpush2.msra.mxu0 0.0
    %3889 = vmatprep.subr.mxu0 0.0
    %3890 = vmatpush2.msra.mxu0 0.0
    %3891 = vmatprep.subr.mxu0 0.0
    %3892 = vmatpush2.msra.mxu0 0.0
    %3893 = vmatprep.subr.mxu0 0.0
    %3894 = vmatpush2.msra.mxu0 0.0
    %3895 = vmatprep.subr.mxu0 0.0
    %3896 = vmatpush2.msra.mxu0 0.0
    %3897 = vmatprep.subr.mxu0 0.0
    %3898 = vmatpush2.msra.mxu0 0.0
    %3899 = vmatprep.subr.mxu0 0.0
    %3900 = vmatpush2.msra.mxu0 0.0
    %3901 = vmatprep.subr.mxu0 0.0
    %3902 = vmatpush2.msra.mxu0 0.0
    %3903 = vmatprep.subr.mxu0 0.0
    %3904 = vmatpush2.msra.mxu0 0.0
    %3905 = vmatprep.subr.mxu0 0.0
    %3906 = vmatpush2.msra.mxu0 0.0
    %3907 = vmatprep.subr.mxu0 0.0
    %3908 = vmatpush2.msra.mxu0 0.0
    %3909 = vmatprep.subr.mxu0 0.0
    %3910 = vmatpush2.msra.mxu0 0.0
    %3911 = vmatprep.subr.mxu0 0.0
    %3912 = vmatpush2.msra.mxu0 0.0
    %3913 = vmatprep.subr.mxu0 0.0
    %3914 = vmatpush2.msra.mxu0 0.0
    %3915 = vmatprep.subr.mxu0 0.0
    %3916 = vmatpush2.msra.mxu0 0.0
    %3917 = vmatprep.mubr.f32.mxu0 0.0
    %3918 = vmatmul.mubr.f32.gmra.mxu0 %v3477
    %v3919 = vpop.f32.mrf.mxu0
    %v3920 = vadd.f32 0.0, %v3919
    %v3921 = vpop.f32.mrf.mxu0
    %3922 = vdwg.mxu0
    %v3923 = vadd.f32 %v3708, %v3849
    %v3924 = vxor.u32 %v3923, 2147483648
    %v3925 = vmul.f32 %v3924, 1.442695
    %v3926 = vpow.pop %v3925
    %v3927 = vadd.f32 %v3926, 1.0
    %v3928 = vrcp.pop %v3927
    %v3929 = vmul.f32 1.0, %v3928
    %v3930 = vadd.f32 %v3710, %v3851
    %v3931 = vxor.u32 %v3930, 2147483648
    %v3932 = vmul.f32 %v3931, 1.442695
    %v3933 = vpow.pop %v3932
    %v3934 = vadd.f32 %v3933, 1.0
    %v3935 = vrcp.pop %v3934
    %v3936 = vmul.f32 1.0, %v3935
    %v3937 = vadd.f32 %v3920, %v426
    %v3938 = vmul.f32 %v3929, %v3937
    %v3939 = vadd.f32 %v3779, %v3938
    %v3940 = vtanh.pop %v3939
    %v3941 = vsub.f32 1.0, %v3936
    %v3942 = vmul.f32 %v3941, %v3940
    %v3943 = vmul.f32 %v3936, %v3477
    %v3944 = vadd.f32 %v3942, %v3943
    %3945 = vmatprep.subr.mxu0 %v514
    %3946 = vmatpush1.msra.mxu0 %v513
    %3947 = vmatprep.subr.mxu0 %v511
    %3948 = vmatpush1.msra.mxu0 %v510
    %3949 = vmatprep.subr.mxu0 %v508
    %3950 = vmatpush1.msra.mxu0 %v507
    %3951 = vmatprep.subr.mxu0 %v505
    %3952 = vmatpush1.msra.mxu0 %v504
    %3953 = vmatprep.subr.mxu0 %v502
    %3954 = vmatpush1.msra.mxu0 %v501
    %3955 = vmatprep.subr.mxu0 %v499
    %3956 = vmatpush1.msra.mxu0 %v498
    %3957 = vmatprep.subr.mxu0 %v496
    %3958 = vmatpush1.msra.mxu0 %v495
    %3959 = vmatprep.subr.mxu0 %v493
    %3960 = vmatpush1.msra.mxu0 %v492
    %3961 = vmatprep.subr.mxu0 %v490
    %3962 = vmatpush1.msra.mxu0 %v489
    %3963 = vmatprep.subr.mxu0 %v487
    %3964 = vmatpush1.msra.mxu0 %v486
    %3965 = vmatprep.subr.mxu0 %v484
    %3966 = vmatpush1.msra.mxu0 %v483
    %3967 = vmatprep.subr.mxu0 %v481
    %3968 = vmatpush1.msra.mxu0 %v480
    %3969 = vmatprep.subr.mxu0 %v478
    %3970 = vmatpush1.msra.mxu0 %v477
    %3971 = vmatprep.subr.mxu0 %v475
    %3972 = vmatpush1.msra.mxu0 %v474
    %3973 = vmatprep.subr.mxu0 %v472
    %3974 = vmatpush1.msra.mxu0 %v471
    %3975 = vmatprep.subr.mxu0 %v469
    %3976 = vmatpush1.msra.mxu0 %v468
    %3977 = vmatprep.subr.mxu0 0.0
    %3978 = vmatpush2.msra.mxu0 0.0
    %3979 = vmatprep.subr.mxu0 0.0
    %3980 = vmatpush2.msra.mxu0 0.0
    %3981 = vmatprep.subr.mxu0 0.0
    %3982 = vmatpush2.msra.mxu0 0.0
    %3983 = vmatprep.subr.mxu0 0.0
    %3984 = vmatpush2.msra.mxu0 0.0
    %3985 = vmatprep.subr.mxu0 0.0
    %3986 = vmatpush2.msra.mxu0 0.0
    %3987 = vmatprep.subr.mxu0 0.0
    %3988 = vmatpush2.msra.mxu0 0.0
    %3989 = vmatprep.subr.mxu0 0.0
    %3990 = vmatpush2.msra.mxu0 0.0
    %3991 = vmatprep.subr.mxu0 0.0
    %3992 = vmatpush2.msra.mxu0 0.0
    %3993 = vmatprep.subr.mxu0 0.0
    %3994 = vmatpush2.msra.mxu0 0.0
    %3995 = vmatprep.subr.mxu0 0.0
    %3996 = vmatpush2.msra.mxu0 0.0
    %3997 = vmatprep.subr.mxu0 0.0
    %3998 = vmatpush2.msra.mxu0 0.0
    %3999 = vmatprep.subr.mxu0 0.0
    %4000 = vmatpush2.msra.mxu0 0.0
    %4001 = vmatprep.subr.mxu0 0.0
    %4002 = vmatpush2.msra.mxu0 0.0
    %4003 = vmatprep.subr.mxu0 0.0
    %4004 = vmatpush2.msra.mxu0 0.0
    %4005 = vmatprep.subr.mxu0 0.0
    %4006 = vmatpush2.msra.mxu0 0.0
    %4007 = vmatprep.subr.mxu0 0.0
    %4008 = vmatpush2.msra.mxu0 0.0
    %4009 = vmatprep.mubr.f32.mxu0 0.0
    %4010 = vmatmul.mubr.f32.gmra.mxu0 %v3640
    %v4011 = vpop.f32.mrf.mxu0
    %v4012 = vadd.f32 0.0, %v4011
    %v4013 = vpop.f32.mrf.mxu0
    %v4014 = vadd.f32 0.0, %v4013
    %4015 = vdwg.mxu0
    %4016 = vmatprep.subr.mxu0 0.0
    %4017 = vmatpush1.msra.mxu0 %v515
    %4018 = vmatprep.subr.mxu0 0.0
    %4019 = vmatpush1.msra.mxu0 %v512
    %4020 = vmatprep.subr.mxu0 0.0
    %4021 = vmatpush1.msra.mxu0 %v509
    %4022 = vmatprep.subr.mxu0 0.0
    %4023 = vmatpush1.msra.mxu0 %v506
    %4024 = vmatprep.subr.mxu0 0.0
    %4025 = vmatpush1.msra.mxu0 %v503
    %4026 = vmatprep.subr.mxu0 0.0
    %4027 = vmatpush1.msra.mxu0 %v500
    %4028 = vmatprep.subr.mxu0 0.0
    %4029 = vmatpush1.msra.mxu0 %v497
    %4030 = vmatprep.subr.mxu0 0.0
    %4031 = vmatpush1.msra.mxu0 %v494
    %4032 = vmatprep.subr.mxu0 0.0
    %4033 = vmatpush1.msra.mxu0 %v491
    %4034 = vmatprep.subr.mxu0 0.0
    %4035 = vmatpush1.msra.mxu0 %v488
    %4036 = vmatprep.subr.mxu0 0.0
    %4037 = vmatpush1.msra.mxu0 %v485
    %4038 = vmatprep.subr.mxu0 0.0
    %4039 = vmatpush1.msra.mxu0 %v482
    %4040 = vmatprep.subr.mxu0 0.0
    %4041 = vmatpush1.msra.mxu0 %v479
    %4042 = vmatprep.subr.mxu0 0.0
    %4043 = vmatpush1.msra.mxu0 %v476
    %4044 = vmatprep.subr.mxu0 0.0
    %4045 = vmatpush1.msra.mxu0 %v473
    %4046 = vmatprep.subr.mxu0 0.0
    %4047 = vmatpush1.msra.mxu0 %v470
    %4048 = vmatprep.subr.mxu0 0.0
    %4049 = vmatpush2.msra.mxu0 0.0
    %4050 = vmatprep.subr.mxu0 0.0
    %4051 = vmatpush2.msra.mxu0 0.0
    %4052 = vmatprep.subr.mxu0 0.0
    %4053 = vmatpush2.msra.mxu0 0.0
    %4054 = vmatprep.subr.mxu0 0.0
    %4055 = vmatpush2.msra.mxu0 0.0
    %4056 = vmatprep.subr.mxu0 0.0
    %4057 = vmatpush2.msra.mxu0 0.0
    %4058 = vmatprep.subr.mxu0 0.0
    %4059 = vmatpush2.msra.mxu0 0.0
    %4060 = vmatprep.subr.mxu0 0.0
    %4061 = vmatpush2.msra.mxu0 0.0
    %4062 = vmatprep.subr.mxu0 0.0
    %4063 = vmatpush2.msra.mxu0 0.0
    %4064 = vmatprep.subr.mxu0 0.0
    %4065 = vmatpush2.msra.mxu0 0.0
    %4066 = vmatprep.subr.mxu0 0.0
    %4067 = vmatpush2.msra.mxu0 0.0
    %4068 = vmatprep.subr.mxu0 0.0
    %4069 = vmatpush2.msra.mxu0 0.0
    %4070 = vmatprep.subr.mxu0 0.0
    %4071 = vmatpush2.msra.mxu0 0.0
    %4072 = vmatprep.subr.mxu0 0.0
    %4073 = vmatpush2.msra.mxu0 0.0
    %4074 = vmatprep.subr.mxu0 0.0
    %4075 = vmatpush2.msra.mxu0 0.0
    %4076 = vmatprep.subr.mxu0 0.0
    %4077 = vmatpush2.msra.mxu0 0.0
    %4078 = vmatprep.subr.mxu0 0.0
    %4079 = vmatpush2.msra.mxu0 0.0
    %4080 = vmatprep.mubr.f32.mxu0 0.0
    %4081 = vmatmul.mubr.f32.gmra.mxu0 %v3640
    %v4082 = vpop.f32.mrf.mxu0
    %v4083 = vadd.f32 0.0, %v4082
    %v4084 = vpop.f32.mrf.mxu0
    %4085 = vdwg.mxu0
    %v4086 = vadd.f32 %v288, %v4012
    %v4087 = vxor.u32 %v4086, 2147483648
    %v4088 = vmul.f32 %v4087, 1.442695
    %v4089 = vpow.pop %v4088
    %v4090 = vadd.f32 %v4089, 1.0
    %v4091 = vrcp.pop %v4090
    %v4092 = vmul.f32 1.0, %v4091
    %v4093 = vadd.f32 %v290, %v4014
    %v4094 = vxor.u32 %v4093, 2147483648
    %v4095 = vmul.f32 %v4094, 1.442695
    %v4096 = vpow.pop %v4095
    %v4097 = vadd.f32 %v4096, 1.0
    %v4098 = vrcp.pop %v4097
    %v4099 = vmul.f32 1.0, %v4098
    %v4100 = vadd.f32 %v4083, %v419
    %v4101 = vmul.f32 %v4092, %v4100
    %v4102 = vadd.f32 %v394, %v4101
    %v4103 = vtanh.pop %v4102
    %v4104 = vsub.f32 1.0, %v4099
    %v4105 = vmul.f32 %v4104, %v4103
    %v4106 = vmul.f32 %v4099, %v3640
    %v4107 = vadd.f32 %v4105, %v4106
    %4108 = vmatprep.subr.mxu0 %v674
    %4109 = vmatpush1.msra.mxu0 %v673
    %4110 = vmatprep.subr.mxu0 %v671
    %4111 = vmatpush1.msra.mxu0 %v670
    %4112 = vmatprep.subr.mxu0 %v668
    %4113 = vmatpush1.msra.mxu0 %v667
    %4114 = vmatprep.subr.mxu0 %v665
    %4115 = vmatpush1.msra.mxu0 %v664
    %4116 = vmatprep.subr.mxu0 %v662
    %4117 = vmatpush1.msra.mxu0 %v661
    %4118 = vmatprep.subr.mxu0 %v659
    %4119 = vmatpush1.msra.mxu0 %v658
    %4120 = vmatprep.subr.mxu0 %v656
    %4121 = vmatpush1.msra.mxu0 %v655
    %4122 = vmatprep.subr.mxu0 %v653
    %4123 = vmatpush1.msra.mxu0 %v652
    %4124 = vmatprep.subr.mxu0 %v650
    %4125 = vmatpush1.msra.mxu0 %v649
    %4126 = vmatprep.subr.mxu0 %v647
    %4127 = vmatpush1.msra.mxu0 %v646
    %4128 = vmatprep.subr.mxu0 %v644
    %4129 = vmatpush1.msra.mxu0 %v643
    %4130 = vmatprep.subr.mxu0 %v641
    %4131 = vmatpush1.msra.mxu0 %v640
    %4132 = vmatprep.subr.mxu0 %v638
    %4133 = vmatpush1.msra.mxu0 %v637
    %4134 = vmatprep.subr.mxu0 %v635
    %4135 = vmatpush1.msra.mxu0 %v634
    %4136 = vmatprep.subr.mxu0 %v632
    %4137 = vmatpush1.msra.mxu0 %v631
    %4138 = vmatprep.subr.mxu0 %v629
    %4139 = vmatpush1.msra.mxu0 %v628
    %4140 = vmatprep.subr.mxu0 0.0
    %4141 = vmatpush2.msra.mxu0 0.0
    %4142 = vmatprep.subr.mxu0 0.0
    %4143 = vmatpush2.msra.mxu0 0.0
    %4144 = vmatprep.subr.mxu0 0.0
    %4145 = vmatpush2.msra.mxu0 0.0
    %4146 = vmatprep.subr.mxu0 0.0
    %4147 = vmatpush2.msra.mxu0 0.0
    %4148 = vmatprep.subr.mxu0 0.0
    %4149 = vmatpush2.msra.mxu0 0.0
    %4150 = vmatprep.subr.mxu0 0.0
    %4151 = vmatpush2.msra.mxu0 0.0
    %4152 = vmatprep.subr.mxu0 0.0
    %4153 = vmatpush2.msra.mxu0 0.0
    %4154 = vmatprep.subr.mxu0 0.0
    %4155 = vmatpush2.msra.mxu0 0.0
    %4156 = vmatprep.subr.mxu0 0.0
    %4157 = vmatpush2.msra.mxu0 0.0
    %4158 = vmatprep.subr.mxu0 0.0
    %4159 = vmatpush2.msra.mxu0 0.0
    %4160 = vmatprep.subr.mxu0 0.0
    %4161 = vmatpush2.msra.mxu0 0.0
    %4162 = vmatprep.subr.mxu0 0.0
    %4163 = vmatpush2.msra.mxu0 0.0
    %4164 = vmatprep.subr.mxu0 0.0
    %4165 = vmatpush2.msra.mxu0 0.0
    %4166 = vmatprep.subr.mxu0 0.0
    %4167 = vmatpush2.msra.mxu0 0.0
    %4168 = vmatprep.subr.mxu0 0.0
    %4169 = vmatpush2.msra.mxu0 0.0
    %4170 = vmatprep.subr.mxu0 0.0
    %4171 = vmatpush2.msra.mxu0 0.0
    %4172 = vmatprep.mubr.f32.mxu0 0.0
    %4173 = vmatmul.mubr.f32.gmra.mxu0 %v4107
    %v4174 = vpop.f32.mrf.mxu0
    %v4175 = vadd.f32 %v402, %v4174
    %v4176 = vpop.f32.mrf.mxu0
    %v4177 = vadd.f32 %v406, %v4176
    %4178 = vdwg.mxu0
    %4179 = vmatprep.subr.mxu0 0.0
    %4180 = vmatpush1.msra.mxu0 %v675
    %4181 = vmatprep.subr.mxu0 0.0
    %4182 = vmatpush1.msra.mxu0 %v672
    %4183 = vmatprep.subr.mxu0 0.0
    %4184 = vmatpush1.msra.mxu0 %v669
    %4185 = vmatprep.subr.mxu0 0.0
    %4186 = vmatpush1.msra.mxu0 %v666
    %4187 = vmatprep.subr.mxu0 0.0
    %4188 = vmatpush1.msra.mxu0 %v663
    %4189 = vmatprep.subr.mxu0 0.0
    %4190 = vmatpush1.msra.mxu0 %v660
    %4191 = vmatprep.subr.mxu0 0.0
    %4192 = vmatpush1.msra.mxu0 %v657
    %4193 = vmatprep.subr.mxu0 0.0
    %4194 = vmatpush1.msra.mxu0 %v654
    %4195 = vmatprep.subr.mxu0 0.0
    %4196 = vmatpush1.msra.mxu0 %v651
    %4197 = vmatprep.subr.mxu0 0.0
    %4198 = vmatpush1.msra.mxu0 %v648
    %4199 = vmatprep.subr.mxu0 0.0
    %4200 = vmatpush1.msra.mxu0 %v645
    %4201 = vmatprep.subr.mxu0 0.0
    %4202 = vmatpush1.msra.mxu0 %v642
    %4203 = vmatprep.subr.mxu0 0.0
    %4204 = vmatpush1.msra.mxu0 %v639
    %4205 = vmatprep.subr.mxu0 0.0
    %4206 = vmatpush1.msra.mxu0 %v636
    %4207 = vmatprep.subr.mxu0 0.0
    %4208 = vmatpush1.msra.mxu0 %v633
    %4209 = vmatprep.subr.mxu0 0.0
    %4210 = vmatpush1.msra.mxu0 %v630
    %4211 = vmatprep.subr.mxu0 0.0
    %4212 = vmatpush2.msra.mxu0 0.0
    %4213 = vmatprep.subr.mxu0 0.0
    %4214 = vmatpush2.msra.mxu0 0.0
    %4215 = vmatprep.subr.mxu0 0.0
    %4216 = vmatpush2.msra.mxu0 0.0
    %4217 = vmatprep.subr.mxu0 0.0
    %4218 = vmatpush2.msra.mxu0 0.0
    %4219 = vmatprep.subr.mxu0 0.0
    %4220 = vmatpush2.msra.mxu0 0.0
    %4221 = vmatprep.subr.mxu0 0.0
    %4222 = vmatpush2.msra.mxu0 0.0
    %4223 = vmatprep.subr.mxu0 0.0
    %4224 = vmatpush2.msra.mxu0 0.0
    %4225 = vmatprep.subr.mxu0 0.0
    %4226 = vmatpush2.msra.mxu0 0.0
    %4227 = vmatprep.subr.mxu0 0.0
    %4228 = vmatpush2.msra.mxu0 0.0
    %4229 = vmatprep.subr.mxu0 0.0
    %4230 = vmatpush2.msra.mxu0 0.0
    %4231 = vmatprep.subr.mxu0 0.0
    %4232 = vmatpush2.msra.mxu0 0.0
    %4233 = vmatprep.subr.mxu0 0.0
    %4234 = vmatpush2.msra.mxu0 0.0
    %4235 = vmatprep.subr.mxu0 0.0
    %4236 = vmatpush2.msra.mxu0 0.0
    %4237 = vmatprep.subr.mxu0 0.0
    %4238 = vmatpush2.msra.mxu0 0.0
    %4239 = vmatprep.subr.mxu0 0.0
    %4240 = vmatpush2.msra.mxu0 0.0
    %4241 = vmatprep.subr.mxu0 0.0
    %4242 = vmatpush2.msra.mxu0 0.0
    %4243 = vmatprep.mubr.f32.mxu0 0.0
    %4244 = vmatmul.mubr.f32.gmra.mxu0 %v4107
    %v4245 = vpop.f32.mrf.mxu0
    %v4246 = vadd.f32 %v410, %v4245
    %v4247 = vpop.f32.mrf.mxu0
    %4248 = vdwg.mxu0
    %4249 = vmatprep.subr.mxu0 %v594
    %4250 = vmatpush1.msra.mxu0 %v593
    %4251 = vmatprep.subr.mxu0 %v591
    %4252 = vmatpush1.msra.mxu0 %v590
    %4253 = vmatprep.subr.mxu0 %v588
    %4254 = vmatpush1.msra.mxu0 %v587
    %4255 = vmatprep.subr.mxu0 %v585
    %4256 = vmatpush1.msra.mxu0 %v584
    %4257 = vmatprep.subr.mxu0 %v582
    %4258 = vmatpush1.msra.mxu0 %v581
    %4259 = vmatprep.subr.mxu0 %v579
    %4260 = vmatpush1.msra.mxu0 %v578
    %4261 = vmatprep.subr.mxu0 %v576
    %4262 = vmatpush1.msra.mxu0 %v575
    %4263 = vmatprep.subr.mxu0 %v573
    %4264 = vmatpush1.msra.mxu0 %v572
    %4265 = vmatprep.subr.mxu0 %v570
    %4266 = vmatpush1.msra.mxu0 %v569
    %4267 = vmatprep.subr.mxu0 %v567
    %4268 = vmatpush1.msra.mxu0 %v566
    %4269 = vmatprep.subr.mxu0 %v564
    %4270 = vmatpush1.msra.mxu0 %v563
    %4271 = vmatprep.subr.mxu0 %v561
    %4272 = vmatpush1.msra.mxu0 %v560
    %4273 = vmatprep.subr.mxu0 %v558
    %4274 = vmatpush1.msra.mxu0 %v557
    %4275 = vmatprep.subr.mxu0 %v555
    %4276 = vmatpush1.msra.mxu0 %v554
    %4277 = vmatprep.subr.mxu0 %v552
    %4278 = vmatpush1.msra.mxu0 %v551
    %4279 = vmatprep.subr.mxu0 %v549
    %4280 = vmatpush1.msra.mxu0 %v548
    %4281 = vmatprep.subr.mxu0 0.0
    %4282 = vmatpush2.msra.mxu0 0.0
    %4283 = vmatprep.subr.mxu0 0.0
    %4284 = vmatpush2.msra.mxu0 0.0
    %4285 = vmatprep.subr.mxu0 0.0
    %4286 = vmatpush2.msra.mxu0 0.0
    %4287 = vmatprep.subr.mxu0 0.0
    %4288 = vmatpush2.msra.mxu0 0.0
    %4289 = vmatprep.subr.mxu0 0.0
    %4290 = vmatpush2.msra.mxu0 0.0
    %4291 = vmatprep.subr.mxu0 0.0
    %4292 = vmatpush2.msra.mxu0 0.0
    %4293 = vmatprep.subr.mxu0 0.0
    %4294 = vmatpush2.msra.mxu0 0.0
    %4295 = vmatprep.subr.mxu0 0.0
    %4296 = vmatpush2.msra.mxu0 0.0
    %4297 = vmatprep.subr.mxu0 0.0
    %4298 = vmatpush2.msra.mxu0 0.0
    %4299 = vmatprep.subr.mxu0 0.0
    %4300 = vmatpush2.msra.mxu0 0.0
    %4301 = vmatprep.subr.mxu0 0.0
    %4302 = vmatpush2.msra.mxu0 0.0
    %4303 = vmatprep.subr.mxu0 0.0
    %4304 = vmatpush2.msra.mxu0 0.0
    %4305 = vmatprep.subr.mxu0 0.0
    %4306 = vmatpush2.msra.mxu0 0.0
    %4307 = vmatprep.subr.mxu0 0.0
    %4308 = vmatpush2.msra.mxu0 0.0
    %4309 = vmatprep.subr.mxu0 0.0
    %4310 = vmatpush2.msra.mxu0 0.0
    %4311 = vmatprep.subr.mxu0 0.0
    %4312 = vmatpush2.msra.mxu0 0.0
    %4313 = vmatprep.mubr.f32.mxu0 0.0
    %4314 = vmatmul.mubr.f32.gmra.mxu0 %v3944
    %v4315 = vpop.f32.mrf.mxu0
    %v4316 = vadd.f32 0.0, %v4315
    %v4317 = vpop.f32.mrf.mxu0
    %v4318 = vadd.f32 0.0, %v4317
    %4319 = vdwg.mxu0
    %4320 = vmatprep.subr.mxu0 0.0
    %4321 = vmatpush1.msra.mxu0 %v595
    %4322 = vmatprep.subr.mxu0 0.0
    %4323 = vmatpush1.msra.mxu0 %v592
    %4324 = vmatprep.subr.mxu0 0.0
    %4325 = vmatpush1.msra.mxu0 %v589
    %4326 = vmatprep.subr.mxu0 0.0
    %4327 = vmatpush1.msra.mxu0 %v586
    %4328 = vmatprep.subr.mxu0 0.0
    %4329 = vmatpush1.msra.mxu0 %v583
    %4330 = vmatprep.subr.mxu0 0.0
    %4331 = vmatpush1.msra.mxu0 %v580
    %4332 = vmatprep.subr.mxu0 0.0
    %4333 = vmatpush1.msra.mxu0 %v577
    %4334 = vmatprep.subr.mxu0 0.0
    %4335 = vmatpush1.msra.mxu0 %v574
    %4336 = vmatprep.subr.mxu0 0.0
    %4337 = vmatpush1.msra.mxu0 %v571
    %4338 = vmatprep.subr.mxu0 0.0
    %4339 = vmatpush1.msra.mxu0 %v568
    %4340 = vmatprep.subr.mxu0 0.0
    %4341 = vmatpush1.msra.mxu0 %v565
    %4342 = vmatprep.subr.mxu0 0.0
    %4343 = vmatpush1.msra.mxu0 %v562
    %4344 = vmatprep.subr.mxu0 0.0
    %4345 = vmatpush1.msra.mxu0 %v559
    %4346 = vmatprep.subr.mxu0 0.0
    %4347 = vmatpush1.msra.mxu0 %v556
    %4348 = vmatprep.subr.mxu0 0.0
    %4349 = vmatpush1.msra.mxu0 %v553
    %4350 = vmatprep.subr.mxu0 0.0
    %4351 = vmatpush1.msra.mxu0 %v550
    %4352 = vmatprep.subr.mxu0 0.0
    %4353 = vmatpush2.msra.mxu0 0.0
    %4354 = vmatprep.subr.mxu0 0.0
    %4355 = vmatpush2.msra.mxu0 0.0
    %4356 = vmatprep.subr.mxu0 0.0
    %4357 = vmatpush2.msra.mxu0 0.0
    %4358 = vmatprep.subr.mxu0 0.0
    %4359 = vmatpush2.msra.mxu0 0.0
    %4360 = vmatprep.subr.mxu0 0.0
    %4361 = vmatpush2.msra.mxu0 0.0
    %4362 = vmatprep.subr.mxu0 0.0
    %4363 = vmatpush2.msra.mxu0 0.0
    %4364 = vmatprep.subr.mxu0 0.0
    %4365 = vmatpush2.msra.mxu0 0.0
    %4366 = vmatprep.subr.mxu0 0.0
    %4367 = vmatpush2.msra.mxu0 0.0
    %4368 = vmatprep.subr.mxu0 0.0
    %4369 = vmatpush2.msra.mxu0 0.0
    %4370 = vmatprep.subr.mxu0 0.0
    %4371 = vmatpush2.msra.mxu0 0.0
    %4372 = vmatprep.subr.mxu0 0.0
    %4373 = vmatpush2.msra.mxu0 0.0
    %4374 = vmatprep.subr.mxu0 0.0
    %4375 = vmatpush2.msra.mxu0 0.0
    %4376 = vmatprep.subr.mxu0 0.0
    %4377 = vmatpush2.msra.mxu0 0.0
    %4378 = vmatprep.subr.mxu0 0.0
    %4379 = vmatpush2.msra.mxu0 0.0
    %4380 = vmatprep.subr.mxu0 0.0
    %4381 = vmatpush2.msra.mxu0 0.0
    %4382 = vmatprep.subr.mxu0 0.0
    %4383 = vmatpush2.msra.mxu0 0.0
    %4384 = vmatprep.mubr.f32.mxu0 0.0
    %4385 = vmatmul.mubr.f32.gmra.mxu0 %v3944
    %v4386 = vpop.f32.mrf.mxu0
    %v4387 = vadd.f32 0.0, %v4386
    %v4388 = vpop.f32.mrf.mxu0
    %4389 = vdwg.mxu0
    %v4390 = vadd.f32 %v4175, %v4316
    %v4391 = vxor.u32 %v4390, 2147483648
    %v4392 = vmul.f32 %v4391, 1.442695
    %v4393 = vpow.pop %v4392
    %v4394 = vadd.f32 %v4393, 1.0
    %v4395 = vrcp.pop %v4394
    %v4396 = vmul.f32 1.0, %v4395
    %v4397 = vadd.f32 %v4177, %v4318
    %v4398 = vxor.u32 %v4397, 2147483648
    %v4399 = vmul.f32 %v4398, 1.442695
    %v4400 = vpow.pop %v4399
    %v4401 = vadd.f32 %v4400, 1.0
    %v4402 = vrcp.pop %v4401
    %v4403 = vmul.f32 1.0, %v4402
    %v4404 = vadd.f32 %v4387, %v426
    %v4405 = vmul.f32 %v4396, %v4404
    %v4406 = vadd.f32 %v4246, %v4405
    %v4407 = vtanh.pop %v4406
    %v4408 = vsub.f32 1.0, %v4403
    %v4409 = vmul.f32 %v4408, %v4407
    %v4410 = vmul.f32 %v4403, %v3944
    %v4411 = vadd.f32 %v4409, %v4410
    %s4412 = smul.u32 %s428, 1
    %s4413 = sshll.u32 %s4412, 4
    %4414 = dma.done %s66, %s4413
    %v4415 = vld [vmem:[#allocation5] sm:$0xf]
    %v4416 = vld [vmem:[#allocation5 + $0x4] sm:$0xf]
    %v4417 = vld [vmem:[#allocation5 + $0x8] sm:$0xf]
    %v4418 = vld [vmem:[#allocation5 + $0xc] sm:$0xf]
    %v4419 = vld [vmem:[#allocation5 + $0x10] sm:$0xf]
    %v4420 = vld [vmem:[#allocation5 + $0x14] sm:$0xf]
    %v4421 = vld [vmem:[#allocation5 + $0x18] sm:$0xf]
    %v4422 = vld [vmem:[#allocation5 + $0x1c] sm:$0xf]
    %v4423 = vld [vmem:[#allocation5 + $0x20] sm:$0xf]
    %v4424 = vld [vmem:[#allocation5 + $0x24] sm:$0xf]
    %v4425 = vld [vmem:[#allocation5 + $0x28] sm:$0xf]
    %v4426 = vld [vmem:[#allocation5 + $0x2c] sm:$0xf]
    %v4427 = vld [vmem:[#allocation5 + $0x30] sm:$0xf]
    %v4428 = vld [vmem:[#allocation5 + $0x34] sm:$0xf]
    %v4429 = vld [vmem:[#allocation5 + $0x38] sm:$0xf]
    %v4430 = vld [vmem:[#allocation5 + $0x3c] sm:$0xf]
    %v4431 = vunpack.c.l.bf16 %v4415
    %v4432 = vunpack.c.l.bf16 %v4416
    %v4433 = vunpack.c.l.bf16 %v4417
    %v4434 = vunpack.c.l.bf16 %v4418
    %v4435 = vunpack.c.l.bf16 %v4419
    %v4436 = vunpack.c.l.bf16 %v4420
    %v4437 = vunpack.c.l.bf16 %v4421
    %v4438 = vunpack.c.l.bf16 %v4422
    %v4439 = vunpack.c.l.bf16 %v4423
    %v4440 = vunpack.c.l.bf16 %v4424
    %v4441 = vunpack.c.l.bf16 %v4425
    %v4442 = vunpack.c.l.bf16 %v4426
    %v4443 = vunpack.c.l.bf16 %v4427
    %v4444 = vunpack.c.l.bf16 %v4428
    %v4445 = vunpack.c.l.bf16 %v4429
    %v4446 = vunpack.c.l.bf16 %v4430
    %v4447 = vld [vmem:[%s6] sm:$0x1]
    %v4449 = vlaneseq
    %v4450 = vshrl.u32 %v4449, 7
    %v4451 = vsub.s32 0, %v4450
    %v4452 = vrot.slane %v4447, %v4451
    %4454 = vmatprep.subr.mxu0 0.0
    %4455 = vmatpush1.msra.mxu0 %v4446
    %4456 = vmatprep.subr.mxu0 0.0
    %4457 = vmatpush1.msra.mxu0 %v4445
    %4458 = vmatprep.subr.mxu0 0.0
    %4459 = vmatpush1.msra.mxu0 %v4444
    %4460 = vmatprep.subr.mxu0 0.0
    %4461 = vmatpush1.msra.mxu0 %v4443
    %4462 = vmatprep.subr.mxu0 0.0
    %4463 = vmatpush1.msra.mxu0 %v4442
    %4464 = vmatprep.subr.mxu0 0.0
    %4465 = vmatpush1.msra.mxu0 %v4441
    %4466 = vmatprep.subr.mxu0 0.0
    %4467 = vmatpush1.msra.mxu0 %v4440
    %4468 = vmatprep.subr.mxu0 0.0
    %4469 = vmatpush1.msra.mxu0 %v4439
    %4470 = vmatprep.subr.mxu0 0.0
    %4471 = vmatpush1.msra.mxu0 %v4438
    %4472 = vmatprep.subr.mxu0 0.0
    %4473 = vmatpush1.msra.mxu0 %v4437
    %4474 = vmatprep.subr.mxu0 0.0
    %4475 = vmatpush1.msra.mxu0 %v4436
    %4476 = vmatprep.subr.mxu0 0.0
    %4477 = vmatpush1.msra.mxu0 %v4435
    %4478 = vmatprep.subr.mxu0 0.0
    %4479 = vmatpush1.msra.mxu0 %v4434
    %4480 = vmatprep.subr.mxu0 0.0
    %4481 = vmatpush1.msra.mxu0 %v4433
    %4482 = vmatprep.subr.mxu0 0.0
    %4483 = vmatpush1.msra.mxu0 %v4432
    %4484 = vmatprep.subr.mxu0 0.0
    %4485 = vmatpush1.msra.mxu0 %v4431
    %4486 = vmatprep.subr.mxu0 0.0
    %4487 = vmatpush2.msra.mxu0 0.0
    %4488 = vmatprep.subr.mxu0 0.0
    %4489 = vmatpush2.msra.mxu0 0.0
    %4490 = vmatprep.subr.mxu0 0.0
    %4491 = vmatpush2.msra.mxu0 0.0
    %4492 = vmatprep.subr.mxu0 0.0
    %4493 = vmatpush2.msra.mxu0 0.0
    %4494 = vmatprep.subr.mxu0 0.0
    %4495 = vmatpush2.msra.mxu0 0.0
    %4496 = vmatprep.subr.mxu0 0.0
    %4497 = vmatpush2.msra.mxu0 0.0
    %4498 = vmatprep.subr.mxu0 0.0
    %4499 = vmatpush2.msra.mxu0 0.0
    %4500 = vmatprep.subr.mxu0 0.0
    %4501 = vmatpush2.msra.mxu0 0.0
    %4502 = vmatprep.subr.mxu0 0.0
    %4503 = vmatpush2.msra.mxu0 0.0
    %4504 = vmatprep.subr.mxu0 0.0
    %4505 = vmatpush2.msra.mxu0 0.0
    %4506 = vmatprep.subr.mxu0 0.0
    %4507 = vmatpush2.msra.mxu0 0.0
    %4508 = vmatprep.subr.mxu0 0.0
    %4509 = vmatpush2.msra.mxu0 0.0
    %4510 = vmatprep.subr.mxu0 0.0
    %4511 = vmatpush2.msra.mxu0 0.0
    %4512 = vmatprep.subr.mxu0 0.0
    %4513 = vmatpush2.msra.mxu0 0.0
    %4514 = vmatprep.subr.mxu0 0.0
    %4515 = vmatpush2.msra.mxu0 0.0
    %4516 = vmatprep.subr.mxu0 0.0
    %4517 = vmatpush2.msra.mxu0 0.0
    %4518 = vmatprep.mubr.f32.mxu0 0.0
    %4519 = vmatmul.mubr.f32.gmra.mxu0 %v4411
    %v4520 = vpop.f32.mrf.mxu0
    %v4521 = vadd.f32 %v4452, %v4520
    %v4522 = vpop.f32.mrf.mxu0
    %4523 = vdwg.mxu0
    %4524 = vst [vmem:[#allocation7] sm:$0xff] %v4521
    // Predicated region
    $region76: #{tpu_custom_call.1} parent=1 // pred_check
      _
    $region77: #{tpu_custom_call.1} parent=1 // pred_check_branch
      %4526 = sbr.rel (0) target = $region79
    $region78: #{tpu_custom_call.1} parent=1 // pred_region
      %s4528 = ssub.s32 128, 128
      %4529 = vsyncadd [#allocation8], %s4528
      %s4531 = sshll.u32 [#allocation7], 4
      %s4532 = int_to_ptr.vmem [resolvable:$true] %s4531
      %4534 = dma.vmem_to_hbm [thread:$0]  %s4532, 128, %s11, [#allocation8]
    $region79: #{tpu_custom_call.1} parent=1 // pred_fallthru
      _
    // Predicated region
    $region80: #{tpu_custom_call.1} parent=1 // pred_check
      _
    $region81: #{tpu_custom_call.1} parent=1 // pred_check_branch
      %4536 = sbr.rel (0) target = $region83
    $region82: #{tpu_custom_call.1} parent=1 // pred_region
      %4537 = dma.done [#allocation8], 128
    $region83: #{tpu_custom_call.1} parent=1 // pred_fallthru
      _
    %4538 = vsyncpa [#allocation8], 1
  %4539 = vsyncmov [#allocation6]
  %s4540 = vpop.sfrf %4539
  %p4541 = scmp.eq.s32.totalorder %s4540, 0
  %p4542 = pneg %p4541
  %4544 = shalt.err (%p4542)
  %s4545 = scalar_lea.sflag [#allocation6], 1
  %4546 = vsyncmov %s4545
  %s4547 = vpop.sfrf %4546
  %p4548 = scmp.eq.s32.totalorder %s4547, 0
  %p4549 = pneg %p4548
  %4551 = shalt.err (%p4549)
  %s4552 = scalar_lea.sflag [#allocation6], 2
  %4553 = vsyncmov %s4552
  %s4554 = vpop.sfrf %4553
  %p4555 = scmp.eq.s32.totalorder %s4554, 0
  %p4556 = pneg %p4555
  %4558 = shalt.err (%p4556)
  %s4559 = scalar_lea.sflag [#allocation6], 3
  %4560 = vsyncmov %s4559
  %s4561 = vpop.sfrf %4560
  %p4562 = scmp.eq.s32.totalorder %s4561, 0
  %p4563 = pneg %p4562
  %4565 = shalt.err (%p4563)

</llo_original>
